<compile_context>
chip_gen: v6e
topology: v6e:2x2x1
jax: 0.10.0
libtpu: 0.0.40
codegen_flags: <defaults>
</compile_context>

<pallas_src>
import functools
import math

import jax
import jax.numpy as jnp
from jax import lax
from jax.experimental import pallas as pl
from jax.experimental.pallas import tpu as pltpu


# ----------------------------------------------------------------------------
# Fused kernel: one batch element per grid step, everything in VMEM.
# ----------------------------------------------------------------------------
def _wide_basic_kernel(*refs, stride, has_proj, padl):
    n_in = 8 + (2 if has_proj else 0)
    in_refs = refs[:n_in]
    o_ref = refs[n_in]
    scratch = refs[n_in + 1:]
    if has_proj:
        (x_ref, s1_ref, t1_ref, w1_ref, s2_ref, t2_ref, w2_ref, b2_ref,
         wsc_ref, bsc_ref) = in_refs
    else:
        (x_ref, s1_ref, t1_ref, w1_ref, s2_ref, t2_ref, w2_ref, b2_ref) = in_refs
        wsc_ref = bsc_ref = None
    if stride > 1:
        pad1, pad2, cols2, xcol = scratch
    else:
        pad1, pad2 = scratch
        cols2 = xcol = None

    f32 = jnp.float32
    H, W, Cin = x_ref.shape
    Cmid = w1_ref.shape[2]
    Ho, Wo, Cout = o_ref.shape
    cdt = x_ref.dtype                    # matmul-operand (compute) dtype
    s = stride
    L = padl                             # sublane-aligned left halo width
    Wp = pad1.shape[1]                   # padded width = W + L + 1

    def zero_halo(pad, C):
        # Only the halo cells the taps actually read are zeroed (interior is
        # fully overwritten every step; columns < L-1 are never read).
        zrow = jnp.zeros((1, Wp, C), cdt)
        pad[0:1, :, :] = zrow
        pad[H + 1:H + 2, :, :] = zrow
        zcol = jnp.zeros((H + 2, 1, C), cdt)
        pad[:, L - 1:L, :] = zcol
        pad[:, L + W:L + W + 1, :] = zcol

    # ---- stage 1: relu(bn1(x)) into a zero-padded VMEM buffer (f32 VPU math).
    xv = x_ref[...]
    y1 = jnp.maximum(xv.astype(f32) * s1_ref[...] + t1_ref[...], 0.0)
    zero_halo(pad1, Cin)
    pad1[1:H + 1, L:L + W, :] = y1.astype(cdt)      # sublane-aligned store

    # ---- conv1: nine accumulating per-tap MXU dots (no im2col buffer).
    h1 = None
    for k in range(9):
        ky, kx = divmod(k, 3)
        c0 = L - 1 + kx
        t = pad1[ky:ky + H, c0:c0 + W, :].reshape(H * W, Cin)
        d = jnp.dot(t, w1_ref[k], preferred_element_type=f32)
        h1 = d if h1 is None else h1 + d

    # ---- stage 2: relu(bn2(conv1_out)); conv1 bias folded into t2.
    #      (Dropout is the identity in eval mode.)
    y2 = jnp.maximum(h1 * s2_ref[...] + t2_ref[...], 0.0)
    zero_halo(pad2, Cmid)
    pad2[1:H + 1, L:L + W, :] = y2.reshape(H, W, Cmid).astype(cdt)

    # ---- conv2: stride applied with single-axis strided reads (columns first
    #      into cols2, then rows) so only the Ho*Wo outputs are computed.
    acc = None
    for kx in range(3):
        c0 = L - 1 + kx
        if s > 1:
            cols2[...] = pad2[:, pl.ds(c0, Wo, stride=s), :]     # (H+2, Wo, Cmid)
        for ky in range(3):
            if s > 1:
                t = cols2[pl.ds(ky, Ho, stride=s), :, :]         # (Ho, Wo, Cmid)
            else:
                t = pad2[ky:ky + H, c0:c0 + W, :]
            k = ky * 3 + kx
            d = jnp.dot(t.reshape(Ho * Wo, Cmid), w2_ref[k],
                        preferred_element_type=f32)
            acc = d if acc is None else acc + d
    acc = acc + b2_ref[...]

    # ---- residual merge fused into the epilogue (no extra HBM round trip).
    if has_proj:
        if s > 1:
            xcol[...] = x_ref[:, pl.ds(0, Wo, stride=s), :]      # (H, Wo, Cin)
            xs = xcol[pl.ds(0, Ho, stride=s), :, :]              # (Ho, Wo, Cin)
        else:
            xs = xv
        xs2 = xs.reshape(Ho * Wo, Cin)
        acc = acc + jnp.dot(xs2, wsc_ref[...], preferred_element_type=f32)
        acc = acc + bsc_ref[...]
    else:
        acc = acc + xv.reshape(Ho * Wo, Cin).astype(f32)         # identity add

    o_ref[...] = acc.reshape(Ho, Wo, Cout).astype(o_ref.dtype)


# ----------------------------------------------------------------------------
# Wrappers
# ----------------------------------------------------------------------------
def _bn_fold(gamma, beta, mean, var, eps=1e-5):
    scale = gamma / jnp.sqrt(var + eps)
    shift = beta - mean * scale
    return scale, shift


def _nbytes(shape, dtype):
    return math.prod(shape) * jnp.dtype(dtype).itemsize


def wide_basic_forward_nhwc(x_nhwc, params, stride, compute_dtype=jnp.bfloat16,
                            out_dtype=None):
    """x_nhwc: (N, H, W, Cin).  Returns (N, Ho, Wo, Cout) in `out_dtype`
    (defaults to `compute_dtype`).  Matmul operands in compute_dtype (bf16 ->
    2x MXU throughput, half the HBM/VMEM traffic); BN/ReLU, biases and all
    accumulation in f32."""
    f32 = jnp.float32
    N, H, W, Cin = x_nhwc.shape
    Cmid = params["w1"].shape[-1]
    Cout = params["w2"].shape[-1]
    s = int(stride)
    Ho = (H - 1) // s + 1
    Wo = (W - 1) // s + 1
    has_proj = (s != 1) or (Cin != Cout)
    cdt = jnp.dtype(compute_dtype)
    odt = cdt if out_dtype is None else jnp.dtype(out_dtype)

    # Left halo = one full sublane tile of the compute dtype so the big
    # interior store into the padded buffers is sublane-aligned (unmasked).
    padl = 8 * max(1, 4 // cdt.itemsize)
    Wp = W + padl + 1

    scale1, shift1 = _bn_fold(params["gamma1"], params["beta1"],
                              params["mean1"], params["var1"])
    scale2, shift2 = _bn_fold(params["gamma2"], params["beta2"],
                              params["mean2"], params["var2"])
    # Fold conv1's bias into bn2's shift: bn2(h + b1) = h*scale2 + (shift2 + scale2*b1)
    shift2 = shift2 + scale2 * params["b1"]

    w1f = params["w1"].reshape(9, Cin, Cmid)      # HWIO -> (tap, Cin, Cmid)
    w2f = params["w2"].reshape(9, Cmid, Cout)

    args = [
        x_nhwc.astype(cdt),
        scale1.reshape(1, 1, Cin).astype(f32),
        shift1.reshape(1, 1, Cin).astype(f32),
        w1f.astype(cdt),
        scale2.reshape(1, Cmid).astype(f32),
        shift2.reshape(1, Cmid).astype(f32),
        w2f.astype(cdt),
        params["b2"].reshape(1, Cout).astype(f32),
    ]
    in_specs = [
        pl.BlockSpec((None, H, W, Cin), lambda n: (n, 0, 0, 0)),
        pl.BlockSpec((1, 1, Cin), lambda n: (0, 0, 0)),
        pl.BlockSpec((1, 1, Cin), lambda n: (0, 0, 0)),
        pl.BlockSpec((9, Cin, Cmid), lambda n: (0, 0, 0)),
        pl.BlockSpec((1, Cmid), lambda n: (0, 0)),
        pl.BlockSpec((1, Cmid), lambda n: (0, 0)),
        pl.BlockSpec((9, Cmid, Cout), lambda n: (0, 0, 0)),
        pl.BlockSpec((1, Cout), lambda n: (0, 0)),
    ]
    if has_proj:
        args += [params["w_sc"].astype(cdt),
                 params["b_sc"].reshape(1, Cout).astype(f32)]
        in_specs += [pl.BlockSpec((Cin, Cout), lambda n: (0, 0)),
                     pl.BlockSpec((1, Cout), lambda n: (0, 0))]

    scratch = [pltpu.VMEM((H + 2, Wp, Cin), cdt),    # zero-padded relu(bn1(x))
               pltpu.VMEM((H + 2, Wp, Cmid), cdt)]   # zero-padded relu(bn2(h1))
    scratch_bytes = _nbytes((H + 2, Wp, Cin), cdt) + _nbytes((H + 2, Wp, Cmid), cdt)
    if s > 1:
        scratch += [pltpu.VMEM((H + 2, Wo, Cmid), cdt),   # column-phase of pad2
                    pltpu.VMEM((H, Wo, Cin), cdt)]        # column-phase of x
        scratch_bytes += _nbytes((H + 2, Wo, Cmid), cdt) + _nbytes((H, Wo, Cin), cdt)

    # VMEM planning: scratch + double-buffered blocks, clamped to [32, 96] MiB.
    block_bytes = (_nbytes((H, W, Cin), cdt) + _nbytes((9, Cin, Cmid), cdt) +
                   _nbytes((9, Cmid, Cout), cdt) + _nbytes((Ho, Wo, Cout), odt) +
                   _nbytes((Cin, Cout), cdt) +
                   4 * (Cin + Cmid + Cout) * 4)
    est = scratch_bytes + 2 * block_bytes + (2 << 20)
    vmem_limit = int(min(96 * 2**20, max(32 * 2**20, 2 * est)))

    kernel = functools.partial(_wide_basic_kernel, stride=s,
                               has_proj=has_proj, padl=padl)

    return pl.pallas_call(
        kernel,
        out_shape=jax.ShapeDtypeStruct((N, Ho, Wo, Cout), odt),
        grid=(N,),
        in_specs=in_specs,
        out_specs=pl.BlockSpec((None, Ho, Wo, Cout), lambda n: (n, 0, 0, 0)),
        scratch_shapes=scratch,
        compiler_params=pltpu.CompilerParams(
            dimension_semantics=("parallel",),
            vmem_limit_bytes=vmem_limit),
    )(*args)


def wide_basic_forward(x_nchw, params, stride, compute_dtype=jnp.bfloat16,
                       out_dtype=None):
    # NOTE: in a full network keep activations NHWC end-to-end and call
    # wide_basic_forward_nhwc directly; these transposes only adapt a single
    # block to the PyTorch NCHW interface.
    x = jnp.transpose(x_nchw, (0, 2, 3, 1))
    out = wide_basic_forward_nhwc(x, params, stride, compute_dtype, out_dtype)
    return jnp.transpose(out, (0, 3, 1, 2))


# ----------------------------------------------------------------------------
# Pure-JAX reference (matching matmul-operand dtype) for validation
# ----------------------------------------------------------------------------
def ref_forward(x_nchw, params, stride, compute_dtype=jnp.float32):
    cdt = compute_dtype
    f32 = jnp.float32
    x = jnp.transpose(x_nchw, (0, 2, 3, 1)).astype(f32)
    x = x.astype(cdt).astype(f32)          # same input rounding as the kernel
    Cin = x.shape[-1]
    Cout = params["w2"].shape[-1]
    scale1, shift1 = _bn_fold(params["gamma1"], params["beta1"],
                              params["mean1"], params["var1"])
    scale2, shift2 = _bn_fold(params["gamma2"], params["beta2"],
                              params["mean2"], params["var2"])
    dn = ("NHWC", "HWIO", "NHWC")
    y1 = jnp.maximum(x * scale1 + shift1, 0.0)
    h1 = lax.conv_general_dilated(
        y1.astype(cdt), params["w1"].astype(cdt), (1, 1), [(1, 1), (1, 1)],
        dimension_numbers=dn, preferred_element_type=f32) + params["b1"]
    y2 = jnp.maximum(h1 * scale2 + shift2, 0.0)
    h2 = lax.conv_general_dilated(
        y2.astype(cdt), params["w2"].astype(cdt), (stride, stride),
        [(1, 1), (1, 1)], dimension_numbers=dn,
        preferred_element_type=f32) + params["b2"]
    xs = x[:, ::stride, ::stride, :] if stride != 1 else x
    if stride != 1 or Cin != Cout:
        sc = jnp.einsum("nhwc,cd->nhwd", xs.astype(cdt),
                        params["w_sc"].astype(cdt),
                        preferred_element_type=f32) + params["b_sc"]
    else:
        sc = xs
    return jnp.transpose(h2 + sc, (0, 3, 1, 2))


def _make_params(key, in_planes, planes, has_proj):
    ks = jax.random.split(key, 16)
    p = {
        "gamma1": 1.0 + 0.1 * jax.random.normal(ks[0], (in_planes,)),
        "beta1": 0.1 * jax.random.normal(ks[1], (in_planes,)),
        "mean1": 0.1 * jax.random.normal(ks[2], (in_planes,)),
        "var1": jax.random.uniform(ks[3], (in_planes,), minval=0.5, maxval=1.5),
        "w1": 0.1 * jax.random.normal(ks[4], (3, 3, in_planes, planes)),
        "b1": 0.1 * jax.random.normal(ks[5], (planes,)),
        "gamma2": 1.0 + 0.1 * jax.random.normal(ks[6], (planes,)),
        "beta2": 0.1 * jax.random.normal(ks[7], (planes,)),
        "mean2": 0.1 * jax.random.normal(ks[8], (planes,)),
        "var2": jax.random.uniform(ks[9], (planes,), minval=0.5, maxval=1.5),
        "w2": 0.1 * jax.random.normal(ks[10], (3, 3, planes, planes)),
        "b2": 0.1 * jax.random.normal(ks[11], (planes,)),
    }
    if has_proj:
        p["w_sc"] = 0.1 * jax.random.normal(ks[12], (in_planes, planes))
        p["b_sc"] = 0.1 * jax.random.normal(ks[13], (planes,))
    return p


if __name__ == "__main__":
    key = jax.random.PRNGKey(0)
    k_x, k_pa, k_pb = jax.random.split(key, 3)
    N, H, W = 2, 16, 16
    f32 = jnp.float32

    # --- config A: projection shortcut (stride 2, channel change) -----------
    in_a, planes_a, stride_a = 4, 8, 2
    x_a = jax.random.normal(k_x, (N, in_a, H, W), f32)
    params_a = _make_params(k_pa, in_a, planes_a, has_proj=True)

    # f32 compute path (f32 output; check against the f32 reference)
    out = jax.block_until_ready(
        wide_basic_forward(x_a, params_a, stride_a, compute_dtype=f32))
    assert out.shape == (N, planes_a, H // stride_a, W // stride_a), out.shape
    ref = ref_forward(x_a, params_a, stride_a, compute_dtype=f32)
    err = float(jnp.max(jnp.abs(out.astype(f32) - ref)))
    if err > 1e-2:
        raise SystemExit(f"[A/f32] mismatch vs reference: max abs err = {err}")

    # bf16 compute path (bf16 matmul operands + bf16 output, f32 accumulation)
    out = jax.block_until_ready(
        wide_basic_forward(x_a, params_a, stride_a, compute_dtype=jnp.bfloat16))
    ref = ref_forward(x_a, params_a, stride_a, compute_dtype=jnp.bfloat16)
    err = float(jnp.max(jnp.abs(out.astype(f32) - ref)))
    if err > 6e-2:
        raise SystemExit(f"[A/bf16] mismatch vs reference: max abs err = {err}")

    # --- config B: identity shortcut (stride 1, same channel count) ---------
    in_b, planes_b, stride_b = 8, 8, 1
    x_b = jax.random.normal(k_x, (N, in_b, H, W), f32)
    params_b = _make_params(k_pb, in_b, planes_b, has_proj=False)
    out = jax.block_until_ready(
        wide_basic_forward(x_b, params_b, stride_b, compute_dtype=jnp.bfloat16))
    assert out.shape == (N, planes_b, H, W), out.shape
    ref = ref_forward(x_b, params_b, stride_b, compute_dtype=jnp.bfloat16)
    err = float(jnp.max(jnp.abs(out.astype(f32) - ref)))
    if err > 6e-2:
        raise SystemExit(f"[B/bf16] mismatch vs reference: max abs err = {err}")

    print("KERNEL_OK")
</pallas_src>

<mosaic_0001>
module attributes {stable_mosaic.version = 11 : i64} {
  func.func @_wide_basic_kernel(%arg0: i32, %arg1: memref<1x16x16x4xf32, #tpu.memory_space<vmem>>, %arg2: memref<1x1x4xf32, #tpu.memory_space<vmem>>, %arg3: memref<1x1x4xf32, #tpu.memory_space<vmem>>, %arg4: memref<9x4x8xf32, #tpu.memory_space<vmem>>, %arg5: memref<1x8xf32, #tpu.memory_space<vmem>>, %arg6: memref<1x8xf32, #tpu.memory_space<vmem>>, %arg7: memref<9x8x8xf32, #tpu.memory_space<vmem>>, %arg8: memref<1x8xf32, #tpu.memory_space<vmem>>, %arg9: memref<4x8xf32, #tpu.memory_space<vmem>>, %arg10: memref<1x8xf32, #tpu.memory_space<vmem>>, %arg11: memref<1x8x8x8xf32, #tpu.memory_space<vmem>>, %arg12: memref<18x25x4xf32, #tpu.memory_space<vmem>>, %arg13: memref<18x25x8xf32, #tpu.memory_space<vmem>>, %arg14: memref<18x8x8xf32, #tpu.memory_space<vmem>>, %arg15: memref<16x8x4xf32, #tpu.memory_space<vmem>>) attributes {dimension_semantics = [#tpu.dimension_semantics<parallel>], iteration_bounds = array<i64: 2>, scalar_prefetch = 0 : i64, scratch_operands = 4 : i64, tpu.core_type = #tpu.core_type<tc>, window_params = [{transform_indices = @transform_0, window_bounds = array<i64: 1, 16, 16, 4>}, {pipeline_mode = #tpu.pipeline_mode<synchronous>, transform_indices = @transform_1, window_bounds = array<i64: 1, 1, 4>}, {pipeline_mode = #tpu.pipeline_mode<synchronous>, transform_indices = @transform_2, window_bounds = array<i64: 1, 1, 4>}, {pipeline_mode = #tpu.pipeline_mode<synchronous>, transform_indices = @transform_3, window_bounds = array<i64: 9, 4, 8>}, {pipeline_mode = #tpu.pipeline_mode<synchronous>, transform_indices = @transform_4, window_bounds = array<i64: 1, 8>}, {pipeline_mode = #tpu.pipeline_mode<synchronous>, transform_indices = @transform_5, window_bounds = array<i64: 1, 8>}, {pipeline_mode = #tpu.pipeline_mode<synchronous>, transform_indices = @transform_6, window_bounds = array<i64: 9, 8, 8>}, {pipeline_mode = #tpu.pipeline_mode<synchronous>, transform_indices = @transform_7, window_bounds = array<i64: 1, 8>}, {pipeline_mode = #tpu.pipeline_mode<synchronous>, transform_indices = @transform_8, window_bounds = array<i64: 4, 8>}, {pipeline_mode = #tpu.pipeline_mode<synchronous>, transform_indices = @transform_9, window_bounds = array<i64: 1, 8>}, {transform_indices = @transform_10, window_bounds = array<i64: 1, 8, 8, 8>}]} {
    %c0 = arith.constant 0 : index
    %c0_0 = arith.constant 0 : index
    %c0_1 = arith.constant 0 : index
    %c0_2 = arith.constant 0 : index
    %0 = vector.load %arg1[%c0, %c0_0, %c0_1, %c0_2] : memref<1x16x16x4xf32, #tpu.memory_space<vmem>>, vector<1x16x16x4xf32>
    %1 = vector.shape_cast %0 : vector<1x16x16x4xf32> to vector<16x16x4xf32>
    %c0_3 = arith.constant 0 : index
    %c0_4 = arith.constant 0 : index
    %c0_5 = arith.constant 0 : index
    %2 = vector.load %arg2[%c0_3, %c0_4, %c0_5] : memref<1x1x4xf32, #tpu.memory_space<vmem>>, vector<1x1x4xf32>
    %3 = vector.broadcast %2 : vector<1x1x4xf32> to vector<16x16x4xf32>
    %4 = arith.mulf %1, %3 : vector<16x16x4xf32>
    %c0_6 = arith.constant 0 : index
    %c0_7 = arith.constant 0 : index
    %c0_8 = arith.constant 0 : index
    %5 = vector.load %arg3[%c0_6, %c0_7, %c0_8] : memref<1x1x4xf32, #tpu.memory_space<vmem>>, vector<1x1x4xf32>
    %6 = vector.broadcast %5 : vector<1x1x4xf32> to vector<16x16x4xf32>
    %7 = arith.addf %4, %6 : vector<16x16x4xf32>
    %cst = arith.constant 0.000000e+00 : f32
    %8 = vector.broadcast %cst : f32 to vector<16x16x4xf32>
    %9 = arith.maximumf %7, %8 : vector<16x16x4xf32>
    %cst_9 = arith.constant 0.000000e+00 : f32
    %10 = vector.broadcast %cst_9 : f32 to vector<1x25x4xf32>
    %c0_10 = arith.constant 0 : index
    %c0_11 = arith.constant 0 : index
    %c0_12 = arith.constant 0 : index
    %11 = vector.load %arg12[%c0_10, %c0_11, %c0_12] : memref<18x25x4xf32, #tpu.memory_space<vmem>>, vector<1x25x4xf32>
    tpu.vector_store %arg12[%c0_10, %c0_11, %c0_12], %10 {strides = array<i32>} : memref<18x25x4xf32, #tpu.memory_space<vmem>>, vector<1x25x4xf32>,
    %c17 = arith.constant 17 : index
    %c0_13 = arith.constant 0 : index
    %c0_14 = arith.constant 0 : index
    %12 = vector.load %arg12[%c17, %c0_13, %c0_14] : memref<18x25x4xf32, #tpu.memory_space<vmem>>, vector<1x25x4xf32>
    tpu.vector_store %arg12[%c17, %c0_13, %c0_14], %10 {strides = array<i32>} : memref<18x25x4xf32, #tpu.memory_space<vmem>>, vector<1x25x4xf32>,
    %cst_15 = arith.constant 0.000000e+00 : f32
    %13 = vector.broadcast %cst_15 : f32 to vector<18x1x4xf32>
    %c0_16 = arith.constant 0 : index
    %c7 = arith.constant 7 : index
    %c0_17 = arith.constant 0 : index
    %14 = vector.load %arg12[%c0_16, %c7, %c0_17] : memref<18x25x4xf32, #tpu.memory_space<vmem>>, vector<18x1x4xf32>
    tpu.vector_store %arg12[%c0_16, %c7, %c0_17], %13 {strides = array<i32>} : memref<18x25x4xf32, #tpu.memory_space<vmem>>, vector<18x1x4xf32>,
    %c0_18 = arith.constant 0 : index
    %c24 = arith.constant 24 : index
    %c0_19 = arith.constant 0 : index
    %15 = vector.load %arg12[%c0_18, %c24, %c0_19] : memref<18x25x4xf32, #tpu.memory_space<vmem>>, vector<18x1x4xf32>
    tpu.vector_store %arg12[%c0_18, %c24, %c0_19], %13 {strides = array<i32>} : memref<18x25x4xf32, #tpu.memory_space<vmem>>, vector<18x1x4xf32>,
    %c1 = arith.constant 1 : index
    %c8 = arith.constant 8 : index
    %c0_20 = arith.constant 0 : index
    %16 = vector.load %arg12[%c1, %c8, %c0_20] : memref<18x25x4xf32, #tpu.memory_space<vmem>>, vector<16x16x4xf32>
    tpu.vector_store %arg12[%c1, %c8, %c0_20], %9 {strides = array<i32>} : memref<18x25x4xf32, #tpu.memory_space<vmem>>, vector<16x16x4xf32>,
    %c0_21 = arith.constant 0 : index
    %c7_22 = arith.constant 7 : index
    %c0_23 = arith.constant 0 : index
    %17 = vector.load %arg12[%c0_21, %c7_22, %c0_23] : memref<18x25x4xf32, #tpu.memory_space<vmem>>, vector<16x16x4xf32>
    %18 = vector.shape_cast %17 : vector<16x16x4xf32> to vector<256x4xf32>
    %c0_24 = arith.constant 0 : index
    %c0_25 = arith.constant 0 : index
    %c0_26 = arith.constant 0 : index
    %19 = vector.load %arg4[%c0_24, %c0_25, %c0_26] : memref<9x4x8xf32, #tpu.memory_space<vmem>>, vector<1x4x8xf32>
    %20 = vector.shape_cast %19 : vector<1x4x8xf32> to vector<4x8xf32>
    %cst_27 = arith.constant dense<0.000000e+00> : vector<256x8xf32>
    %21 = tpu.matmul %18, %20, %cst_27 {dimension_numbers = #tpu.dot_dimension_numbers<[1], [0], [0], [1], [0, 0, 1, 1], [], []>} : vector<256x4xf32>, vector<4x8xf32>, vector<256x8xf32> -> vector<256x8xf32>
    %c0_28 = arith.constant 0 : index
    %c8_29 = arith.constant 8 : index
    %c0_30 = arith.constant 0 : index
    %22 = vector.load %arg12[%c0_28, %c8_29, %c0_30] : memref<18x25x4xf32, #tpu.memory_space<vmem>>, vector<16x16x4xf32>
    %23 = vector.shape_cast %22 : vector<16x16x4xf32> to vector<256x4xf32>
    %c1_31 = arith.constant 1 : index
    %c0_32 = arith.constant 0 : index
    %c0_33 = arith.constant 0 : index
    %24 = vector.load %arg4[%c1_31, %c0_32, %c0_33] : memref<9x4x8xf32, #tpu.memory_space<vmem>>, vector<1x4x8xf32>
    %25 = vector.shape_cast %24 : vector<1x4x8xf32> to vector<4x8xf32>
    %cst_34 = arith.constant dense<0.000000e+00> : vector<256x8xf32>
    %26 = tpu.matmul %23, %25, %cst_34 {dimension_numbers = #tpu.dot_dimension_numbers<[1], [0], [0], [1], [0, 0, 1, 1], [], []>} : vector<256x4xf32>, vector<4x8xf32>, vector<256x8xf32> -> vector<256x8xf32>
    %27 = arith.addf %21, %26 : vector<256x8xf32>
    %c0_35 = arith.constant 0 : index
    %c9 = arith.constant 9 : index
    %c0_36 = arith.constant 0 : index
    %28 = vector.load %arg12[%c0_35, %c9, %c0_36] : memref<18x25x4xf32, #tpu.memory_space<vmem>>, vector<16x16x4xf32>
    %29 = vector.shape_cast %28 : vector<16x16x4xf32> to vector<256x4xf32>
    %c2 = arith.constant 2 : index
    %c0_37 = arith.constant 0 : index
    %c0_38 = arith.constant 0 : index
    %30 = vector.load %arg4[%c2, %c0_37, %c0_38] : memref<9x4x8xf32, #tpu.memory_space<vmem>>, vector<1x4x8xf32>
    %31 = vector.shape_cast %30 : vector<1x4x8xf32> to vector<4x8xf32>
    %cst_39 = arith.constant dense<0.000000e+00> : vector<256x8xf32>
    %32 = tpu.matmul %29, %31, %cst_39 {dimension_numbers = #tpu.dot_dimension_numbers<[1], [0], [0], [1], [0, 0, 1, 1], [], []>} : vector<256x4xf32>, vector<4x8xf32>, vector<256x8xf32> -> vector<256x8xf32>
    %33 = arith.addf %27, %32 : vector<256x8xf32>
    %c1_40 = arith.constant 1 : index
    %c7_41 = arith.constant 7 : index
    %c0_42 = arith.constant 0 : index
    %34 = vector.load %arg12[%c1_40, %c7_41, %c0_42] : memref<18x25x4xf32, #tpu.memory_space<vmem>>, vector<16x16x4xf32>
    %35 = vector.shape_cast %34 : vector<16x16x4xf32> to vector<256x4xf32>
    %c3 = arith.constant 3 : index
    %c0_43 = arith.constant 0 : index
    %c0_44 = arith.constant 0 : index
    %36 = vector.load %arg4[%c3, %c0_43, %c0_44] : memref<9x4x8xf32, #tpu.memory_space<vmem>>, vector<1x4x8xf32>
    %37 = vector.shape_cast %36 : vector<1x4x8xf32> to vector<4x8xf32>
    %cst_45 = arith.constant dense<0.000000e+00> : vector<256x8xf32>
    %38 = tpu.matmul %35, %37, %cst_45 {dimension_numbers = #tpu.dot_dimension_numbers<[1], [0], [0], [1], [0, 0, 1, 1], [], []>} : vector<256x4xf32>, vector<4x8xf32>, vector<256x8xf32> -> vector<256x8xf32>
    %39 = arith.addf %33, %38 : vector<256x8xf32>
    %c1_46 = arith.constant 1 : index
    %c8_47 = arith.constant 8 : index
    %c0_48 = arith.constant 0 : index
    %40 = vector.load %arg12[%c1_46, %c8_47, %c0_48] : memref<18x25x4xf32, #tpu.memory_space<vmem>>, vector<16x16x4xf32>
    %41 = vector.shape_cast %40 : vector<16x16x4xf32> to vector<256x4xf32>
    %c4 = arith.constant 4 : index
    %c0_49 = arith.constant 0 : index
    %c0_50 = arith.constant 0 : index
    %42 = vector.load %arg4[%c4, %c0_49, %c0_50] : memref<9x4x8xf32, #tpu.memory_space<vmem>>, vector<1x4x8xf32>
    %43 = vector.shape_cast %42 : vector<1x4x8xf32> to vector<4x8xf32>
    %cst_51 = arith.constant dense<0.000000e+00> : vector<256x8xf32>
    %44 = tpu.matmul %41, %43, %cst_51 {dimension_numbers = #tpu.dot_dimension_numbers<[1], [0], [0], [1], [0, 0, 1, 1], [], []>} : vector<256x4xf32>, vector<4x8xf32>, vector<256x8xf32> -> vector<256x8xf32>
    %45 = arith.addf %39, %44 : vector<256x8xf32>
    %c1_52 = arith.constant 1 : index
    %c9_53 = arith.constant 9 : index
    %c0_54 = arith.constant 0 : index
    %46 = vector.load %arg12[%c1_52, %c9_53, %c0_54] : memref<18x25x4xf32, #tpu.memory_space<vmem>>, vector<16x16x4xf32>
    %47 = vector.shape_cast %46 : vector<16x16x4xf32> to vector<256x4xf32>
    %c5 = arith.constant 5 : index
    %c0_55 = arith.constant 0 : index
    %c0_56 = arith.constant 0 : index
    %48 = vector.load %arg4[%c5, %c0_55, %c0_56] : memref<9x4x8xf32, #tpu.memory_space<vmem>>, vector<1x4x8xf32>
    %49 = vector.shape_cast %48 : vector<1x4x8xf32> to vector<4x8xf32>
    %cst_57 = arith.constant dense<0.000000e+00> : vector<256x8xf32>
    %50 = tpu.matmul %47, %49, %cst_57 {dimension_numbers = #tpu.dot_dimension_numbers<[1], [0], [0], [1], [0, 0, 1, 1], [], []>} : vector<256x4xf32>, vector<4x8xf32>, vector<256x8xf32> -> vector<256x8xf32>
    %51 = arith.addf %45, %50 : vector<256x8xf32>
    %c2_58 = arith.constant 2 : index
    %c7_59 = arith.constant 7 : index
    %c0_60 = arith.constant 0 : index
    %52 = vector.load %arg12[%c2_58, %c7_59, %c0_60] : memref<18x25x4xf32, #tpu.memory_space<vmem>>, vector<16x16x4xf32>
    %53 = vector.shape_cast %52 : vector<16x16x4xf32> to vector<256x4xf32>
    %c6 = arith.constant 6 : index
    %c0_61 = arith.constant 0 : index
    %c0_62 = arith.constant 0 : index
    %54 = vector.load %arg4[%c6, %c0_61, %c0_62] : memref<9x4x8xf32, #tpu.memory_space<vmem>>, vector<1x4x8xf32>
    %55 = vector.shape_cast %54 : vector<1x4x8xf32> to vector<4x8xf32>
    %cst_63 = arith.constant dense<0.000000e+00> : vector<256x8xf32>
    %56 = tpu.matmul %53, %55, %cst_63 {dimension_numbers = #tpu.dot_dimension_numbers<[1], [0], [0], [1], [0, 0, 1, 1], [], []>} : vector<256x4xf32>, vector<4x8xf32>, vector<256x8xf32> -> vector<256x8xf32>
    %57 = arith.addf %51, %56 : vector<256x8xf32>
    %c2_64 = arith.constant 2 : index
    %c8_65 = arith.constant 8 : index
    %c0_66 = arith.constant 0 : index
    %58 = vector.load %arg12[%c2_64, %c8_65, %c0_66] : memref<18x25x4xf32, #tpu.memory_space<vmem>>, vector<16x16x4xf32>
    %59 = vector.shape_cast %58 : vector<16x16x4xf32> to vector<256x4xf32>
    %c7_67 = arith.constant 7 : index
    %c0_68 = arith.constant 0 : index
    %c0_69 = arith.constant 0 : index
    %60 = vector.load %arg4[%c7_67, %c0_68, %c0_69] : memref<9x4x8xf32, #tpu.memory_space<vmem>>, vector<1x4x8xf32>
    %61 = vector.shape_cast %60 : vector<1x4x8xf32> to vector<4x8xf32>
    %cst_70 = arith.constant dense<0.000000e+00> : vector<256x8xf32>
    %62 = tpu.matmul %59, %61, %cst_70 {dimension_numbers = #tpu.dot_dimension_numbers<[1], [0], [0], [1], [0, 0, 1, 1], [], []>} : vector<256x4xf32>, vector<4x8xf32>, vector<256x8xf32> -> vector<256x8xf32>
    %63 = arith.addf %57, %62 : vector<256x8xf32>
    %c2_71 = arith.constant 2 : index
    %c9_72 = arith.constant 9 : index
    %c0_73 = arith.constant 0 : index
    %64 = vector.load %arg12[%c2_71, %c9_72, %c0_73] : memref<18x25x4xf32, #tpu.memory_space<vmem>>, vector<16x16x4xf32>
    %65 = vector.shape_cast %64 : vector<16x16x4xf32> to vector<256x4xf32>
    %c8_74 = arith.constant 8 : index
    %c0_75 = arith.constant 0 : index
    %c0_76 = arith.constant 0 : index
    %66 = vector.load %arg4[%c8_74, %c0_75, %c0_76] : memref<9x4x8xf32, #tpu.memory_space<vmem>>, vector<1x4x8xf32>
    %67 = vector.shape_cast %66 : vector<1x4x8xf32> to vector<4x8xf32>
    %cst_77 = arith.constant dense<0.000000e+00> : vector<256x8xf32>
    %68 = tpu.matmul %65, %67, %cst_77 {dimension_numbers = #tpu.dot_dimension_numbers<[1], [0], [0], [1], [0, 0, 1, 1], [], []>} : vector<256x4xf32>, vector<4x8xf32>, vector<256x8xf32> -> vector<256x8xf32>
    %69 = arith.addf %63, %68 : vector<256x8xf32>
    %c0_78 = arith.constant 0 : index
    %c0_79 = arith.constant 0 : index
    %70 = vector.load %arg5[%c0_78, %c0_79] : memref<1x8xf32, #tpu.memory_space<vmem>>, vector<1x8xf32>
    %71 = vector.broadcast %70 : vector<1x8xf32> to vector<256x8xf32>
    %72 = arith.mulf %69, %71 : vector<256x8xf32>
    %c0_80 = arith.constant 0 : index
    %c0_81 = arith.constant 0 : index
    %73 = vector.load %arg6[%c0_80, %c0_81] : memref<1x8xf32, #tpu.memory_space<vmem>>, vector<1x8xf32>
    %74 = vector.broadcast %73 : vector<1x8xf32> to vector<256x8xf32>
    %75 = arith.addf %72, %74 : vector<256x8xf32>
    %cst_82 = arith.constant 0.000000e+00 : f32
    %76 = vector.broadcast %cst_82 : f32 to vector<256x8xf32>
    %77 = arith.maximumf %75, %76 : vector<256x8xf32>
    %cst_83 = arith.constant 0.000000e+00 : f32
    %78 = vector.broadcast %cst_83 : f32 to vector<1x25x8xf32>
    %c0_84 = arith.constant 0 : index
    %c0_85 = arith.constant 0 : index
    %c0_86 = arith.constant 0 : index
    %79 = vector.load %arg13[%c0_84, %c0_85, %c0_86] : memref<18x25x8xf32, #tpu.memory_space<vmem>>, vector<1x25x8xf32>
    tpu.vector_store %arg13[%c0_84, %c0_85, %c0_86], %78 {strides = array<i32>} : memref<18x25x8xf32, #tpu.memory_space<vmem>>, vector<1x25x8xf32>,
    %c17_87 = arith.constant 17 : index
    %c0_88 = arith.constant 0 : index
    %c0_89 = arith.constant 0 : index
    %80 = vector.load %arg13[%c17_87, %c0_88, %c0_89] : memref<18x25x8xf32, #tpu.memory_space<vmem>>, vector<1x25x8xf32>
    tpu.vector_store %arg13[%c17_87, %c0_88, %c0_89], %78 {strides = array<i32>} : memref<18x25x8xf32, #tpu.memory_space<vmem>>, vector<1x25x8xf32>,
    %cst_90 = arith.constant 0.000000e+00 : f32
    %81 = vector.broadcast %cst_90 : f32 to vector<18x1x8xf32>
    %c0_91 = arith.constant 0 : index
    %c7_92 = arith.constant 7 : index
    %c0_93 = arith.constant 0 : index
    %82 = vector.load %arg13[%c0_91, %c7_92, %c0_93] : memref<18x25x8xf32, #tpu.memory_space<vmem>>, vector<18x1x8xf32>
    tpu.vector_store %arg13[%c0_91, %c7_92, %c0_93], %81 {strides = array<i32>} : memref<18x25x8xf32, #tpu.memory_space<vmem>>, vector<18x1x8xf32>,
    %c0_94 = arith.constant 0 : index
    %c24_95 = arith.constant 24 : index
    %c0_96 = arith.constant 0 : index
    %83 = vector.load %arg13[%c0_94, %c24_95, %c0_96] : memref<18x25x8xf32, #tpu.memory_space<vmem>>, vector<18x1x8xf32>
    tpu.vector_store %arg13[%c0_94, %c24_95, %c0_96], %81 {strides = array<i32>} : memref<18x25x8xf32, #tpu.memory_space<vmem>>, vector<18x1x8xf32>,
    %84 = vector.shape_cast %77 : vector<256x8xf32> to vector<16x16x8xf32>
    %c1_97 = arith.constant 1 : index
    %c8_98 = arith.constant 8 : index
    %c0_99 = arith.constant 0 : index
    %85 = vector.load %arg13[%c1_97, %c8_98, %c0_99] : memref<18x25x8xf32, #tpu.memory_space<vmem>>, vector<16x16x8xf32>
    tpu.vector_store %arg13[%c1_97, %c8_98, %c0_99], %84 {strides = array<i32>} : memref<18x25x8xf32, #tpu.memory_space<vmem>>, vector<16x16x8xf32>,
    %c0_100 = arith.constant 0 : index
    %c7_101 = arith.constant 7 : index
    %c0_102 = arith.constant 0 : index
    %86 = tpu.strided_load %arg13[%c0_100, %c7_101, %c0_102] {strides = array<i32: 1, 2, 1>} : memref<18x25x8xf32, #tpu.memory_space<vmem>>, vector<18x8x8xf32>
    %c0_103 = arith.constant 0 : index
    %c0_104 = arith.constant 0 : index
    %c0_105 = arith.constant 0 : index
    %87 = vector.load %arg14[%c0_103, %c0_104, %c0_105] : memref<18x8x8xf32, #tpu.memory_space<vmem>>, vector<18x8x8xf32>
    tpu.vector_store %arg14[%c0_103, %c0_104, %c0_105], %86 {strides = array<i32>} : memref<18x8x8xf32, #tpu.memory_space<vmem>>, vector<18x8x8xf32>,
    %c0_106 = arith.constant 0 : index
    %c0_107 = arith.constant 0 : index
    %c0_108 = arith.constant 0 : index
    %88 = tpu.strided_load %arg14[%c0_106, %c0_107, %c0_108] {strides = array<i32: 2, 1, 1>} : memref<18x8x8xf32, #tpu.memory_space<vmem>>, vector<8x8x8xf32>
    %89 = vector.shape_cast %88 : vector<8x8x8xf32> to vector<64x8xf32>
    %c0_109 = arith.constant 0 : index
    %c0_110 = arith.constant 0 : index
    %c0_111 = arith.constant 0 : index
    %90 = vector.load %arg7[%c0_109, %c0_110, %c0_111] : memref<9x8x8xf32, #tpu.memory_space<vmem>>, vector<1x8x8xf32>
    %91 = vector.shape_cast %90 : vector<1x8x8xf32> to vector<8x8xf32>
    %cst_112 = arith.constant dense<0.000000e+00> : vector<64x8xf32>
    %92 = tpu.matmul %89, %91, %cst_112 {dimension_numbers = #tpu.dot_dimension_numbers<[1], [0], [0], [1], [0, 0, 1, 1], [], []>} : vector<64x8xf32>, vector<8x8xf32>, vector<64x8xf32> -> vector<64x8xf32>
    %c1_113 = arith.constant 1 : index
    %c0_114 = arith.constant 0 : index
    %c0_115 = arith.constant 0 : index
    %93 = tpu.strided_load %arg14[%c1_113, %c0_114, %c0_115] {strides = array<i32: 2, 1, 1>} : memref<18x8x8xf32, #tpu.memory_space<vmem>>, vector<8x8x8xf32>
    %94 = vector.shape_cast %93 : vector<8x8x8xf32> to vector<64x8xf32>
    %c3_116 = arith.constant 3 : index
    %c0_117 = arith.constant 0 : index
    %c0_118 = arith.constant 0 : index
    %95 = vector.load %arg7[%c3_116, %c0_117, %c0_118] : memref<9x8x8xf32, #tpu.memory_space<vmem>>, vector<1x8x8xf32>
    %96 = vector.shape_cast %95 : vector<1x8x8xf32> to vector<8x8xf32>
    %cst_119 = arith.constant dense<0.000000e+00> : vector<64x8xf32>
    %97 = tpu.matmul %94, %96, %cst_119 {dimension_numbers = #tpu.dot_dimension_numbers<[1], [0], [0], [1], [0, 0, 1, 1], [], []>} : vector<64x8xf32>, vector<8x8xf32>, vector<64x8xf32> -> vector<64x8xf32>
    %98 = arith.addf %92, %97 : vector<64x8xf32>
    %c2_120 = arith.constant 2 : index
    %c0_121 = arith.constant 0 : index
    %c0_122 = arith.constant 0 : index
    %99 = tpu.strided_load %arg14[%c2_120, %c0_121, %c0_122] {strides = array<i32: 2, 1, 1>} : memref<18x8x8xf32, #tpu.memory_space<vmem>>, vector<8x8x8xf32>
    %100 = vector.shape_cast %99 : vector<8x8x8xf32> to vector<64x8xf32>
    %c6_123 = arith.constant 6 : index
    %c0_124 = arith.constant 0 : index
    %c0_125 = arith.constant 0 : index
    %101 = vector.load %arg7[%c6_123, %c0_124, %c0_125] : memref<9x8x8xf32, #tpu.memory_space<vmem>>, vector<1x8x8xf32>
    %102 = vector.shape_cast %101 : vector<1x8x8xf32> to vector<8x8xf32>
    %cst_126 = arith.constant dense<0.000000e+00> : vector<64x8xf32>
    %103 = tpu.matmul %100, %102, %cst_126 {dimension_numbers = #tpu.dot_dimension_numbers<[1], [0], [0], [1], [0, 0, 1, 1], [], []>} : vector<64x8xf32>, vector<8x8xf32>, vector<64x8xf32> -> vector<64x8xf32>
    %104 = arith.addf %98, %103 : vector<64x8xf32>
    %c0_127 = arith.constant 0 : index
    %c8_128 = arith.constant 8 : index
    %c0_129 = arith.constant 0 : index
    %105 = tpu.strided_load %arg13[%c0_127, %c8_128, %c0_129] {strides = array<i32: 1, 2, 1>} : memref<18x25x8xf32, #tpu.memory_space<vmem>>, vector<18x8x8xf32>
    %c0_130 = arith.constant 0 : index
    %c0_131 = arith.constant 0 : index
    %c0_132 = arith.constant 0 : index
    %106 = vector.load %arg14[%c0_130, %c0_131, %c0_132] : memref<18x8x8xf32, #tpu.memory_space<vmem>>, vector<18x8x8xf32>
    tpu.vector_store %arg14[%c0_130, %c0_131, %c0_132], %105 {strides = array<i32>} : memref<18x8x8xf32, #tpu.memory_space<vmem>>, vector<18x8x8xf32>,
    %c0_133 = arith.constant 0 : index
    %c0_134 = arith.constant 0 : index
    %c0_135 = arith.constant 0 : index
    %107 = tpu.strided_load %arg14[%c0_133, %c0_134, %c0_135] {strides = array<i32: 2, 1, 1>} : memref<18x8x8xf32, #tpu.memory_space<vmem>>, vector<8x8x8xf32>
    %108 = vector.shape_cast %107 : vector<8x8x8xf32> to vector<64x8xf32>
    %c1_136 = arith.constant 1 : index
    %c0_137 = arith.constant 0 : index
    %c0_138 = arith.constant 0 : index
    %109 = vector.load %arg7[%c1_136, %c0_137, %c0_138] : memref<9x8x8xf32, #tpu.memory_space<vmem>>, vector<1x8x8xf32>
    %110 = vector.shape_cast %109 : vector<1x8x8xf32> to vector<8x8xf32>
    %cst_139 = arith.constant dense<0.000000e+00> : vector<64x8xf32>
    %111 = tpu.matmul %108, %110, %cst_139 {dimension_numbers = #tpu.dot_dimension_numbers<[1], [0], [0], [1], [0, 0, 1, 1], [], []>} : vector<64x8xf32>, vector<8x8xf32>, vector<64x8xf32> -> vector<64x8xf32>
    %112 = arith.addf %104, %111 : vector<64x8xf32>
    %c1_140 = arith.constant 1 : index
    %c0_141 = arith.constant 0 : index
    %c0_142 = arith.constant 0 : index
    %113 = tpu.strided_load %arg14[%c1_140, %c0_141, %c0_142] {strides = array<i32: 2, 1, 1>} : memref<18x8x8xf32, #tpu.memory_space<vmem>>, vector<8x8x8xf32>
    %114 = vector.shape_cast %113 : vector<8x8x8xf32> to vector<64x8xf32>
    %c4_143 = arith.constant 4 : index
    %c0_144 = arith.constant 0 : index
    %c0_145 = arith.constant 0 : index
    %115 = vector.load %arg7[%c4_143, %c0_144, %c0_145] : memref<9x8x8xf32, #tpu.memory_space<vmem>>, vector<1x8x8xf32>
    %116 = vector.shape_cast %115 : vector<1x8x8xf32> to vector<8x8xf32>
    %cst_146 = arith.constant dense<0.000000e+00> : vector<64x8xf32>
    %117 = tpu.matmul %114, %116, %cst_146 {dimension_numbers = #tpu.dot_dimension_numbers<[1], [0], [0], [1], [0, 0, 1, 1], [], []>} : vector<64x8xf32>, vector<8x8xf32>, vector<64x8xf32> -> vector<64x8xf32>
    %118 = arith.addf %112, %117 : vector<64x8xf32>
    %c2_147 = arith.constant 2 : index
    %c0_148 = arith.constant 0 : index
    %c0_149 = arith.constant 0 : index
    %119 = tpu.strided_load %arg14[%c2_147, %c0_148, %c0_149] {strides = array<i32: 2, 1, 1>} : memref<18x8x8xf32, #tpu.memory_space<vmem>>, vector<8x8x8xf32>
    %120 = vector.shape_cast %119 : vector<8x8x8xf32> to vector<64x8xf32>
    %c7_150 = arith.constant 7 : index
    %c0_151 = arith.constant 0 : index
    %c0_152 = arith.constant 0 : index
    %121 = vector.load %arg7[%c7_150, %c0_151, %c0_152] : memref<9x8x8xf32, #tpu.memory_space<vmem>>, vector<1x8x8xf32>
    %122 = vector.shape_cast %121 : vector<1x8x8xf32> to vector<8x8xf32>
    %cst_153 = arith.constant dense<0.000000e+00> : vector<64x8xf32>
    %123 = tpu.matmul %120, %122, %cst_153 {dimension_numbers = #tpu.dot_dimension_numbers<[1], [0], [0], [1], [0, 0, 1, 1], [], []>} : vector<64x8xf32>, vector<8x8xf32>, vector<64x8xf32> -> vector<64x8xf32>
    %124 = arith.addf %118, %123 : vector<64x8xf32>
    %c0_154 = arith.constant 0 : index
    %c9_155 = arith.constant 9 : index
    %c0_156 = arith.constant 0 : index
    %125 = tpu.strided_load %arg13[%c0_154, %c9_155, %c0_156] {strides = array<i32: 1, 2, 1>} : memref<18x25x8xf32, #tpu.memory_space<vmem>>, vector<18x8x8xf32>
    %c0_157 = arith.constant 0 : index
    %c0_158 = arith.constant 0 : index
    %c0_159 = arith.constant 0 : index
    %126 = vector.load %arg14[%c0_157, %c0_158, %c0_159] : memref<18x8x8xf32, #tpu.memory_space<vmem>>, vector<18x8x8xf32>
    tpu.vector_store %arg14[%c0_157, %c0_158, %c0_159], %125 {strides = array<i32>} : memref<18x8x8xf32, #tpu.memory_space<vmem>>, vector<18x8x8xf32>,
    %c0_160 = arith.constant 0 : index
    %c0_161 = arith.constant 0 : index
    %c0_162 = arith.constant 0 : index
    %127 = tpu.strided_load %arg14[%c0_160, %c0_161, %c0_162] {strides = array<i32: 2, 1, 1>} : memref<18x8x8xf32, #tpu.memory_space<vmem>>, vector<8x8x8xf32>
    %128 = vector.shape_cast %127 : vector<8x8x8xf32> to vector<64x8xf32>
    %c2_163 = arith.constant 2 : index
    %c0_164 = arith.constant 0 : index
    %c0_165 = arith.constant 0 : index
    %129 = vector.load %arg7[%c2_163, %c0_164, %c0_165] : memref<9x8x8xf32, #tpu.memory_space<vmem>>, vector<1x8x8xf32>
    %130 = vector.shape_cast %129 : vector<1x8x8xf32> to vector<8x8xf32>
    %cst_166 = arith.constant dense<0.000000e+00> : vector<64x8xf32>
    %131 = tpu.matmul %128, %130, %cst_166 {dimension_numbers = #tpu.dot_dimension_numbers<[1], [0], [0], [1], [0, 0, 1, 1], [], []>} : vector<64x8xf32>, vector<8x8xf32>, vector<64x8xf32> -> vector<64x8xf32>
    %132 = arith.addf %124, %131 : vector<64x8xf32>
    %c1_167 = arith.constant 1 : index
    %c0_168 = arith.constant 0 : index
    %c0_169 = arith.constant 0 : index
    %133 = tpu.strided_load %arg14[%c1_167, %c0_168, %c0_169] {strides = array<i32: 2, 1, 1>} : memref<18x8x8xf32, #tpu.memory_space<vmem>>, vector<8x8x8xf32>
    %134 = vector.shape_cast %133 : vector<8x8x8xf32> to vector<64x8xf32>
    %c5_170 = arith.constant 5 : index
    %c0_171 = arith.constant 0 : index
    %c0_172 = arith.constant 0 : index
    %135 = vector.load %arg7[%c5_170, %c0_171, %c0_172] : memref<9x8x8xf32, #tpu.memory_space<vmem>>, vector<1x8x8xf32>
    %136 = vector.shape_cast %135 : vector<1x8x8xf32> to vector<8x8xf32>
    %cst_173 = arith.constant dense<0.000000e+00> : vector<64x8xf32>
    %137 = tpu.matmul %134, %136, %cst_173 {dimension_numbers = #tpu.dot_dimension_numbers<[1], [0], [0], [1], [0, 0, 1, 1], [], []>} : vector<64x8xf32>, vector<8x8xf32>, vector<64x8xf32> -> vector<64x8xf32>
    %138 = arith.addf %132, %137 : vector<64x8xf32>
    %c2_174 = arith.constant 2 : index
    %c0_175 = arith.constant 0 : index
    %c0_176 = arith.constant 0 : index
    %139 = tpu.strided_load %arg14[%c2_174, %c0_175, %c0_176] {strides = array<i32: 2, 1, 1>} : memref<18x8x8xf32, #tpu.memory_space<vmem>>, vector<8x8x8xf32>
    %140 = vector.shape_cast %139 : vector<8x8x8xf32> to vector<64x8xf32>
    %c8_177 = arith.constant 8 : index
    %c0_178 = arith.constant 0 : index
    %c0_179 = arith.constant 0 : index
    %141 = vector.load %arg7[%c8_177, %c0_178, %c0_179] : memref<9x8x8xf32, #tpu.memory_space<vmem>>, vector<1x8x8xf32>
    %142 = vector.shape_cast %141 : vector<1x8x8xf32> to vector<8x8xf32>
    %cst_180 = arith.constant dense<0.000000e+00> : vector<64x8xf32>
    %143 = tpu.matmul %140, %142, %cst_180 {dimension_numbers = #tpu.dot_dimension_numbers<[1], [0], [0], [1], [0, 0, 1, 1], [], []>} : vector<64x8xf32>, vector<8x8xf32>, vector<64x8xf32> -> vector<64x8xf32>
    %144 = arith.addf %138, %143 : vector<64x8xf32>
    %c0_181 = arith.constant 0 : index
    %c0_182 = arith.constant 0 : index
    %145 = vector.load %arg8[%c0_181, %c0_182] : memref<1x8xf32, #tpu.memory_space<vmem>>, vector<1x8xf32>
    %146 = vector.broadcast %145 : vector<1x8xf32> to vector<64x8xf32>
    %147 = arith.addf %144, %146 : vector<64x8xf32>
    %c0_183 = arith.constant 0 : index
    %c0_184 = arith.constant 0 : index
    %c0_185 = arith.constant 0 : index
    %c0_186 = arith.constant 0 : index
    %148 = tpu.strided_load %arg1[%c0_183, %c0_184, %c0_185, %c0_186] {strides = array<i32: 1, 1, 2, 1>} : memref<1x16x16x4xf32, #tpu.memory_space<vmem>>, vector<1x16x8x4xf32>
    %149 = vector.shape_cast %148 : vector<1x16x8x4xf32> to vector<16x8x4xf32>
    %c0_187 = arith.constant 0 : index
    %c0_188 = arith.constant 0 : index
    %c0_189 = arith.constant 0 : index
    %150 = vector.load %arg15[%c0_187, %c0_188, %c0_189] : memref<16x8x4xf32, #tpu.memory_space<vmem>>, vector<16x8x4xf32>
    tpu.vector_store %arg15[%c0_187, %c0_188, %c0_189], %149 {strides = array<i32>} : memref<16x8x4xf32, #tpu.memory_space<vmem>>, vector<16x8x4xf32>,
    %c0_190 = arith.constant 0 : index
    %c0_191 = arith.constant 0 : index
    %c0_192 = arith.constant 0 : index
    %151 = tpu.strided_load %arg15[%c0_190, %c0_191, %c0_192] {strides = array<i32: 2, 1, 1>} : memref<16x8x4xf32, #tpu.memory_space<vmem>>, vector<8x8x4xf32>
    %152 = vector.shape_cast %151 : vector<8x8x4xf32> to vector<64x4xf32>
    %c0_193 = arith.constant 0 : index
    %c0_194 = arith.constant 0 : index
    %153 = vector.load %arg9[%c0_193, %c0_194] : memref<4x8xf32, #tpu.memory_space<vmem>>, vector<4x8xf32>
    %cst_195 = arith.constant dense<0.000000e+00> : vector<64x8xf32>
    %154 = tpu.matmul %152, %153, %cst_195 {dimension_numbers = #tpu.dot_dimension_numbers<[1], [0], [0], [1], [0, 0, 1, 1], [], []>} : vector<64x4xf32>, vector<4x8xf32>, vector<64x8xf32> -> vector<64x8xf32>
    %155 = arith.addf %147, %154 : vector<64x8xf32>
    %c0_196 = arith.constant 0 : index
    %c0_197 = arith.constant 0 : index
    %156 = vector.load %arg10[%c0_196, %c0_197] : memref<1x8xf32, #tpu.memory_space<vmem>>, vector<1x8xf32>
    %157 = vector.broadcast %156 : vector<1x8xf32> to vector<64x8xf32>
    %158 = arith.addf %155, %157 : vector<64x8xf32>
    %159 = vector.shape_cast %158 : vector<64x8xf32> to vector<8x8x8xf32>
    %c0_198 = arith.constant 0 : index
    %c0_199 = arith.constant 0 : index
    %c0_200 = arith.constant 0 : index
    %c0_201 = arith.constant 0 : index
    %160 = vector.load %arg11[%c0_198, %c0_199, %c0_200, %c0_201] : memref<1x8x8x8xf32, #tpu.memory_space<vmem>>, vector<1x8x8x8xf32>
    %161 = vector.shape_cast %160 : vector<1x8x8x8xf32> to vector<8x8x8xf32>
    %162 = vector.shape_cast %159 : vector<8x8x8xf32> to vector<1x8x8x8xf32>
    tpu.vector_store %arg11[%c0_198, %c0_199, %c0_200, %c0_201], %162 {strides = array<i32>} : memref<1x8x8x8xf32, #tpu.memory_space<vmem>>, vector<1x8x8x8xf32>,
    return
  }
  func.func @transform_0(%arg0: i32) -> (i32, i32, i32, i32) {
    %c0_i32 = arith.constant 0 : i32
    %c0_i32_0 = arith.constant 0 : i32
    %c0_i32_1 = arith.constant 0 : i32
    %c0_i32_2 = arith.constant 0 : i32
    return %arg0, %c0_i32, %c0_i32_0, %c0_i32_1 : i32, i32, i32, i32
  }
  func.func @transform_1(%arg0: i32) -> (i32, i32, i32) {
    %c0_i32 = arith.constant 0 : i32
    %c0_i32_0 = arith.constant 0 : i32
    %c0_i32_1 = arith.constant 0 : i32
    %c0_i32_2 = arith.constant 0 : i32
    return %c0_i32, %c0_i32_0, %c0_i32_1 : i32, i32, i32
  }
  func.func @transform_2(%arg0: i32) -> (i32, i32, i32) {
    %c0_i32 = arith.constant 0 : i32
    %c0_i32_0 = arith.constant 0 : i32
    %c0_i32_1 = arith.constant 0 : i32
    %c0_i32_2 = arith.constant 0 : i32
    return %c0_i32, %c0_i32_0, %c0_i32_1 : i32, i32, i32
  }
  func.func @transform_3(%arg0: i32) -> (i32, i32, i32) {
    %c0_i32 = arith.constant 0 : i32
    %c0_i32_0 = arith.constant 0 : i32
    %c0_i32_1 = arith.constant 0 : i32
    %c0_i32_2 = arith.constant 0 : i32
    return %c0_i32, %c0_i32_0, %c0_i32_1 : i32, i32, i32
  }
  func.func @transform_4(%arg0: i32) -> (i32, i32) {
    %c0_i32 = arith.constant 0 : i32
    %c0_i32_0 = arith.constant 0 : i32
    %c0_i32_1 = arith.constant 0 : i32
    return %c0_i32, %c0_i32_0 : i32, i32
  }
  func.func @transform_5(%arg0: i32) -> (i32, i32) {
    %c0_i32 = arith.constant 0 : i32
    %c0_i32_0 = arith.constant 0 : i32
    %c0_i32_1 = arith.constant 0 : i32
    return %c0_i32, %c0_i32_0 : i32, i32
  }
  func.func @transform_6(%arg0: i32) -> (i32, i32, i32) {
    %c0_i32 = arith.constant 0 : i32
    %c0_i32_0 = arith.constant 0 : i32
    %c0_i32_1 = arith.constant 0 : i32
    %c0_i32_2 = arith.constant 0 : i32
    return %c0_i32, %c0_i32_0, %c0_i32_1 : i32, i32, i32
  }
  func.func @transform_7(%arg0: i32) -> (i32, i32) {
    %c0_i32 = arith.constant 0 : i32
    %c0_i32_0 = arith.constant 0 : i32
    %c0_i32_1 = arith.constant 0 : i32
    return %c0_i32, %c0_i32_0 : i32, i32
  }
  func.func @transform_8(%arg0: i32) -> (i32, i32) {
    %c0_i32 = arith.constant 0 : i32
    %c0_i32_0 = arith.constant 0 : i32
    %c0_i32_1 = arith.constant 0 : i32
    return %c0_i32, %c0_i32_0 : i32, i32
  }
  func.func @transform_9(%arg0: i32) -> (i32, i32) {
    %c0_i32 = arith.constant 0 : i32
    %c0_i32_0 = arith.constant 0 : i32
    %c0_i32_1 = arith.constant 0 : i32
    return %c0_i32, %c0_i32_0 : i32, i32
  }
  func.func @transform_10(%arg0: i32) -> (i32, i32, i32, i32) {
    %c0_i32 = arith.constant 0 : i32
    %c0_i32_0 = arith.constant 0 : i32
    %c0_i32_1 = arith.constant 0 : i32
    %c0_i32_2 = arith.constant 0 : i32
    return %arg0, %c0_i32, %c0_i32_0, %c0_i32_1 : i32, i32, i32, i32
  }
}

</mosaic_0001>

<llo_original>
// kernel: tpu_custom_call.1
$region0: #{tpu_custom_call.1}
  #allocation0 [shape = 'u32[]', space=smem, size = 0x4, offset = 0x4, fixed_abs, tag = 'smem constant byte address 0x4 - core index']
  #allocation1 [shape = 'u32[144,128]{1,0:T(1,128)}', space=vmem, size = 0x12000, scoped, tag = 'internal scratch']
  #allocation2 [shape = 'f32[18,25,4]{2,1,0:T(8,128)}', space=vmem, size = 0x48000, scoped, tag = 'scratch operand']
  #allocation3 [shape = 'f32[18,25,8]{2,1,0:T(8,128)}', space=vmem, size = 0x48000, scoped, tag = 'scratch operand']
  #allocation4 [shape = 'f32[18,8,8]{2,1,0:T(8,128)}', space=vmem, size = 0x12000, scoped, tag = 'scratch operand']
  #allocation5 [shape = 'f32[16,8,4]{2,1,0:T(8,128)}', space=vmem, size = 0x10000, scoped, tag = 'scratch operand']
  %s0 = inlined_call_operand.vmem [shape: f32[2,16,16,4], index: 0, kind: input, shape index: {}]
  %s1 = inlined_call_operand.vmem [shape: f32[1,1,4], index: 1, kind: input, shape index: {}]
  %s2 = inlined_call_operand.vmem [shape: f32[1,1,4], index: 2, kind: input, shape index: {}]
  %s3 = inlined_call_operand.vmem [shape: f32[9,4,8], index: 3, kind: input, shape index: {}]
  %s4 = inlined_call_operand.vmem [shape: f32[1,8], index: 4, kind: input, shape index: {}]
  %s5 = inlined_call_operand.vmem [shape: f32[1,8], index: 5, kind: input, shape index: {}]
  %s6 = inlined_call_operand.vmem [shape: f32[9,8,8], index: 6, kind: input, shape index: {}]
  %s7 = inlined_call_operand.vmem [shape: f32[1,8], index: 7, kind: input, shape index: {}]
  %s8 = inlined_call_operand.vmem [shape: f32[4,8], index: 8, kind: input, shape index: {}]
  %s9 = inlined_call_operand.vmem [shape: f32[1,8], index: 9, kind: input, shape index: {}]
  %s10 = inlined_call_operand.hbm [shape: f32[2,8,8,8], index: 10, kind: output, shape index: {}]
  %s11 = sld [smem:[#allocation0]]
  $region73: #{tpu_custom_call.1} parent=0
    _
  %s13 = ssub.s32 1, %s11
  %s14 = scalar_select 0, %s13, %s11
  $region1: #{tpu_custom_call.1} parent=0
    #allocation6 [shape = 'u8[65536]{0}', space=vmem, size = 0x10000, scoped, tag = 'output window, operand 0']
    #allocation7 [shape = 's32[2]{0}', space=sflag, size = 0x8, scoped, tag = 'scoped memory for tpu_custom_call.1']
    %15 = vsyncpa [#allocation7], 0
    %s16 = scalar_lea.sflag [#allocation7], 1
    %17 = vsyncpa %s16, 0
    loop: start=0, step=1, limit=4
    $region2: #{tpu_custom_call.1} parent=1 // loop_pre_header
      _
    $region3: #{tpu_custom_call.1} parent=1 // loop_header
      %s19 = sphi 0, %s23
      %p20 = scmp.ge.s32.totalorder %s19, 4
      %s29 = sphi 0, %s31
      %s32 = sphi 0, %s29
      %s33 = sphi 0, %s32
      %s49 = sphi 0, %s33
      %s53 = sphi 0, %s53
      %s55 = sphi 0, %s53
      %s56 = sphi 0, %s55
      %s70 = sphi 0, %s56
      %s74 = sphi 0, %s74
      %s76 = sphi 0, %s74
      %s77 = sphi 0, %s76
      %s91 = sphi 0, %s77
      %s95 = sphi 0, %s95
      %s97 = sphi 0, %s95
      %s98 = sphi 0, %s97
      %s112 = sphi 0, %s98
      %s116 = sphi 0, %s116
      %s118 = sphi 0, %s116
      %s119 = sphi 0, %s118
      %s133 = sphi 0, %s119
      %s137 = sphi 0, %s137
      %s139 = sphi 0, %s137
      %s140 = sphi 0, %s139
      %s154 = sphi 0, %s140
      %s158 = sphi 0, %s158
      %s160 = sphi 0, %s158
      %s161 = sphi 0, %s160
      %s175 = sphi 0, %s161
      %s179 = sphi 0, %s179
      %s181 = sphi 0, %s179
      %s182 = sphi 0, %s181
      %s196 = sphi 0, %s182
      %s200 = sphi 0, %s200
      %s202 = sphi 0, %s200
      %s203 = sphi 0, %s202
      %s217 = sphi 0, %s203
      %s221 = sphi 0, %s221
      %s223 = sphi 0, %s221
      %s224 = sphi 0, %s223
      %s238 = sphi 0, %s224
      %s244 = sphi 0, %s246
      %s247 = sphi 0, %s244
      %s248 = sphi 0, %s247
      %s264 = sphi 0, %s248
    $region4: #{tpu_custom_call.1} parent=1 // loop_header_branch
      %22 = sbr.rel (%p20) target = $region8
    $region5: #{tpu_custom_call.1} parent=1 // loop_body
      %s24 = ssub.s32 %s19, 1
      %s25 = ssub.s32 %s19, 2
      %s26 = sadd.s32 %s19, 1
      %s27 = ssub.s32 %s19, %s26
      %p28 = scmp.eq.s32.totalorder %s27, 0
      %s30 = sadd.s32 %s29, 1
      %s31 = scalar_select %p28, %s29, %s30
      %p34 = pneg %p28
      %p35 = scmp.eq.s32.totalorder %s19, 1
      %p36 = por %p34, %p35
      %p37 = scmp.ne.s32.totalorder %s29, %s32
      %p38 = scmp.eq.s32.totalorder %s19, 0
      %p39 = por %p37, %p38
      %p40 = scmp.ne.s32.totalorder %s29, %s32
      %p41 = scmp.eq.s32.totalorder %s24, 1
      %p42 = por %p40, %p41
      %p43 = scmp.ne.s32.totalorder %s32, %s33
      %p44 = scmp.eq.s32.totalorder %s24, 0
      %p45 = por %p43, %p44
      %p46 = scmp.ne.s32.totalorder %s32, %s33
      %p47 = scmp.eq.s32.totalorder %s25, 1
      %p48 = por %p46, %p47
      %p50 = scmp.ne.s32.totalorder %s33, %s49
      %p51 = scmp.eq.s32.totalorder %s25, 0
      %p52 = por %p50, %p51
      %s54 = sadd.s32 %s53, 1
      %p57 = scmp.eq.s32.totalorder %s19, 1
      %p58 = scmp.ne.s32.totalorder %s53, %s55
      %p59 = scmp.eq.s32.totalorder %s19, 0
      %p60 = por %p58, %p59
      %p61 = scmp.ne.s32.totalorder %s53, %s55
      %p62 = scmp.eq.s32.totalorder %s24, 1
      %p63 = por %p61, %p62
      %p64 = scmp.ne.s32.totalorder %s55, %s56
      %p65 = scmp.eq.s32.totalorder %s24, 0
      %p66 = por %p64, %p65
      %p67 = scmp.ne.s32.totalorder %s55, %s56
      %p68 = scmp.eq.s32.totalorder %s25, 1
      %p69 = por %p67, %p68
      %p71 = scmp.ne.s32.totalorder %s56, %s70
      %p72 = scmp.eq.s32.totalorder %s25, 0
      %p73 = por %p71, %p72
      %s75 = sadd.s32 %s74, 1
      %p78 = scmp.eq.s32.totalorder %s19, 1
      %p79 = scmp.ne.s32.totalorder %s74, %s76
      %p80 = scmp.eq.s32.totalorder %s19, 0
      %p81 = por %p79, %p80
      %p82 = scmp.ne.s32.totalorder %s74, %s76
      %p83 = scmp.eq.s32.totalorder %s24, 1
      %p84 = por %p82, %p83
      %p85 = scmp.ne.s32.totalorder %s76, %s77
      %p86 = scmp.eq.s32.totalorder %s24, 0
      %p87 = por %p85, %p86
      %p88 = scmp.ne.s32.totalorder %s76, %s77
      %p89 = scmp.eq.s32.totalorder %s25, 1
      %p90 = por %p88, %p89
      %p92 = scmp.ne.s32.totalorder %s77, %s91
      %p93 = scmp.eq.s32.totalorder %s25, 0
      %p94 = por %p92, %p93
      %s96 = sadd.s32 %s95, 1
      %p99 = scmp.eq.s32.totalorder %s19, 1
      %p100 = scmp.ne.s32.totalorder %s95, %s97
      %p101 = scmp.eq.s32.totalorder %s19, 0
      %p102 = por %p100, %p101
      %p103 = scmp.ne.s32.totalorder %s95, %s97
      %p104 = scmp.eq.s32.totalorder %s24, 1
      %p105 = por %p103, %p104
      %p106 = scmp.ne.s32.totalorder %s97, %s98
      %p107 = scmp.eq.s32.totalorder %s24, 0
      %p108 = por %p106, %p107
      %p109 = scmp.ne.s32.totalorder %s97, %s98
      %p110 = scmp.eq.s32.totalorder %s25, 1
      %p111 = por %p109, %p110
      %p113 = scmp.ne.s32.totalorder %s98, %s112
      %p114 = scmp.eq.s32.totalorder %s25, 0
      %p115 = por %p113, %p114
      %s117 = sadd.s32 %s116, 1
      %p120 = scmp.eq.s32.totalorder %s19, 1
      %p121 = scmp.ne.s32.totalorder %s116, %s118
      %p122 = scmp.eq.s32.totalorder %s19, 0
      %p123 = por %p121, %p122
      %p124 = scmp.ne.s32.totalorder %s116, %s118
      %p125 = scmp.eq.s32.totalorder %s24, 1
      %p126 = por %p124, %p125
      %p127 = scmp.ne.s32.totalorder %s118, %s119
      %p128 = scmp.eq.s32.totalorder %s24, 0
      %p129 = por %p127, %p128
      %p130 = scmp.ne.s32.totalorder %s118, %s119
      %p131 = scmp.eq.s32.totalorder %s25, 1
      %p132 = por %p130, %p131
      %p134 = scmp.ne.s32.totalorder %s119, %s133
      %p135 = scmp.eq.s32.totalorder %s25, 0
      %p136 = por %p134, %p135
      %s138 = sadd.s32 %s137, 1
      %p141 = scmp.eq.s32.totalorder %s19, 1
      %p142 = scmp.ne.s32.totalorder %s137, %s139
      %p143 = scmp.eq.s32.totalorder %s19, 0
      %p144 = por %p142, %p143
      %p145 = scmp.ne.s32.totalorder %s137, %s139
      %p146 = scmp.eq.s32.totalorder %s24, 1
      %p147 = por %p145, %p146
      %p148 = scmp.ne.s32.totalorder %s139, %s140
      %p149 = scmp.eq.s32.totalorder %s24, 0
      %p150 = por %p148, %p149
      %p151 = scmp.ne.s32.totalorder %s139, %s140
      %p152 = scmp.eq.s32.totalorder %s25, 1
      %p153 = por %p151, %p152
      %p155 = scmp.ne.s32.totalorder %s140, %s154
      %p156 = scmp.eq.s32.totalorder %s25, 0
      %p157 = por %p155, %p156
      %s159 = sadd.s32 %s158, 1
      %p162 = scmp.eq.s32.totalorder %s19, 1
      %p163 = scmp.ne.s32.totalorder %s158, %s160
      %p164 = scmp.eq.s32.totalorder %s19, 0
      %p165 = por %p163, %p164
      %p166 = scmp.ne.s32.totalorder %s158, %s160
      %p167 = scmp.eq.s32.totalorder %s24, 1
      %p168 = por %p166, %p167
      %p169 = scmp.ne.s32.totalorder %s160, %s161
      %p170 = scmp.eq.s32.totalorder %s24, 0
      %p171 = por %p169, %p170
      %p172 = scmp.ne.s32.totalorder %s160, %s161
      %p173 = scmp.eq.s32.totalorder %s25, 1
      %p174 = por %p172, %p173
      %p176 = scmp.ne.s32.totalorder %s161, %s175
      %p177 = scmp.eq.s32.totalorder %s25, 0
      %p178 = por %p176, %p177
      %s180 = sadd.s32 %s179, 1
      %p183 = scmp.eq.s32.totalorder %s19, 1
      %p184 = scmp.ne.s32.totalorder %s179, %s181
      %p185 = scmp.eq.s32.totalorder %s19, 0
      %p186 = por %p184, %p185
      %p187 = scmp.ne.s32.totalorder %s179, %s181
      %p188 = scmp.eq.s32.totalorder %s24, 1
      %p189 = por %p187, %p188
      %p190 = scmp.ne.s32.totalorder %s181, %s182
      %p191 = scmp.eq.s32.totalorder %s24, 0
      %p192 = por %p190, %p191
      %p193 = scmp.ne.s32.totalorder %s181, %s182
      %p194 = scmp.eq.s32.totalorder %s25, 1
      %p195 = por %p193, %p194
      %p197 = scmp.ne.s32.totalorder %s182, %s196
      %p198 = scmp.eq.s32.totalorder %s25, 0
      %p199 = por %p197, %p198
      %s201 = sadd.s32 %s200, 1
      %p204 = scmp.eq.s32.totalorder %s19, 1
      %p205 = scmp.ne.s32.totalorder %s200, %s202
      %p206 = scmp.eq.s32.totalorder %s19, 0
      %p207 = por %p205, %p206
      %p208 = scmp.ne.s32.totalorder %s200, %s202
      %p209 = scmp.eq.s32.totalorder %s24, 1
      %p210 = por %p208, %p209
      %p211 = scmp.ne.s32.totalorder %s202, %s203
      %p212 = scmp.eq.s32.totalorder %s24, 0
      %p213 = por %p211, %p212
      %p214 = scmp.ne.s32.totalorder %s202, %s203
      %p215 = scmp.eq.s32.totalorder %s25, 1
      %p216 = por %p214, %p215
      %p218 = scmp.ne.s32.totalorder %s203, %s217
      %p219 = scmp.eq.s32.totalorder %s25, 0
      %p220 = por %p218, %p219
      %s222 = sadd.s32 %s221, 1
      %p225 = scmp.eq.s32.totalorder %s19, 1
      %p226 = scmp.ne.s32.totalorder %s221, %s223
      %p227 = scmp.eq.s32.totalorder %s19, 0
      %p228 = por %p226, %p227
      %p229 = scmp.ne.s32.totalorder %s221, %s223
      %p230 = scmp.eq.s32.totalorder %s24, 1
      %p231 = por %p229, %p230
      %p232 = scmp.ne.s32.totalorder %s223, %s224
      %p233 = scmp.eq.s32.totalorder %s24, 0
      %p234 = por %p232, %p233
      %p235 = scmp.ne.s32.totalorder %s223, %s224
      %p236 = scmp.eq.s32.totalorder %s25, 1
      %p237 = por %p235, %p236
      %p239 = scmp.ne.s32.totalorder %s224, %s238
      %p240 = scmp.eq.s32.totalorder %s25, 0
      %p241 = por %p239, %p240
      %s242 = ssub.s32 %s19, %s26
      %p243 = scmp.eq.s32.totalorder %s242, 0
      %s245 = sadd.s32 %s244, 1
      %s246 = scalar_select %p243, %s244, %s245
      %p249 = pneg %p243
      %p250 = scmp.eq.s32.totalorder %s19, 1
      %p251 = por %p249, %p250
      %p252 = scmp.ne.s32.totalorder %s244, %s247
      %p253 = scmp.eq.s32.totalorder %s19, 0
      %p254 = por %p252, %p253
      %p255 = scmp.ne.s32.totalorder %s244, %s247
      %p256 = scmp.eq.s32.totalorder %s24, 1
      %p257 = por %p255, %p256
      %p258 = scmp.ne.s32.totalorder %s247, %s248
      %p259 = scmp.eq.s32.totalorder %s24, 0
      %p260 = por %p258, %p259
      %p261 = scmp.ne.s32.totalorder %s247, %s248
      %p262 = scmp.eq.s32.totalorder %s25, 1
      %p263 = por %p261, %p262
      %p265 = scmp.ne.s32.totalorder %s248, %s264
      %p266 = scmp.eq.s32.totalorder %s25, 0
      %p267 = por %p265, %p266
      %p268 = scmp.le.s32.totalorder 1, %s19
      %p269 = scmp.lt.s32.totalorder %s19, 3
      %p270 = pnand %p268, %p269
      %p271 = pneg %p270
      // Predicated region
      $region9: #{tpu_custom_call.1} parent=5 // pred_check
        _
      $region10: #{tpu_custom_call.1} parent=5 // pred_check_branch
        %273 = sbr.rel (%p270) target = $region12
      $region11: #{tpu_custom_call.1} parent=5 // pred_region
        %s274 = ssub.s32 %s19, 1
        // Predicated region
        $region13: #{tpu_custom_call.1} parent=11 // pred_check
          %p275 = pneg %p66
        $region14: #{tpu_custom_call.1} parent=11 // pred_check_branch
          %277 = sbr.rel (%p275) target = $region16
        $region15: #{tpu_custom_call.1} parent=11 // pred_region
          _
        $region16: #{tpu_custom_call.1} parent=11 // pred_fallthru
          _
        // Predicated region
        $region17: #{tpu_custom_call.1} parent=11 // pred_check
          %p278 = pneg %p87
        $region18: #{tpu_custom_call.1} parent=11 // pred_check_branch
          %280 = sbr.rel (%p278) target = $region20
        $region19: #{tpu_custom_call.1} parent=11 // pred_region
          _
        $region20: #{tpu_custom_call.1} parent=11 // pred_fallthru
          _
        // Predicated region
        $region21: #{tpu_custom_call.1} parent=11 // pred_check
          %p281 = pneg %p108
        $region22: #{tpu_custom_call.1} parent=11 // pred_check_branch
          %283 = sbr.rel (%p281) target = $region24
        $region23: #{tpu_custom_call.1} parent=11 // pred_region
          _
        $region24: #{tpu_custom_call.1} parent=11 // pred_fallthru
          _
        // Predicated region
        $region25: #{tpu_custom_call.1} parent=11 // pred_check
          %p284 = pneg %p129
        $region26: #{tpu_custom_call.1} parent=11 // pred_check_branch
          %286 = sbr.rel (%p284) target = $region28
        $region27: #{tpu_custom_call.1} parent=11 // pred_region
          _
        $region28: #{tpu_custom_call.1} parent=11 // pred_fallthru
          _
        // Predicated region
        $region29: #{tpu_custom_call.1} parent=11 // pred_check
          %p287 = pneg %p150
        $region30: #{tpu_custom_call.1} parent=11 // pred_check_branch
          %289 = sbr.rel (%p287) target = $region32
        $region31: #{tpu_custom_call.1} parent=11 // pred_region
          _
        $region32: #{tpu_custom_call.1} parent=11 // pred_fallthru
          _
        // Predicated region
        $region33: #{tpu_custom_call.1} parent=11 // pred_check
          %p290 = pneg %p171
        $region34: #{tpu_custom_call.1} parent=11 // pred_check_branch
          %292 = sbr.rel (%p290) target = $region36
        $region35: #{tpu_custom_call.1} parent=11 // pred_region
          _
        $region36: #{tpu_custom_call.1} parent=11 // pred_fallthru
          _
        // Predicated region
        $region37: #{tpu_custom_call.1} parent=11 // pred_check
          %p293 = pneg %p192
        $region38: #{tpu_custom_call.1} parent=11 // pred_check_branch
          %295 = sbr.rel (%p293) target = $region40
        $region39: #{tpu_custom_call.1} parent=11 // pred_region
          _
        $region40: #{tpu_custom_call.1} parent=11 // pred_fallthru
          _
        // Predicated region
        $region41: #{tpu_custom_call.1} parent=11 // pred_check
          %p296 = pneg %p213
        $region42: #{tpu_custom_call.1} parent=11 // pred_check_branch
          %298 = sbr.rel (%p296) target = $region44
        $region43: #{tpu_custom_call.1} parent=11 // pred_region
          _
        $region44: #{tpu_custom_call.1} parent=11 // pred_fallthru
          _
        // Predicated region
        $region45: #{tpu_custom_call.1} parent=11 // pred_check
          %p299 = pneg %p234
        $region46: #{tpu_custom_call.1} parent=11 // pred_check_branch
          %301 = sbr.rel (%p299) target = $region48
        $region47: #{tpu_custom_call.1} parent=11 // pred_region
          _
        $region48: #{tpu_custom_call.1} parent=11 // pred_fallthru
          _
      $region12: #{tpu_custom_call.1} parent=5 // pred_fallthru
        _
      %p302 = scmp.lt.s32.totalorder %s19, 2
      // Predicated region
      $region49: #{tpu_custom_call.1} parent=5 // pred_check
        %p303 = pneg %p302
      $region50: #{tpu_custom_call.1} parent=5 // pred_check_branch
        %305 = sbr.rel (%p303) target = $region52
      $region51: #{tpu_custom_call.1} parent=5 // pred_region
        // Predicated region
        $region53: #{tpu_custom_call.1} parent=51 // pred_check
          %p306 = pneg %p39
        $region54: #{tpu_custom_call.1} parent=51 // pred_check_branch
          %308 = sbr.rel (%p306) target = $region56
        $region55: #{tpu_custom_call.1} parent=51 // pred_region
          %p309 = scmp.lt.s32.totalorder %s19, 1
          %s310 = scalar_select %p309, %s19, 1
          %s311 = smul.addr %s310, 32
          %s312 = smul.addr %s311, 8
          %s313 = scalar_lea.vmem %s0, %s312
        $region56: #{tpu_custom_call.1} parent=51 // pred_fallthru
          _
      $region52: #{tpu_custom_call.1} parent=5 // pred_fallthru
        _
      %p314 = scmp.le.s32.totalorder 1, %s19
      %p315 = scmp.lt.s32.totalorder %s19, 3
      %p316 = pnand %p314, %p315
      %p317 = pneg %p316
      // Predicated region
      $region57: #{tpu_custom_call.1} parent=5 // pred_check
        _
      $region58: #{tpu_custom_call.1} parent=5 // pred_check_branch
        %319 = sbr.rel (%p316) target = $region60
      $region59: #{tpu_custom_call.1} parent=5 // pred_region
        %s320 = ssub.s32 %s19, 1
        %p321 = scmp.lt.s32.totalorder %s24, 1
        %s322 = scalar_select %p321, %s24, 1
        %s323 = smul.addr %s322, 32
        %s324 = smul.addr %s323, 8
        %s325 = scalar_lea.vmem %s0, %s324
        %p326 = pneg %p45
        %p327 = pneg %p42
        %p328 = pneg %p66
        %p329 = pneg %p63
        %p330 = pneg %p87
        %p331 = pneg %p84
        %p332 = pneg %p108
        %p333 = pneg %p105
        %p334 = pneg %p129
        %p335 = pneg %p126
        %p336 = pneg %p150
        %p337 = pneg %p147
        %p338 = pneg %p171
        %p339 = pneg %p168
        %p340 = pneg %p192
        %p341 = pneg %p189
        %p342 = pneg %p213
        %p343 = pneg %p210
        %p344 = pneg %p234
        %p345 = pneg %p231
        %p346 = pneg %p260
        %p347 = pneg %p257
        %s348 = sand.u32 %s247, 1
        %s349 = scalar_lea.sflag [#allocation7], %s348
        %s350 = sand.u32 %s247, 1
        %s351 = smul.addr %s350, 64
        %s352 = scalar_lea.vmem [#allocation6], %s351
        %p353 = scmp.lt.s32.totalorder %s24, 1
        %s354 = scalar_select %p353, %s24, 1
        %s355 = smul.addr %s354, 32
        %s356 = smul.addr %s355, 8
        %s357 = scalar_lea.vmem %s0, %s356
        %v358 = vld [vmem:[%s357] sm:$0xff]
        %v359 = vld [vmem:[%s357 + $0x8] sm:$0xff]
        %v360 = vld [vmem:[%s357 + $0x10] sm:$0xff]
        %v361 = vld [vmem:[%s357 + $0x18] sm:$0xff]
        %v362 = vld [vmem:[%s357 + $0x20] sm:$0xff]
        %v363 = vld [vmem:[%s357 + $0x28] sm:$0xff]
        %v364 = vld [vmem:[%s357 + $0x30] sm:$0xff]
        %v365 = vld [vmem:[%s357 + $0x38] sm:$0xff]
        %v366 = vld [vmem:[%s357 + $0x40] sm:$0xff]
        %v367 = vld [vmem:[%s357 + $0x48] sm:$0xff]
        %v368 = vld [vmem:[%s357 + $0x50] sm:$0xff]
        %v369 = vld [vmem:[%s357 + $0x58] sm:$0xff]
        %v370 = vld [vmem:[%s357 + $0x60] sm:$0xff]
        %v371 = vld [vmem:[%s357 + $0x68] sm:$0xff]
        %v372 = vld [vmem:[%s357 + $0x70] sm:$0xff]
        %v373 = vld [vmem:[%s357 + $0x78] sm:$0xff]
        %v374 = vld [vmem:[%s357 + $0x80] sm:$0xff]
        %v375 = vld [vmem:[%s357 + $0x88] sm:$0xff]
        %v376 = vld [vmem:[%s357 + $0x90] sm:$0xff]
        %v377 = vld [vmem:[%s357 + $0x98] sm:$0xff]
        %v378 = vld [vmem:[%s357 + $0xa0] sm:$0xff]
        %v379 = vld [vmem:[%s357 + $0xa8] sm:$0xff]
        %v380 = vld [vmem:[%s357 + $0xb0] sm:$0xff]
        %v381 = vld [vmem:[%s357 + $0xb8] sm:$0xff]
        %v382 = vld [vmem:[%s357 + $0xc0] sm:$0xff]
        %v383 = vld [vmem:[%s357 + $0xc8] sm:$0xff]
        %v384 = vld [vmem:[%s357 + $0xd0] sm:$0xff]
        %v385 = vld [vmem:[%s357 + $0xd8] sm:$0xff]
        %v386 = vld [vmem:[%s357 + $0xe0] sm:$0xff]
        %v387 = vld [vmem:[%s357 + $0xe8] sm:$0xff]
        %v388 = vld [vmem:[%s357 + $0xf0] sm:$0xff]
        %v389 = vld [vmem:[%s357 + $0xf8] sm:$0xff]
        %v390 = vld [vmem:[%s1] sm:$0x1]
        %v392 = vlaneseq
        %v393 = vshrl.u32 %v392, 7
        %v394 = vsub.s32 0, %v393
        %v395 = vrot.slane %v390, %v394
        %v397 = vmul.f32 %v358, %v395
        %v398 = vmul.f32 %v359, %v395
        %v399 = vmul.f32 %v360, %v395
        %v400 = vmul.f32 %v361, %v395
        %v401 = vmul.f32 %v362, %v395
        %v402 = vmul.f32 %v363, %v395
        %v403 = vmul.f32 %v364, %v395
        %v404 = vmul.f32 %v365, %v395
        %v405 = vmul.f32 %v366, %v395
        %v406 = vmul.f32 %v367, %v395
        %v407 = vmul.f32 %v368, %v395
        %v408 = vmul.f32 %v369, %v395
        %v409 = vmul.f32 %v370, %v395
        %v410 = vmul.f32 %v371, %v395
        %v411 = vmul.f32 %v372, %v395
        %v412 = vmul.f32 %v373, %v395
        %v413 = vmul.f32 %v374, %v395
        %v414 = vmul.f32 %v375, %v395
        %v415 = vmul.f32 %v376, %v395
        %v416 = vmul.f32 %v377, %v395
        %v417 = vmul.f32 %v378, %v395
        %v418 = vmul.f32 %v379, %v395
        %v419 = vmul.f32 %v380, %v395
        %v420 = vmul.f32 %v381, %v395
        %v421 = vmul.f32 %v382, %v395
        %v422 = vmul.f32 %v383, %v395
        %v423 = vmul.f32 %v384, %v395
        %v424 = vmul.f32 %v385, %v395
        %v425 = vmul.f32 %v386, %v395
        %v426 = vmul.f32 %v387, %v395
        %v427 = vmul.f32 %v388, %v395
        %v428 = vmul.f32 %v389, %v395
        %v429 = vld [vmem:[%s2] sm:$0x1]
        %v431 = vlaneseq
        %v432 = vshrl.u32 %v431, 7
        %v433 = vsub.s32 0, %v432
        %v434 = vrot.slane %v429, %v433
        %v436 = vadd.f32 %v397, %v434
        %v437 = vadd.f32 %v398, %v434
        %v438 = vadd.f32 %v399, %v434
        %v439 = vadd.f32 %v400, %v434
        %v440 = vadd.f32 %v401, %v434
        %v441 = vadd.f32 %v402, %v434
        %v442 = vadd.f32 %v403, %v434
        %v443 = vadd.f32 %v404, %v434
        %v444 = vadd.f32 %v405, %v434
        %v445 = vadd.f32 %v406, %v434
        %v446 = vadd.f32 %v407, %v434
        %v447 = vadd.f32 %v408, %v434
        %v448 = vadd.f32 %v409, %v434
        %v449 = vadd.f32 %v410, %v434
        %v450 = vadd.f32 %v411, %v434
        %v451 = vadd.f32 %v412, %v434
        %v452 = vadd.f32 %v413, %v434
        %v453 = vadd.f32 %v414, %v434
        %v454 = vadd.f32 %v415, %v434
        %v455 = vadd.f32 %v416, %v434
        %v456 = vadd.f32 %v417, %v434
        %v457 = vadd.f32 %v418, %v434
        %v458 = vadd.f32 %v419, %v434
        %v459 = vadd.f32 %v420, %v434
        %v460 = vadd.f32 %v421, %v434
        %v461 = vadd.f32 %v422, %v434
        %v462 = vadd.f32 %v423, %v434
        %v463 = vadd.f32 %v424, %v434
        %v464 = vadd.f32 %v425, %v434
        %v465 = vadd.f32 %v426, %v434
        %v466 = vadd.f32 %v427, %v434
        %v467 = vadd.f32 %v428, %v434
        %v468 = vmax.f32 %v436, 0.0
        %v469 = vmax.f32 %v437, 0.0
        %v470 = vmax.f32 %v438, 0.0
        %v471 = vmax.f32 %v439, 0.0
        %v472 = vmax.f32 %v440, 0.0
        %v473 = vmax.f32 %v441, 0.0
        %v474 = vmax.f32 %v442, 0.0
        %v475 = vmax.f32 %v443, 0.0
        %v476 = vmax.f32 %v444, 0.0
        %v477 = vmax.f32 %v445, 0.0
        %v478 = vmax.f32 %v446, 0.0
        %v479 = vmax.f32 %v447, 0.0
        %v480 = vmax.f32 %v448, 0.0
        %v481 = vmax.f32 %v449, 0.0
        %v482 = vmax.f32 %v450, 0.0
        %v483 = vmax.f32 %v451, 0.0
        %v484 = vmax.f32 %v452, 0.0
        %v485 = vmax.f32 %v453, 0.0
        %v486 = vmax.f32 %v454, 0.0
        %v487 = vmax.f32 %v455, 0.0
        %v488 = vmax.f32 %v456, 0.0
        %v489 = vmax.f32 %v457, 0.0
        %v490 = vmax.f32 %v458, 0.0
        %v491 = vmax.f32 %v459, 0.0
        %v492 = vmax.f32 %v460, 0.0
        %v493 = vmax.f32 %v461, 0.0
        %v494 = vmax.f32 %v462, 0.0
        %v495 = vmax.f32 %v463, 0.0
        %v496 = vmax.f32 %v464, 0.0
        %v497 = vmax.f32 %v465, 0.0
        %v498 = vmax.f32 %v466, 0.0
        %v499 = vmax.f32 %v467, 0.0
        %vm500 = vcmask 31744
        %501 = vst.msk [vmem:[#allocation2] sm:$0xff] %vm500, 0.0
        %502 = vst.msk [vmem:[#allocation2 + $0x8] sm:$0xff] %vm500, 0.0
        %503 = vst.msk [vmem:[#allocation2 + $0x10] sm:$0xff] %vm500, 0.0
        %vm504 = vcmask 24576
        %505 = vst.msk [vmem:[#allocation2 + $0x18] sm:$0x1] %vm504, 0.0
        %s506 = scalar_lea.vmem [#allocation2], 544
        %507 = vst.msk [vmem:[%s506] sm:$0xff] %vm500, 0.0
        %508 = vst.msk [vmem:[%s506 + $0x8] sm:$0xff] %vm500, 0.0
        %509 = vst.msk [vmem:[%s506 + $0x10] sm:$0xff] %vm500, 0.0
        %510 = vst.msk [vmem:[%s506 + $0x18] sm:$0x1] %vm504, 0.0
        %511 = vst.msk [vmem:[#allocation2 + $0x7] sm:$0x1] %vm504, 0.0
        %512 = vst.msk [vmem:[#allocation2 + $0x27] sm:$0x1] %vm504, 0.0
        %513 = vst.msk [vmem:[#allocation2 + $0x47] sm:$0x1] %vm504, 0.0
        %514 = vst.msk [vmem:[#allocation2 + $0x67] sm:$0x1] %vm504, 0.0
        %515 = vst.msk [vmem:[#allocation2 + $0x87] sm:$0x1] %vm504, 0.0
        %516 = vst.msk [vmem:[#allocation2 + $0xa7] sm:$0x1] %vm504, 0.0
        %517 = vst.msk [vmem:[#allocation2 + $0xc7] sm:$0x1] %vm504, 0.0
        %518 = vst.msk [vmem:[#allocation2 + $0xe7] sm:$0x1] %vm504, 0.0
        %519 = vst.msk [vmem:[#allocation2 + $0x107] sm:$0x1] %vm504, 0.0
        %520 = vst.msk [vmem:[#allocation2 + $0x127] sm:$0x1] %vm504, 0.0
        %521 = vst.msk [vmem:[#allocation2 + $0x147] sm:$0x1] %vm504, 0.0
        %522 = vst.msk [vmem:[#allocation2 + $0x167] sm:$0x1] %vm504, 0.0
        %523 = vst.msk [vmem:[#allocation2 + $0x187] sm:$0x1] %vm504, 0.0
        %524 = vst.msk [vmem:[#allocation2 + $0x1a7] sm:$0x1] %vm504, 0.0
        %525 = vst.msk [vmem:[#allocation2 + $0x1c7] sm:$0x1] %vm504, 0.0
        %526 = vst.msk [vmem:[#allocation2 + $0x1e7] sm:$0x1] %vm504, 0.0
        %527 = vst.msk [vmem:[#allocation2 + $0x207] sm:$0x1] %vm504, 0.0
        %528 = vst.msk [vmem:[#allocation2 + $0x227] sm:$0x1] %vm504, 0.0
        %529 = vst.msk [vmem:[#allocation2 + $0x18] sm:$0x1] %vm504, 0.0
        %530 = vst.msk [vmem:[#allocation2 + $0x38] sm:$0x1] %vm504, 0.0
        %531 = vst.msk [vmem:[#allocation2 + $0x58] sm:$0x1] %vm504, 0.0
        %532 = vst.msk [vmem:[#allocation2 + $0x78] sm:$0x1] %vm504, 0.0
        %533 = vst.msk [vmem:[#allocation2 + $0x98] sm:$0x1] %vm504, 0.0
        %534 = vst.msk [vmem:[#allocation2 + $0xb8] sm:$0x1] %vm504, 0.0
        %535 = vst.msk [vmem:[#allocation2 + $0xd8] sm:$0x1] %vm504, 0.0
        %536 = vst.msk [vmem:[#allocation2 + $0xf8] sm:$0x1] %vm504, 0.0
        %537 = vst.msk [vmem:[#allocation2 + $0x118] sm:$0x1] %vm504, 0.0
        %538 = vst.msk [vmem:[#allocation2 + $0x138] sm:$0x1] %vm504, 0.0
        %539 = vst.msk [vmem:[#allocation2 + $0x158] sm:$0x1] %vm504, 0.0
        %540 = vst.msk [vmem:[#allocation2 + $0x178] sm:$0x1] %vm504, 0.0
        %541 = vst.msk [vmem:[#allocation2 + $0x198] sm:$0x1] %vm504, 0.0
        %542 = vst.msk [vmem:[#allocation2 + $0x1b8] sm:$0x1] %vm504, 0.0
        %543 = vst.msk [vmem:[#allocation2 + $0x1d8] sm:$0x1] %vm504, 0.0
        %544 = vst.msk [vmem:[#allocation2 + $0x1f8] sm:$0x1] %vm504, 0.0
        %545 = vst.msk [vmem:[#allocation2 + $0x218] sm:$0x1] %vm504, 0.0
        %546 = vst.msk [vmem:[#allocation2 + $0x238] sm:$0x1] %vm504, 0.0
        %s547 = scalar_lea.vmem [#allocation2], 32
        %548 = vst.msk [vmem:[%s547 + $0x8] sm:$0xff] %vm500, %v468
        %549 = vst.msk [vmem:[%s547 + $0x10] sm:$0xff] %vm500, %v469
        %550 = vst.msk [vmem:[%s547 + $0x28] sm:$0xff] %vm500, %v470
        %551 = vst.msk [vmem:[%s547 + $0x30] sm:$0xff] %vm500, %v471
        %552 = vst.msk [vmem:[%s547 + $0x48] sm:$0xff] %vm500, %v472
        %553 = vst.msk [vmem:[%s547 + $0x50] sm:$0xff] %vm500, %v473
        %554 = vst.msk [vmem:[%s547 + $0x68] sm:$0xff] %vm500, %v474
        %555 = vst.msk [vmem:[%s547 + $0x70] sm:$0xff] %vm500, %v475
        %556 = vst.msk [vmem:[%s547 + $0x88] sm:$0xff] %vm500, %v476
        %557 = vst.msk [vmem:[%s547 + $0x90] sm:$0xff] %vm500, %v477
        %558 = vst.msk [vmem:[%s547 + $0xa8] sm:$0xff] %vm500, %v478
        %559 = vst.msk [vmem:[%s547 + $0xb0] sm:$0xff] %vm500, %v479
        %560 = vst.msk [vmem:[%s547 + $0xc8] sm:$0xff] %vm500, %v480
        %561 = vst.msk [vmem:[%s547 + $0xd0] sm:$0xff] %vm500, %v481
        %562 = vst.msk [vmem:[%s547 + $0xe8] sm:$0xff] %vm500, %v482
        %563 = vst.msk [vmem:[%s547 + $0xf0] sm:$0xff] %vm500, %v483
        %564 = vst.msk [vmem:[%s547 + $0x108] sm:$0xff] %vm500, %v484
        %565 = vst.msk [vmem:[%s547 + $0x110] sm:$0xff] %vm500, %v485
        %566 = vst.msk [vmem:[%s547 + $0x128] sm:$0xff] %vm500, %v486
        %567 = vst.msk [vmem:[%s547 + $0x130] sm:$0xff] %vm500, %v487
        %568 = vst.msk [vmem:[%s547 + $0x148] sm:$0xff] %vm500, %v488
        %569 = vst.msk [vmem:[%s547 + $0x150] sm:$0xff] %vm500, %v489
        %570 = vst.msk [vmem:[%s547 + $0x168] sm:$0xff] %vm500, %v490
        %571 = vst.msk [vmem:[%s547 + $0x170] sm:$0xff] %vm500, %v491
        %572 = vst.msk [vmem:[%s547 + $0x188] sm:$0xff] %vm500, %v492
        %573 = vst.msk [vmem:[%s547 + $0x190] sm:$0xff] %vm500, %v493
        %574 = vst.msk [vmem:[%s547 + $0x1a8] sm:$0xff] %vm500, %v494
        %575 = vst.msk [vmem:[%s547 + $0x1b0] sm:$0xff] %vm500, %v495
        %576 = vst.msk [vmem:[%s547 + $0x1c8] sm:$0xff] %vm500, %v496
        %577 = vst.msk [vmem:[%s547 + $0x1d0] sm:$0xff] %vm500, %v497
        %578 = vst.msk [vmem:[%s547 + $0x1e8] sm:$0xff] %vm500, %v498
        %579 = vst.msk [vmem:[%s547 + $0x1f0] sm:$0xff] %vm500, %v499
        %v580 = vld [vmem:[#allocation2 + $0x7] sm:$0xff]
        %v581 = vld [vmem:[#allocation2 + $0xf] sm:$0xff]
        %v582 = vld [vmem:[#allocation2 + $0x27] sm:$0xff]
        %v583 = vld [vmem:[#allocation2 + $0x2f] sm:$0xff]
        %v584 = vld [vmem:[#allocation2 + $0x47] sm:$0xff]
        %v585 = vld [vmem:[#allocation2 + $0x4f] sm:$0xff]
        %v586 = vld [vmem:[#allocation2 + $0x67] sm:$0xff]
        %v587 = vld [vmem:[#allocation2 + $0x6f] sm:$0xff]
        %v588 = vld [vmem:[#allocation2 + $0x87] sm:$0xff]
        %v589 = vld [vmem:[#allocation2 + $0x8f] sm:$0xff]
        %v590 = vld [vmem:[#allocation2 + $0xa7] sm:$0xff]
        %v591 = vld [vmem:[#allocation2 + $0xaf] sm:$0xff]
        %v592 = vld [vmem:[#allocation2 + $0xc7] sm:$0xff]
        %v593 = vld [vmem:[#allocation2 + $0xcf] sm:$0xff]
        %v594 = vld [vmem:[#allocation2 + $0xe7] sm:$0xff]
        %v595 = vld [vmem:[#allocation2 + $0xef] sm:$0xff]
        %v596 = vld [vmem:[#allocation2 + $0x107] sm:$0xff]
        %v597 = vld [vmem:[#allocation2 + $0x10f] sm:$0xff]
        %v598 = vld [vmem:[#allocation2 + $0x127] sm:$0xff]
        %v599 = vld [vmem:[#allocation2 + $0x12f] sm:$0xff]
        %v600 = vld [vmem:[#allocation2 + $0x147] sm:$0xff]
        %v601 = vld [vmem:[#allocation2 + $0x14f] sm:$0xff]
        %v602 = vld [vmem:[#allocation2 + $0x167] sm:$0xff]
        %v603 = vld [vmem:[#allocation2 + $0x16f] sm:$0xff]
        %v604 = vld [vmem:[#allocation2 + $0x187] sm:$0xff]
        %v605 = vld [vmem:[#allocation2 + $0x18f] sm:$0xff]
        %v606 = vld [vmem:[#allocation2 + $0x1a7] sm:$0xff]
        %v607 = vld [vmem:[#allocation2 + $0x1af] sm:$0xff]
        %v608 = vld [vmem:[#allocation2 + $0x1c7] sm:$0xff]
        %v609 = vld [vmem:[#allocation2 + $0x1cf] sm:$0xff]
        %v610 = vld [vmem:[#allocation2 + $0x1e7] sm:$0xff]
        %v611 = vld [vmem:[#allocation2 + $0x1ef] sm:$0xff]
        %v612 = vld [vmem:[%s3] sm:$0xf]
        %v613 = vld [vmem:[#allocation2 + $0x8] sm:$0xff]
        %v614 = vld [vmem:[#allocation2 + $0x10] sm:$0xff]
        %v615 = vld [vmem:[#allocation2 + $0x28] sm:$0xff]
        %v616 = vld [vmem:[#allocation2 + $0x30] sm:$0xff]
        %v617 = vld [vmem:[#allocation2 + $0x48] sm:$0xff]
        %v618 = vld [vmem:[#allocation2 + $0x50] sm:$0xff]
        %v619 = vld [vmem:[#allocation2 + $0x68] sm:$0xff]
        %v620 = vld [vmem:[#allocation2 + $0x70] sm:$0xff]
        %v621 = vld [vmem:[#allocation2 + $0x88] sm:$0xff]
        %v622 = vld [vmem:[#allocation2 + $0x90] sm:$0xff]
        %v623 = vld [vmem:[#allocation2 + $0xa8] sm:$0xff]
        %v624 = vld [vmem:[#allocation2 + $0xb0] sm:$0xff]
        %v625 = vld [vmem:[#allocation2 + $0xc8] sm:$0xff]
        %v626 = vld [vmem:[#allocation2 + $0xd0] sm:$0xff]
        %v627 = vld [vmem:[#allocation2 + $0xe8] sm:$0xff]
        %v628 = vld [vmem:[#allocation2 + $0xf0] sm:$0xff]
        %v629 = vld [vmem:[#allocation2 + $0x108] sm:$0xff]
        %v630 = vld [vmem:[#allocation2 + $0x110] sm:$0xff]
        %v631 = vld [vmem:[#allocation2 + $0x128] sm:$0xff]
        %v632 = vld [vmem:[#allocation2 + $0x130] sm:$0xff]
        %v633 = vld [vmem:[#allocation2 + $0x148] sm:$0xff]
        %v634 = vld [vmem:[#allocation2 + $0x150] sm:$0xff]
        %v635 = vld [vmem:[#allocation2 + $0x168] sm:$0xff]
        %v636 = vld [vmem:[#allocation2 + $0x170] sm:$0xff]
        %v637 = vld [vmem:[#allocation2 + $0x188] sm:$0xff]
        %v638 = vld [vmem:[#allocation2 + $0x190] sm:$0xff]
        %v639 = vld [vmem:[#allocation2 + $0x1a8] sm:$0xff]
        %v640 = vld [vmem:[#allocation2 + $0x1b0] sm:$0xff]
        %v641 = vld [vmem:[#allocation2 + $0x1c8] sm:$0xff]
        %v642 = vld [vmem:[#allocation2 + $0x1d0] sm:$0xff]
        %v643 = vld [vmem:[#allocation2 + $0x1e8] sm:$0xff]
        %v644 = vld [vmem:[#allocation2 + $0x1f0] sm:$0xff]
        %s645 = scalar_lea.vmem %s3, 4
        %v646 = vld [vmem:[%s645] sm:$0xf]
        %v648 = vsel %vm500, %v613, 0
        %v651 = vsel %vm500, %v614, 0
        %v654 = vsel %vm500, %v615, 0
        %v657 = vsel %vm500, %v616, 0
        %v660 = vsel %vm500, %v617, 0
        %v663 = vsel %vm500, %v618, 0
        %v666 = vsel %vm500, %v619, 0
        %v669 = vsel %vm500, %v620, 0
        %v672 = vsel %vm500, %v621, 0
        %v675 = vsel %vm500, %v622, 0
        %v678 = vsel %vm500, %v623, 0
        %v681 = vsel %vm500, %v624, 0
        %v684 = vsel %vm500, %v625, 0
        %v687 = vsel %vm500, %v626, 0
        %v690 = vsel %vm500, %v627, 0
        %v693 = vsel %vm500, %v628, 0
        %v696 = vsel %vm500, %v629, 0
        %v699 = vsel %vm500, %v630, 0
        %v702 = vsel %vm500, %v631, 0
        %v705 = vsel %vm500, %v632, 0
        %v708 = vsel %vm500, %v633, 0
        %v711 = vsel %vm500, %v634, 0
        %v714 = vsel %vm500, %v635, 0
        %v717 = vsel %vm500, %v636, 0
        %v720 = vsel %vm500, %v637, 0
        %v723 = vsel %vm500, %v638, 0
        %v726 = vsel %vm500, %v639, 0
        %v729 = vsel %vm500, %v640, 0
        %v732 = vsel %vm500, %v641, 0
        %v735 = vsel %vm500, %v642, 0
        %v738 = vsel %vm500, %v643, 0
        %v741 = vsel %vm500, %v644, 0
        %vm743 = vcmask 1043456
        %v745 = vsel %vm743, %v646, 0
        %747 = vmatprep.subr.mxu0 0.0
        %748 = vmatpush1.msra.mxu0 0.0
        %749 = vmatprep.subr.mxu0 0.0
        %750 = vmatpush1.msra.mxu0 0.0
        %751 = vmatprep.subr.mxu0 0.0
        %752 = vmatpush1.msra.mxu0 0.0
        %753 = vmatprep.subr.mxu0 0.0
        %754 = vmatpush1.msra.mxu0 0.0
        %755 = vmatprep.subr.mxu0 0.0
        %756 = vmatpush1.msra.mxu0 0.0
        %757 = vmatprep.subr.mxu0 0.0
        %758 = vmatpush1.msra.mxu0 0.0
        %759 = vmatprep.subr.mxu0 0.0
        %760 = vmatpush1.msra.mxu0 0.0
        %761 = vmatprep.subr.mxu0 0.0
        %762 = vmatpush1.msra.mxu0 0.0
        %763 = vmatprep.subr.mxu0 0.0
        %764 = vmatpush1.msra.mxu0 0.0
        %765 = vmatprep.subr.mxu0 0.0
        %766 = vmatpush1.msra.mxu0 0.0
        %767 = vmatprep.subr.mxu0 0.0
        %768 = vmatpush1.msra.mxu0 0.0
        %769 = vmatprep.subr.mxu0 0.0
        %770 = vmatpush1.msra.mxu0 0.0
        %771 = vmatprep.subr.mxu0 0.0
        %772 = vmatpush1.msra.mxu0 0.0
        %773 = vmatprep.subr.mxu0 0.0
        %774 = vmatpush1.msra.mxu0 0.0
        %775 = vmatprep.subr.mxu0 0.0
        %776 = vmatpush1.msra.mxu0 0.0
        %777 = vmatprep.subr.mxu0 0.0
        %778 = vmatpush1.msra.mxu0 %v745
        %779 = vmatprep.subr.mxu0 0.0
        %780 = vmatpush2.msra.mxu0 0.0
        %781 = vmatprep.subr.mxu0 0.0
        %782 = vmatpush2.msra.mxu0 0.0
        %783 = vmatprep.subr.mxu0 0.0
        %784 = vmatpush2.msra.mxu0 0.0
        %785 = vmatprep.subr.mxu0 0.0
        %786 = vmatpush2.msra.mxu0 0.0
        %787 = vmatprep.subr.mxu0 0.0
        %788 = vmatpush2.msra.mxu0 0.0
        %789 = vmatprep.subr.mxu0 0.0
        %790 = vmatpush2.msra.mxu0 0.0
        %791 = vmatprep.subr.mxu0 0.0
        %792 = vmatpush2.msra.mxu0 0.0
        %793 = vmatprep.subr.mxu0 0.0
        %794 = vmatpush2.msra.mxu0 0.0
        %795 = vmatprep.subr.mxu0 0.0
        %796 = vmatpush2.msra.mxu0 0.0
        %797 = vmatprep.subr.mxu0 0.0
        %798 = vmatpush2.msra.mxu0 0.0
        %799 = vmatprep.subr.mxu0 0.0
        %800 = vmatpush2.msra.mxu0 0.0
        %801 = vmatprep.subr.mxu0 0.0
        %802 = vmatpush2.msra.mxu0 0.0
        %803 = vmatprep.subr.mxu0 0.0
        %804 = vmatpush2.msra.mxu0 0.0
        %805 = vmatprep.subr.mxu0 0.0
        %806 = vmatpush2.msra.mxu0 0.0
        %807 = vmatprep.subr.mxu0 0.0
        %808 = vmatpush2.msra.mxu0 0.0
        %809 = vmatprep.subr.mxu0 0.0
        %810 = vmatpush2.msra.mxu0 0.0
        %811 = vmatprep.mubr.f32.mxu0 0.0
        %812 = vmatmul.mubr.f32.gmra.mxu0 %v648
        %v813 = vpop.f32.mrf.mxu0
        %v814 = vadd.f32 0.0, %v813
        %v815 = vpop.f32.mrf.mxu0
        %816 = vmatprep.mubr.f32.mxu0 0.0
        %817 = vmatmul.mubr.f32.gmra.mxu0 %v651
        %v818 = vpop.f32.mrf.mxu0
        %v819 = vadd.f32 0.0, %v818
        %v820 = vpop.f32.mrf.mxu0
        %821 = vmatprep.mubr.f32.mxu0 0.0
        %822 = vmatmul.mubr.f32.gmra.mxu0 %v654
        %v823 = vpop.f32.mrf.mxu0
        %v824 = vadd.f32 0.0, %v823
        %v825 = vpop.f32.mrf.mxu0
        %826 = vmatprep.mubr.f32.mxu0 0.0
        %827 = vmatmul.mubr.f32.gmra.mxu0 %v657
        %v828 = vpop.f32.mrf.mxu0
        %v829 = vadd.f32 0.0, %v828
        %v830 = vpop.f32.mrf.mxu0
        %831 = vmatprep.mubr.f32.mxu0 0.0
        %832 = vmatmul.mubr.f32.gmra.mxu0 %v660
        %v833 = vpop.f32.mrf.mxu0
        %v834 = vadd.f32 0.0, %v833
        %v835 = vpop.f32.mrf.mxu0
        %836 = vmatprep.mubr.f32.mxu0 0.0
        %837 = vmatmul.mubr.f32.gmra.mxu0 %v663
        %v838 = vpop.f32.mrf.mxu0
        %v839 = vadd.f32 0.0, %v838
        %v840 = vpop.f32.mrf.mxu0
        %841 = vmatprep.mubr.f32.mxu0 0.0
        %842 = vmatmul.mubr.f32.gmra.mxu0 %v666
        %v843 = vpop.f32.mrf.mxu0
        %v844 = vadd.f32 0.0, %v843
        %v845 = vpop.f32.mrf.mxu0
        %846 = vmatprep.mubr.f32.mxu0 0.0
        %847 = vmatmul.mubr.f32.gmra.mxu0 %v669
        %v848 = vpop.f32.mrf.mxu0
        %v849 = vadd.f32 0.0, %v848
        %v850 = vpop.f32.mrf.mxu0
        %851 = vmatprep.mubr.f32.mxu0 0.0
        %852 = vmatmul.mubr.f32.gmra.mxu0 %v672
        %v853 = vpop.f32.mrf.mxu0
        %v854 = vadd.f32 0.0, %v853
        %v855 = vpop.f32.mrf.mxu0
        %856 = vmatprep.mubr.f32.mxu0 0.0
        %857 = vmatmul.mubr.f32.gmra.mxu0 %v675
        %v858 = vpop.f32.mrf.mxu0
        %v859 = vadd.f32 0.0, %v858
        %v860 = vpop.f32.mrf.mxu0
        %861 = vmatprep.mubr.f32.mxu0 0.0
        %862 = vmatmul.mubr.f32.gmra.mxu0 %v678
        %v863 = vpop.f32.mrf.mxu0
        %v864 = vadd.f32 0.0, %v863
        %v865 = vpop.f32.mrf.mxu0
        %866 = vmatprep.mubr.f32.mxu0 0.0
        %867 = vmatmul.mubr.f32.gmra.mxu0 %v681
        %v868 = vpop.f32.mrf.mxu0
        %v869 = vadd.f32 0.0, %v868
        %v870 = vpop.f32.mrf.mxu0
        %871 = vmatprep.mubr.f32.mxu0 0.0
        %872 = vmatmul.mubr.f32.gmra.mxu0 %v684
        %v873 = vpop.f32.mrf.mxu0
        %v874 = vadd.f32 0.0, %v873
        %v875 = vpop.f32.mrf.mxu0
        %876 = vmatprep.mubr.f32.mxu0 0.0
        %877 = vmatmul.mubr.f32.gmra.mxu0 %v687
        %v878 = vpop.f32.mrf.mxu0
        %v879 = vadd.f32 0.0, %v878
        %v880 = vpop.f32.mrf.mxu0
        %881 = vmatprep.mubr.f32.mxu0 0.0
        %882 = vmatmul.mubr.f32.gmra.mxu0 %v690
        %v883 = vpop.f32.mrf.mxu0
        %v884 = vadd.f32 0.0, %v883
        %v885 = vpop.f32.mrf.mxu0
        %886 = vmatprep.mubr.f32.mxu0 0.0
        %887 = vmatmul.mubr.f32.gmra.mxu0 %v693
        %v888 = vpop.f32.mrf.mxu0
        %v889 = vadd.f32 0.0, %v888
        %v890 = vpop.f32.mrf.mxu0
        %891 = vmatprep.mubr.f32.mxu0 0.0
        %892 = vmatmul.mubr.f32.gmra.mxu0 %v696
        %v893 = vpop.f32.mrf.mxu0
        %v894 = vadd.f32 0.0, %v893
        %v895 = vpop.f32.mrf.mxu0
        %896 = vmatprep.mubr.f32.mxu0 0.0
        %897 = vmatmul.mubr.f32.gmra.mxu0 %v699
        %v898 = vpop.f32.mrf.mxu0
        %v899 = vadd.f32 0.0, %v898
        %v900 = vpop.f32.mrf.mxu0
        %901 = vmatprep.mubr.f32.mxu0 0.0
        %902 = vmatmul.mubr.f32.gmra.mxu0 %v702
        %v903 = vpop.f32.mrf.mxu0
        %v904 = vadd.f32 0.0, %v903
        %v905 = vpop.f32.mrf.mxu0
        %906 = vmatprep.mubr.f32.mxu0 0.0
        %907 = vmatmul.mubr.f32.gmra.mxu0 %v705
        %v908 = vpop.f32.mrf.mxu0
        %v909 = vadd.f32 0.0, %v908
        %v910 = vpop.f32.mrf.mxu0
        %911 = vmatprep.mubr.f32.mxu0 0.0
        %912 = vmatmul.mubr.f32.gmra.mxu0 %v708
        %v913 = vpop.f32.mrf.mxu0
        %v914 = vadd.f32 0.0, %v913
        %v915 = vpop.f32.mrf.mxu0
        %916 = vmatprep.mubr.f32.mxu0 0.0
        %917 = vmatmul.mubr.f32.gmra.mxu0 %v711
        %v918 = vpop.f32.mrf.mxu0
        %v919 = vadd.f32 0.0, %v918
        %v920 = vpop.f32.mrf.mxu0
        %921 = vmatprep.mubr.f32.mxu0 0.0
        %922 = vmatmul.mubr.f32.gmra.mxu0 %v714
        %v923 = vpop.f32.mrf.mxu0
        %v924 = vadd.f32 0.0, %v923
        %v925 = vpop.f32.mrf.mxu0
        %926 = vmatprep.mubr.f32.mxu0 0.0
        %927 = vmatmul.mubr.f32.gmra.mxu0 %v717
        %v928 = vpop.f32.mrf.mxu0
        %v929 = vadd.f32 0.0, %v928
        %v930 = vpop.f32.mrf.mxu0
        %931 = vmatprep.mubr.f32.mxu0 0.0
        %932 = vmatmul.mubr.f32.gmra.mxu0 %v720
        %v933 = vpop.f32.mrf.mxu0
        %v934 = vadd.f32 0.0, %v933
        %v935 = vpop.f32.mrf.mxu0
        %936 = vmatprep.mubr.f32.mxu0 0.0
        %937 = vmatmul.mubr.f32.gmra.mxu0 %v723
        %v938 = vpop.f32.mrf.mxu0
        %v939 = vadd.f32 0.0, %v938
        %v940 = vpop.f32.mrf.mxu0
        %941 = vmatprep.mubr.f32.mxu0 0.0
        %942 = vmatmul.mubr.f32.gmra.mxu0 %v726
        %v943 = vpop.f32.mrf.mxu0
        %v944 = vadd.f32 0.0, %v943
        %v945 = vpop.f32.mrf.mxu0
        %946 = vmatprep.mubr.f32.mxu0 0.0
        %947 = vmatmul.mubr.f32.gmra.mxu0 %v729
        %v948 = vpop.f32.mrf.mxu0
        %v949 = vadd.f32 0.0, %v948
        %v950 = vpop.f32.mrf.mxu0
        %951 = vmatprep.mubr.f32.mxu0 0.0
        %952 = vmatmul.mubr.f32.gmra.mxu0 %v732
        %v953 = vpop.f32.mrf.mxu0
        %v954 = vadd.f32 0.0, %v953
        %v955 = vpop.f32.mrf.mxu0
        %956 = vmatprep.mubr.f32.mxu0 0.0
        %957 = vmatmul.mubr.f32.gmra.mxu0 %v735
        %v958 = vpop.f32.mrf.mxu0
        %v959 = vadd.f32 0.0, %v958
        %v960 = vpop.f32.mrf.mxu0
        %961 = vmatprep.mubr.f32.mxu0 0.0
        %962 = vmatmul.mubr.f32.gmra.mxu0 %v738
        %v963 = vpop.f32.mrf.mxu0
        %v964 = vadd.f32 0.0, %v963
        %v965 = vpop.f32.mrf.mxu0
        %966 = vmatprep.mubr.f32.mxu0 0.0
        %967 = vmatmul.mubr.f32.gmra.mxu0 %v741
        %v968 = vpop.f32.mrf.mxu0
        %v969 = vadd.f32 0.0, %v968
        %v970 = vpop.f32.mrf.mxu0
        %971 = vdwg.mxu0
        %v973 = vsel %vm500, %v580, 0
        %v976 = vsel %vm500, %v581, 0
        %v979 = vsel %vm500, %v582, 0
        %v982 = vsel %vm500, %v583, 0
        %v985 = vsel %vm500, %v584, 0
        %v988 = vsel %vm500, %v585, 0
        %v991 = vsel %vm500, %v586, 0
        %v994 = vsel %vm500, %v587, 0
        %v997 = vsel %vm500, %v588, 0
        %v1000 = vsel %vm500, %v589, 0
        %v1003 = vsel %vm500, %v590, 0
        %v1006 = vsel %vm500, %v591, 0
        %v1009 = vsel %vm500, %v592, 0
        %v1012 = vsel %vm500, %v593, 0
        %v1015 = vsel %vm500, %v594, 0
        %v1018 = vsel %vm500, %v595, 0
        %v1021 = vsel %vm500, %v596, 0
        %v1024 = vsel %vm500, %v597, 0
        %v1027 = vsel %vm500, %v598, 0
        %v1030 = vsel %vm500, %v599, 0
        %v1033 = vsel %vm500, %v600, 0
        %v1036 = vsel %vm500, %v601, 0
        %v1039 = vsel %vm500, %v602, 0
        %v1042 = vsel %vm500, %v603, 0
        %v1045 = vsel %vm500, %v604, 0
        %v1048 = vsel %vm500, %v605, 0
        %v1051 = vsel %vm500, %v606, 0
        %v1054 = vsel %vm500, %v607, 0
        %v1057 = vsel %vm500, %v608, 0
        %v1060 = vsel %vm500, %v609, 0
        %v1063 = vsel %vm500, %v610, 0
        %v1066 = vsel %vm500, %v611, 0
        %v1069 = vsel %vm743, %v612, 0
        %1071 = vmatprep.subr.mxu0 0.0
        %1072 = vmatpush1.msra.mxu0 0.0
        %1073 = vmatprep.subr.mxu0 0.0
        %1074 = vmatpush1.msra.mxu0 0.0
        %1075 = vmatprep.subr.mxu0 0.0
        %1076 = vmatpush1.msra.mxu0 0.0
        %1077 = vmatprep.subr.mxu0 0.0
        %1078 = vmatpush1.msra.mxu0 0.0
        %1079 = vmatprep.subr.mxu0 0.0
        %1080 = vmatpush1.msra.mxu0 0.0
        %1081 = vmatprep.subr.mxu0 0.0
        %1082 = vmatpush1.msra.mxu0 0.0
        %1083 = vmatprep.subr.mxu0 0.0
        %1084 = vmatpush1.msra.mxu0 0.0
        %1085 = vmatprep.subr.mxu0 0.0
        %1086 = vmatpush1.msra.mxu0 0.0
        %1087 = vmatprep.subr.mxu0 0.0
        %1088 = vmatpush1.msra.mxu0 0.0
        %1089 = vmatprep.subr.mxu0 0.0
        %1090 = vmatpush1.msra.mxu0 0.0
        %1091 = vmatprep.subr.mxu0 0.0
        %1092 = vmatpush1.msra.mxu0 0.0
        %1093 = vmatprep.subr.mxu0 0.0
        %1094 = vmatpush1.msra.mxu0 0.0
        %1095 = vmatprep.subr.mxu0 0.0
        %1096 = vmatpush1.msra.mxu0 0.0
        %1097 = vmatprep.subr.mxu0 0.0
        %1098 = vmatpush1.msra.mxu0 0.0
        %1099 = vmatprep.subr.mxu0 0.0
        %1100 = vmatpush1.msra.mxu0 0.0
        %1101 = vmatprep.subr.mxu0 0.0
        %1102 = vmatpush1.msra.mxu0 %v1069
        %1103 = vmatprep.subr.mxu0 0.0
        %1104 = vmatpush2.msra.mxu0 0.0
        %1105 = vmatprep.subr.mxu0 0.0
        %1106 = vmatpush2.msra.mxu0 0.0
        %1107 = vmatprep.subr.mxu0 0.0
        %1108 = vmatpush2.msra.mxu0 0.0
        %1109 = vmatprep.subr.mxu0 0.0
        %1110 = vmatpush2.msra.mxu0 0.0
        %1111 = vmatprep.subr.mxu0 0.0
        %1112 = vmatpush2.msra.mxu0 0.0
        %1113 = vmatprep.subr.mxu0 0.0
        %1114 = vmatpush2.msra.mxu0 0.0
        %1115 = vmatprep.subr.mxu0 0.0
        %1116 = vmatpush2.msra.mxu0 0.0
        %1117 = vmatprep.subr.mxu0 0.0
        %1118 = vmatpush2.msra.mxu0 0.0
        %1119 = vmatprep.subr.mxu0 0.0
        %1120 = vmatpush2.msra.mxu0 0.0
        %1121 = vmatprep.subr.mxu0 0.0
        %1122 = vmatpush2.msra.mxu0 0.0
        %1123 = vmatprep.subr.mxu0 0.0
        %1124 = vmatpush2.msra.mxu0 0.0
        %1125 = vmatprep.subr.mxu0 0.0
        %1126 = vmatpush2.msra.mxu0 0.0
        %1127 = vmatprep.subr.mxu0 0.0
        %1128 = vmatpush2.msra.mxu0 0.0
        %1129 = vmatprep.subr.mxu0 0.0
        %1130 = vmatpush2.msra.mxu0 0.0
        %1131 = vmatprep.subr.mxu0 0.0
        %1132 = vmatpush2.msra.mxu0 0.0
        %1133 = vmatprep.subr.mxu0 0.0
        %1134 = vmatpush2.msra.mxu0 0.0
        %1135 = vmatprep.mubr.f32.mxu0 0.0
        %1136 = vmatmul.mubr.f32.gmra.mxu0 %v973
        %v1137 = vpop.f32.mrf.mxu0
        %v1138 = vadd.f32 %v814, %v1137
        %v1139 = vpop.f32.mrf.mxu0
        %1140 = vmatprep.mubr.f32.mxu0 0.0
        %1141 = vmatmul.mubr.f32.gmra.mxu0 %v976
        %v1142 = vpop.f32.mrf.mxu0
        %v1143 = vadd.f32 %v819, %v1142
        %v1144 = vpop.f32.mrf.mxu0
        %1145 = vmatprep.mubr.f32.mxu0 0.0
        %1146 = vmatmul.mubr.f32.gmra.mxu0 %v979
        %v1147 = vpop.f32.mrf.mxu0
        %v1148 = vadd.f32 %v824, %v1147
        %v1149 = vpop.f32.mrf.mxu0
        %1150 = vmatprep.mubr.f32.mxu0 0.0
        %1151 = vmatmul.mubr.f32.gmra.mxu0 %v982
        %v1152 = vpop.f32.mrf.mxu0
        %v1153 = vadd.f32 %v829, %v1152
        %v1154 = vpop.f32.mrf.mxu0
        %1155 = vmatprep.mubr.f32.mxu0 0.0
        %1156 = vmatmul.mubr.f32.gmra.mxu0 %v985
        %v1157 = vpop.f32.mrf.mxu0
        %v1158 = vadd.f32 %v834, %v1157
        %v1159 = vpop.f32.mrf.mxu0
        %1160 = vmatprep.mubr.f32.mxu0 0.0
        %1161 = vmatmul.mubr.f32.gmra.mxu0 %v988
        %v1162 = vpop.f32.mrf.mxu0
        %v1163 = vadd.f32 %v839, %v1162
        %v1164 = vpop.f32.mrf.mxu0
        %1165 = vmatprep.mubr.f32.mxu0 0.0
        %1166 = vmatmul.mubr.f32.gmra.mxu0 %v991
        %v1167 = vpop.f32.mrf.mxu0
        %v1168 = vadd.f32 %v844, %v1167
        %v1169 = vpop.f32.mrf.mxu0
        %1170 = vmatprep.mubr.f32.mxu0 0.0
        %1171 = vmatmul.mubr.f32.gmra.mxu0 %v994
        %v1172 = vpop.f32.mrf.mxu0
        %v1173 = vadd.f32 %v849, %v1172
        %v1174 = vpop.f32.mrf.mxu0
        %1175 = vmatprep.mubr.f32.mxu0 0.0
        %1176 = vmatmul.mubr.f32.gmra.mxu0 %v997
        %v1177 = vpop.f32.mrf.mxu0
        %v1178 = vadd.f32 %v854, %v1177
        %v1179 = vpop.f32.mrf.mxu0
        %1180 = vmatprep.mubr.f32.mxu0 0.0
        %1181 = vmatmul.mubr.f32.gmra.mxu0 %v1000
        %v1182 = vpop.f32.mrf.mxu0
        %v1183 = vadd.f32 %v859, %v1182
        %v1184 = vpop.f32.mrf.mxu0
        %1185 = vmatprep.mubr.f32.mxu0 0.0
        %1186 = vmatmul.mubr.f32.gmra.mxu0 %v1003
        %v1187 = vpop.f32.mrf.mxu0
        %v1188 = vadd.f32 %v864, %v1187
        %v1189 = vpop.f32.mrf.mxu0
        %1190 = vmatprep.mubr.f32.mxu0 0.0
        %1191 = vmatmul.mubr.f32.gmra.mxu0 %v1006
        %v1192 = vpop.f32.mrf.mxu0
        %v1193 = vadd.f32 %v869, %v1192
        %v1194 = vpop.f32.mrf.mxu0
        %1195 = vmatprep.mubr.f32.mxu0 0.0
        %1196 = vmatmul.mubr.f32.gmra.mxu0 %v1009
        %v1197 = vpop.f32.mrf.mxu0
        %v1198 = vadd.f32 %v874, %v1197
        %v1199 = vpop.f32.mrf.mxu0
        %1200 = vmatprep.mubr.f32.mxu0 0.0
        %1201 = vmatmul.mubr.f32.gmra.mxu0 %v1012
        %v1202 = vpop.f32.mrf.mxu0
        %v1203 = vadd.f32 %v879, %v1202
        %v1204 = vpop.f32.mrf.mxu0
        %1205 = vmatprep.mubr.f32.mxu0 0.0
        %1206 = vmatmul.mubr.f32.gmra.mxu0 %v1015
        %v1207 = vpop.f32.mrf.mxu0
        %v1208 = vadd.f32 %v884, %v1207
        %v1209 = vpop.f32.mrf.mxu0
        %1210 = vmatprep.mubr.f32.mxu0 0.0
        %1211 = vmatmul.mubr.f32.gmra.mxu0 %v1018
        %v1212 = vpop.f32.mrf.mxu0
        %v1213 = vadd.f32 %v889, %v1212
        %v1214 = vpop.f32.mrf.mxu0
        %1215 = vmatprep.mubr.f32.mxu0 0.0
        %1216 = vmatmul.mubr.f32.gmra.mxu0 %v1021
        %v1217 = vpop.f32.mrf.mxu0
        %v1218 = vadd.f32 %v894, %v1217
        %v1219 = vpop.f32.mrf.mxu0
        %1220 = vmatprep.mubr.f32.mxu0 0.0
        %1221 = vmatmul.mubr.f32.gmra.mxu0 %v1024
        %v1222 = vpop.f32.mrf.mxu0
        %v1223 = vadd.f32 %v899, %v1222
        %v1224 = vpop.f32.mrf.mxu0
        %1225 = vmatprep.mubr.f32.mxu0 0.0
        %1226 = vmatmul.mubr.f32.gmra.mxu0 %v1027
        %v1227 = vpop.f32.mrf.mxu0
        %v1228 = vadd.f32 %v904, %v1227
        %v1229 = vpop.f32.mrf.mxu0
        %1230 = vmatprep.mubr.f32.mxu0 0.0
        %1231 = vmatmul.mubr.f32.gmra.mxu0 %v1030
        %v1232 = vpop.f32.mrf.mxu0
        %v1233 = vadd.f32 %v909, %v1232
        %v1234 = vpop.f32.mrf.mxu0
        %1235 = vmatprep.mubr.f32.mxu0 0.0
        %1236 = vmatmul.mubr.f32.gmra.mxu0 %v1033
        %v1237 = vpop.f32.mrf.mxu0
        %v1238 = vadd.f32 %v914, %v1237
        %v1239 = vpop.f32.mrf.mxu0
        %1240 = vmatprep.mubr.f32.mxu0 0.0
        %1241 = vmatmul.mubr.f32.gmra.mxu0 %v1036
        %v1242 = vpop.f32.mrf.mxu0
        %v1243 = vadd.f32 %v919, %v1242
        %v1244 = vpop.f32.mrf.mxu0
        %1245 = vmatprep.mubr.f32.mxu0 0.0
        %1246 = vmatmul.mubr.f32.gmra.mxu0 %v1039
        %v1247 = vpop.f32.mrf.mxu0
        %v1248 = vadd.f32 %v924, %v1247
        %v1249 = vpop.f32.mrf.mxu0
        %1250 = vmatprep.mubr.f32.mxu0 0.0
        %1251 = vmatmul.mubr.f32.gmra.mxu0 %v1042
        %v1252 = vpop.f32.mrf.mxu0
        %v1253 = vadd.f32 %v929, %v1252
        %v1254 = vpop.f32.mrf.mxu0
        %1255 = vmatprep.mubr.f32.mxu0 0.0
        %1256 = vmatmul.mubr.f32.gmra.mxu0 %v1045
        %v1257 = vpop.f32.mrf.mxu0
        %v1258 = vadd.f32 %v934, %v1257
        %v1259 = vpop.f32.mrf.mxu0
        %1260 = vmatprep.mubr.f32.mxu0 0.0
        %1261 = vmatmul.mubr.f32.gmra.mxu0 %v1048
        %v1262 = vpop.f32.mrf.mxu0
        %v1263 = vadd.f32 %v939, %v1262
        %v1264 = vpop.f32.mrf.mxu0
        %1265 = vmatprep.mubr.f32.mxu0 0.0
        %1266 = vmatmul.mubr.f32.gmra.mxu0 %v1051
        %v1267 = vpop.f32.mrf.mxu0
        %v1268 = vadd.f32 %v944, %v1267
        %v1269 = vpop.f32.mrf.mxu0
        %1270 = vmatprep.mubr.f32.mxu0 0.0
        %1271 = vmatmul.mubr.f32.gmra.mxu0 %v1054
        %v1272 = vpop.f32.mrf.mxu0
        %v1273 = vadd.f32 %v949, %v1272
        %v1274 = vpop.f32.mrf.mxu0
        %1275 = vmatprep.mubr.f32.mxu0 0.0
        %1276 = vmatmul.mubr.f32.gmra.mxu0 %v1057
        %v1277 = vpop.f32.mrf.mxu0
        %v1278 = vadd.f32 %v954, %v1277
        %v1279 = vpop.f32.mrf.mxu0
        %1280 = vmatprep.mubr.f32.mxu0 0.0
        %1281 = vmatmul.mubr.f32.gmra.mxu0 %v1060
        %v1282 = vpop.f32.mrf.mxu0
        %v1283 = vadd.f32 %v959, %v1282
        %v1284 = vpop.f32.mrf.mxu0
        %1285 = vmatprep.mubr.f32.mxu0 0.0
        %1286 = vmatmul.mubr.f32.gmra.mxu0 %v1063
        %v1287 = vpop.f32.mrf.mxu0
        %v1288 = vadd.f32 %v964, %v1287
        %v1289 = vpop.f32.mrf.mxu0
        %1290 = vmatprep.mubr.f32.mxu0 0.0
        %1291 = vmatmul.mubr.f32.gmra.mxu0 %v1066
        %v1292 = vpop.f32.mrf.mxu0
        %v1293 = vadd.f32 %v969, %v1292
        %v1294 = vpop.f32.mrf.mxu0
        %1295 = vdwg.mxu0
        %v1296 = vld [vmem:[#allocation2 + $0x9] sm:$0xff]
        %v1297 = vld [vmem:[#allocation2 + $0x11] sm:$0xff]
        %v1298 = vld [vmem:[#allocation2 + $0x29] sm:$0xff]
        %v1299 = vld [vmem:[#allocation2 + $0x31] sm:$0xff]
        %v1300 = vld [vmem:[#allocation2 + $0x49] sm:$0xff]
        %v1301 = vld [vmem:[#allocation2 + $0x51] sm:$0xff]
        %v1302 = vld [vmem:[#allocation2 + $0x69] sm:$0xff]
        %v1303 = vld [vmem:[#allocation2 + $0x71] sm:$0xff]
        %v1304 = vld [vmem:[#allocation2 + $0x89] sm:$0xff]
        %v1305 = vld [vmem:[#allocation2 + $0x91] sm:$0xff]
        %v1306 = vld [vmem:[#allocation2 + $0xa9] sm:$0xff]
        %v1307 = vld [vmem:[#allocation2 + $0xb1] sm:$0xff]
        %v1308 = vld [vmem:[#allocation2 + $0xc9] sm:$0xff]
        %v1309 = vld [vmem:[#allocation2 + $0xd1] sm:$0xff]
        %v1310 = vld [vmem:[#allocation2 + $0xe9] sm:$0xff]
        %v1311 = vld [vmem:[#allocation2 + $0xf1] sm:$0xff]
        %v1312 = vld [vmem:[#allocation2 + $0x109] sm:$0xff]
        %v1313 = vld [vmem:[#allocation2 + $0x111] sm:$0xff]
        %v1314 = vld [vmem:[#allocation2 + $0x129] sm:$0xff]
        %v1315 = vld [vmem:[#allocation2 + $0x131] sm:$0xff]
        %v1316 = vld [vmem:[#allocation2 + $0x149] sm:$0xff]
        %v1317 = vld [vmem:[#allocation2 + $0x151] sm:$0xff]
        %v1318 = vld [vmem:[#allocation2 + $0x169] sm:$0xff]
        %v1319 = vld [vmem:[#allocation2 + $0x171] sm:$0xff]
        %v1320 = vld [vmem:[#allocation2 + $0x189] sm:$0xff]
        %v1321 = vld [vmem:[#allocation2 + $0x191] sm:$0xff]
        %v1322 = vld [vmem:[#allocation2 + $0x1a9] sm:$0xff]
        %v1323 = vld [vmem:[#allocation2 + $0x1b1] sm:$0xff]
        %v1324 = vld [vmem:[#allocation2 + $0x1c9] sm:$0xff]
        %v1325 = vld [vmem:[#allocation2 + $0x1d1] sm:$0xff]
        %v1326 = vld [vmem:[#allocation2 + $0x1e9] sm:$0xff]
        %v1327 = vld [vmem:[#allocation2 + $0x1f1] sm:$0xff]
        %s1328 = scalar_lea.vmem %s3, 8
        %v1329 = vld [vmem:[%s1328] sm:$0xf]
        %v1331 = vsel %vm500, %v1296, 0
        %v1334 = vsel %vm500, %v1297, 0
        %v1337 = vsel %vm500, %v1298, 0
        %v1340 = vsel %vm500, %v1299, 0
        %v1343 = vsel %vm500, %v1300, 0
        %v1346 = vsel %vm500, %v1301, 0
        %v1349 = vsel %vm500, %v1302, 0
        %v1352 = vsel %vm500, %v1303, 0
        %v1355 = vsel %vm500, %v1304, 0
        %v1358 = vsel %vm500, %v1305, 0
        %v1361 = vsel %vm500, %v1306, 0
        %v1364 = vsel %vm500, %v1307, 0
        %v1367 = vsel %vm500, %v1308, 0
        %v1370 = vsel %vm500, %v1309, 0
        %v1373 = vsel %vm500, %v1310, 0
        %v1376 = vsel %vm500, %v1311, 0
        %v1379 = vsel %vm500, %v1312, 0
        %v1382 = vsel %vm500, %v1313, 0
        %v1385 = vsel %vm500, %v1314, 0
        %v1388 = vsel %vm500, %v1315, 0
        %v1391 = vsel %vm500, %v1316, 0
        %v1394 = vsel %vm500, %v1317, 0
        %v1397 = vsel %vm500, %v1318, 0
        %v1400 = vsel %vm500, %v1319, 0
        %v1403 = vsel %vm500, %v1320, 0
        %v1406 = vsel %vm500, %v1321, 0
        %v1409 = vsel %vm500, %v1322, 0
        %v1412 = vsel %vm500, %v1323, 0
        %v1415 = vsel %vm500, %v1324, 0
        %v1418 = vsel %vm500, %v1325, 0
        %v1421 = vsel %vm500, %v1326, 0
        %v1424 = vsel %vm500, %v1327, 0
        %v1427 = vsel %vm743, %v1329, 0
        %1429 = vmatprep.subr.mxu0 0.0
        %1430 = vmatpush1.msra.mxu0 0.0
        %1431 = vmatprep.subr.mxu0 0.0
        %1432 = vmatpush1.msra.mxu0 0.0
        %1433 = vmatprep.subr.mxu0 0.0
        %1434 = vmatpush1.msra.mxu0 0.0
        %1435 = vmatprep.subr.mxu0 0.0
        %1436 = vmatpush1.msra.mxu0 0.0
        %1437 = vmatprep.subr.mxu0 0.0
        %1438 = vmatpush1.msra.mxu0 0.0
        %1439 = vmatprep.subr.mxu0 0.0
        %1440 = vmatpush1.msra.mxu0 0.0
        %1441 = vmatprep.subr.mxu0 0.0
        %1442 = vmatpush1.msra.mxu0 0.0
        %1443 = vmatprep.subr.mxu0 0.0
        %1444 = vmatpush1.msra.mxu0 0.0
        %1445 = vmatprep.subr.mxu0 0.0
        %1446 = vmatpush1.msra.mxu0 0.0
        %1447 = vmatprep.subr.mxu0 0.0
        %1448 = vmatpush1.msra.mxu0 0.0
        %1449 = vmatprep.subr.mxu0 0.0
        %1450 = vmatpush1.msra.mxu0 0.0
        %1451 = vmatprep.subr.mxu0 0.0
        %1452 = vmatpush1.msra.mxu0 0.0
        %1453 = vmatprep.subr.mxu0 0.0
        %1454 = vmatpush1.msra.mxu0 0.0
        %1455 = vmatprep.subr.mxu0 0.0
        %1456 = vmatpush1.msra.mxu0 0.0
        %1457 = vmatprep.subr.mxu0 0.0
        %1458 = vmatpush1.msra.mxu0 0.0
        %1459 = vmatprep.subr.mxu0 0.0
        %1460 = vmatpush1.msra.mxu0 %v1427
        %1461 = vmatprep.subr.mxu0 0.0
        %1462 = vmatpush2.msra.mxu0 0.0
        %1463 = vmatprep.subr.mxu0 0.0
        %1464 = vmatpush2.msra.mxu0 0.0
        %1465 = vmatprep.subr.mxu0 0.0
        %1466 = vmatpush2.msra.mxu0 0.0
        %1467 = vmatprep.subr.mxu0 0.0
        %1468 = vmatpush2.msra.mxu0 0.0
        %1469 = vmatprep.subr.mxu0 0.0
        %1470 = vmatpush2.msra.mxu0 0.0
        %1471 = vmatprep.subr.mxu0 0.0
        %1472 = vmatpush2.msra.mxu0 0.0
        %1473 = vmatprep.subr.mxu0 0.0
        %1474 = vmatpush2.msra.mxu0 0.0
        %1475 = vmatprep.subr.mxu0 0.0
        %1476 = vmatpush2.msra.mxu0 0.0
        %1477 = vmatprep.subr.mxu0 0.0
        %1478 = vmatpush2.msra.mxu0 0.0
        %1479 = vmatprep.subr.mxu0 0.0
        %1480 = vmatpush2.msra.mxu0 0.0
        %1481 = vmatprep.subr.mxu0 0.0
        %1482 = vmatpush2.msra.mxu0 0.0
        %1483 = vmatprep.subr.mxu0 0.0
        %1484 = vmatpush2.msra.mxu0 0.0
        %1485 = vmatprep.subr.mxu0 0.0
        %1486 = vmatpush2.msra.mxu0 0.0
        %1487 = vmatprep.subr.mxu0 0.0
        %1488 = vmatpush2.msra.mxu0 0.0
        %1489 = vmatprep.subr.mxu0 0.0
        %1490 = vmatpush2.msra.mxu0 0.0
        %1491 = vmatprep.subr.mxu0 0.0
        %1492 = vmatpush2.msra.mxu0 0.0
        %1493 = vmatprep.mubr.f32.mxu0 0.0
        %1494 = vmatmul.mubr.f32.gmra.mxu0 %v1331
        %v1495 = vpop.f32.mrf.mxu0
        %v1496 = vadd.f32 0.0, %v1495
        %v1497 = vpop.f32.mrf.mxu0
        %1498 = vmatprep.mubr.f32.mxu0 0.0
        %1499 = vmatmul.mubr.f32.gmra.mxu0 %v1334
        %v1500 = vpop.f32.mrf.mxu0
        %v1501 = vadd.f32 0.0, %v1500
        %v1502 = vpop.f32.mrf.mxu0
        %1503 = vmatprep.mubr.f32.mxu0 0.0
        %1504 = vmatmul.mubr.f32.gmra.mxu0 %v1337
        %v1505 = vpop.f32.mrf.mxu0
        %v1506 = vadd.f32 0.0, %v1505
        %v1507 = vpop.f32.mrf.mxu0
        %1508 = vmatprep.mubr.f32.mxu0 0.0
        %1509 = vmatmul.mubr.f32.gmra.mxu0 %v1340
        %v1510 = vpop.f32.mrf.mxu0
        %v1511 = vadd.f32 0.0, %v1510
        %v1512 = vpop.f32.mrf.mxu0
        %1513 = vmatprep.mubr.f32.mxu0 0.0
        %1514 = vmatmul.mubr.f32.gmra.mxu0 %v1343
        %v1515 = vpop.f32.mrf.mxu0
        %v1516 = vadd.f32 0.0, %v1515
        %v1517 = vpop.f32.mrf.mxu0
        %1518 = vmatprep.mubr.f32.mxu0 0.0
        %1519 = vmatmul.mubr.f32.gmra.mxu0 %v1346
        %v1520 = vpop.f32.mrf.mxu0
        %v1521 = vadd.f32 0.0, %v1520
        %v1522 = vpop.f32.mrf.mxu0
        %1523 = vmatprep.mubr.f32.mxu0 0.0
        %1524 = vmatmul.mubr.f32.gmra.mxu0 %v1349
        %v1525 = vpop.f32.mrf.mxu0
        %v1526 = vadd.f32 0.0, %v1525
        %v1527 = vpop.f32.mrf.mxu0
        %1528 = vmatprep.mubr.f32.mxu0 0.0
        %1529 = vmatmul.mubr.f32.gmra.mxu0 %v1352
        %v1530 = vpop.f32.mrf.mxu0
        %v1531 = vadd.f32 0.0, %v1530
        %v1532 = vpop.f32.mrf.mxu0
        %1533 = vmatprep.mubr.f32.mxu0 0.0
        %1534 = vmatmul.mubr.f32.gmra.mxu0 %v1355
        %v1535 = vpop.f32.mrf.mxu0
        %v1536 = vadd.f32 0.0, %v1535
        %v1537 = vpop.f32.mrf.mxu0
        %1538 = vmatprep.mubr.f32.mxu0 0.0
        %1539 = vmatmul.mubr.f32.gmra.mxu0 %v1358
        %v1540 = vpop.f32.mrf.mxu0
        %v1541 = vadd.f32 0.0, %v1540
        %v1542 = vpop.f32.mrf.mxu0
        %1543 = vmatprep.mubr.f32.mxu0 0.0
        %1544 = vmatmul.mubr.f32.gmra.mxu0 %v1361
        %v1545 = vpop.f32.mrf.mxu0
        %v1546 = vadd.f32 0.0, %v1545
        %v1547 = vpop.f32.mrf.mxu0
        %1548 = vmatprep.mubr.f32.mxu0 0.0
        %1549 = vmatmul.mubr.f32.gmra.mxu0 %v1364
        %v1550 = vpop.f32.mrf.mxu0
        %v1551 = vadd.f32 0.0, %v1550
        %v1552 = vpop.f32.mrf.mxu0
        %1553 = vmatprep.mubr.f32.mxu0 0.0
        %1554 = vmatmul.mubr.f32.gmra.mxu0 %v1367
        %v1555 = vpop.f32.mrf.mxu0
        %v1556 = vadd.f32 0.0, %v1555
        %v1557 = vpop.f32.mrf.mxu0
        %1558 = vmatprep.mubr.f32.mxu0 0.0
        %1559 = vmatmul.mubr.f32.gmra.mxu0 %v1370
        %v1560 = vpop.f32.mrf.mxu0
        %v1561 = vadd.f32 0.0, %v1560
        %v1562 = vpop.f32.mrf.mxu0
        %1563 = vmatprep.mubr.f32.mxu0 0.0
        %1564 = vmatmul.mubr.f32.gmra.mxu0 %v1373
        %v1565 = vpop.f32.mrf.mxu0
        %v1566 = vadd.f32 0.0, %v1565
        %v1567 = vpop.f32.mrf.mxu0
        %1568 = vmatprep.mubr.f32.mxu0 0.0
        %1569 = vmatmul.mubr.f32.gmra.mxu0 %v1376
        %v1570 = vpop.f32.mrf.mxu0
        %v1571 = vadd.f32 0.0, %v1570
        %v1572 = vpop.f32.mrf.mxu0
        %1573 = vmatprep.mubr.f32.mxu0 0.0
        %1574 = vmatmul.mubr.f32.gmra.mxu0 %v1379
        %v1575 = vpop.f32.mrf.mxu0
        %v1576 = vadd.f32 0.0, %v1575
        %v1577 = vpop.f32.mrf.mxu0
        %1578 = vmatprep.mubr.f32.mxu0 0.0
        %1579 = vmatmul.mubr.f32.gmra.mxu0 %v1382
        %v1580 = vpop.f32.mrf.mxu0
        %v1581 = vadd.f32 0.0, %v1580
        %v1582 = vpop.f32.mrf.mxu0
        %1583 = vmatprep.mubr.f32.mxu0 0.0
        %1584 = vmatmul.mubr.f32.gmra.mxu0 %v1385
        %v1585 = vpop.f32.mrf.mxu0
        %v1586 = vadd.f32 0.0, %v1585
        %v1587 = vpop.f32.mrf.mxu0
        %1588 = vmatprep.mubr.f32.mxu0 0.0
        %1589 = vmatmul.mubr.f32.gmra.mxu0 %v1388
        %v1590 = vpop.f32.mrf.mxu0
        %v1591 = vadd.f32 0.0, %v1590
        %v1592 = vpop.f32.mrf.mxu0
        %1593 = vmatprep.mubr.f32.mxu0 0.0
        %1594 = vmatmul.mubr.f32.gmra.mxu0 %v1391
        %v1595 = vpop.f32.mrf.mxu0
        %v1596 = vadd.f32 0.0, %v1595
        %v1597 = vpop.f32.mrf.mxu0
        %1598 = vmatprep.mubr.f32.mxu0 0.0
        %1599 = vmatmul.mubr.f32.gmra.mxu0 %v1394
        %v1600 = vpop.f32.mrf.mxu0
        %v1601 = vadd.f32 0.0, %v1600
        %v1602 = vpop.f32.mrf.mxu0
        %1603 = vmatprep.mubr.f32.mxu0 0.0
        %1604 = vmatmul.mubr.f32.gmra.mxu0 %v1397
        %v1605 = vpop.f32.mrf.mxu0
        %v1606 = vadd.f32 0.0, %v1605
        %v1607 = vpop.f32.mrf.mxu0
        %1608 = vmatprep.mubr.f32.mxu0 0.0
        %1609 = vmatmul.mubr.f32.gmra.mxu0 %v1400
        %v1610 = vpop.f32.mrf.mxu0
        %v1611 = vadd.f32 0.0, %v1610
        %v1612 = vpop.f32.mrf.mxu0
        %1613 = vmatprep.mubr.f32.mxu0 0.0
        %1614 = vmatmul.mubr.f32.gmra.mxu0 %v1403
        %v1615 = vpop.f32.mrf.mxu0
        %v1616 = vadd.f32 0.0, %v1615
        %v1617 = vpop.f32.mrf.mxu0
        %1618 = vmatprep.mubr.f32.mxu0 0.0
        %1619 = vmatmul.mubr.f32.gmra.mxu0 %v1406
        %v1620 = vpop.f32.mrf.mxu0
        %v1621 = vadd.f32 0.0, %v1620
        %v1622 = vpop.f32.mrf.mxu0
        %1623 = vmatprep.mubr.f32.mxu0 0.0
        %1624 = vmatmul.mubr.f32.gmra.mxu0 %v1409
        %v1625 = vpop.f32.mrf.mxu0
        %v1626 = vadd.f32 0.0, %v1625
        %v1627 = vpop.f32.mrf.mxu0
        %1628 = vmatprep.mubr.f32.mxu0 0.0
        %1629 = vmatmul.mubr.f32.gmra.mxu0 %v1412
        %v1630 = vpop.f32.mrf.mxu0
        %v1631 = vadd.f32 0.0, %v1630
        %v1632 = vpop.f32.mrf.mxu0
        %1633 = vmatprep.mubr.f32.mxu0 0.0
        %1634 = vmatmul.mubr.f32.gmra.mxu0 %v1415
        %v1635 = vpop.f32.mrf.mxu0
        %v1636 = vadd.f32 0.0, %v1635
        %v1637 = vpop.f32.mrf.mxu0
        %1638 = vmatprep.mubr.f32.mxu0 0.0
        %1639 = vmatmul.mubr.f32.gmra.mxu0 %v1418
        %v1640 = vpop.f32.mrf.mxu0
        %v1641 = vadd.f32 0.0, %v1640
        %v1642 = vpop.f32.mrf.mxu0
        %1643 = vmatprep.mubr.f32.mxu0 0.0
        %1644 = vmatmul.mubr.f32.gmra.mxu0 %v1421
        %v1645 = vpop.f32.mrf.mxu0
        %v1646 = vadd.f32 0.0, %v1645
        %v1647 = vpop.f32.mrf.mxu0
        %1648 = vmatprep.mubr.f32.mxu0 0.0
        %1649 = vmatmul.mubr.f32.gmra.mxu0 %v1424
        %v1650 = vpop.f32.mrf.mxu0
        %v1651 = vadd.f32 0.0, %v1650
        %v1652 = vpop.f32.mrf.mxu0
        %1653 = vdwg.mxu0
        %v1654 = vadd.f32 %v1138, %v1496
        %v1655 = vadd.f32 %v1143, %v1501
        %v1656 = vadd.f32 %v1148, %v1506
        %v1657 = vadd.f32 %v1153, %v1511
        %v1658 = vadd.f32 %v1158, %v1516
        %v1659 = vadd.f32 %v1163, %v1521
        %v1660 = vadd.f32 %v1168, %v1526
        %v1661 = vadd.f32 %v1173, %v1531
        %v1662 = vadd.f32 %v1178, %v1536
        %v1663 = vadd.f32 %v1183, %v1541
        %v1664 = vadd.f32 %v1188, %v1546
        %v1665 = vadd.f32 %v1193, %v1551
        %v1666 = vadd.f32 %v1198, %v1556
        %v1667 = vadd.f32 %v1203, %v1561
        %v1668 = vadd.f32 %v1208, %v1566
        %v1669 = vadd.f32 %v1213, %v1571
        %v1670 = vadd.f32 %v1218, %v1576
        %v1671 = vadd.f32 %v1223, %v1581
        %v1672 = vadd.f32 %v1228, %v1586
        %v1673 = vadd.f32 %v1233, %v1591
        %v1674 = vadd.f32 %v1238, %v1596
        %v1675 = vadd.f32 %v1243, %v1601
        %v1676 = vadd.f32 %v1248, %v1606
        %v1677 = vadd.f32 %v1253, %v1611
        %v1678 = vadd.f32 %v1258, %v1616
        %v1679 = vadd.f32 %v1263, %v1621
        %v1680 = vadd.f32 %v1268, %v1626
        %v1681 = vadd.f32 %v1273, %v1631
        %v1682 = vadd.f32 %v1278, %v1636
        %v1683 = vadd.f32 %v1283, %v1641
        %v1684 = vadd.f32 %v1288, %v1646
        %v1685 = vadd.f32 %v1293, %v1651
        %v1686 = vld [vmem:[%s547 + $0x7] sm:$0xff]
        %v1687 = vld [vmem:[%s547 + $0xf] sm:$0xff]
        %v1688 = vld [vmem:[%s547 + $0x27] sm:$0xff]
        %v1689 = vld [vmem:[%s547 + $0x2f] sm:$0xff]
        %v1690 = vld [vmem:[%s547 + $0x47] sm:$0xff]
        %v1691 = vld [vmem:[%s547 + $0x4f] sm:$0xff]
        %v1692 = vld [vmem:[%s547 + $0x67] sm:$0xff]
        %v1693 = vld [vmem:[%s547 + $0x6f] sm:$0xff]
        %v1694 = vld [vmem:[%s547 + $0x87] sm:$0xff]
        %v1695 = vld [vmem:[%s547 + $0x8f] sm:$0xff]
        %v1696 = vld [vmem:[%s547 + $0xa7] sm:$0xff]
        %v1697 = vld [vmem:[%s547 + $0xaf] sm:$0xff]
        %v1698 = vld [vmem:[%s547 + $0xc7] sm:$0xff]
        %v1699 = vld [vmem:[%s547 + $0xcf] sm:$0xff]
        %v1700 = vld [vmem:[%s547 + $0xe7] sm:$0xff]
        %v1701 = vld [vmem:[%s547 + $0xef] sm:$0xff]
        %v1702 = vld [vmem:[%s547 + $0x107] sm:$0xff]
        %v1703 = vld [vmem:[%s547 + $0x10f] sm:$0xff]
        %v1704 = vld [vmem:[%s547 + $0x127] sm:$0xff]
        %v1705 = vld [vmem:[%s547 + $0x12f] sm:$0xff]
        %v1706 = vld [vmem:[%s547 + $0x147] sm:$0xff]
        %v1707 = vld [vmem:[%s547 + $0x14f] sm:$0xff]
        %v1708 = vld [vmem:[%s547 + $0x167] sm:$0xff]
        %v1709 = vld [vmem:[%s547 + $0x16f] sm:$0xff]
        %v1710 = vld [vmem:[%s547 + $0x187] sm:$0xff]
        %v1711 = vld [vmem:[%s547 + $0x18f] sm:$0xff]
        %v1712 = vld [vmem:[%s547 + $0x1a7] sm:$0xff]
        %v1713 = vld [vmem:[%s547 + $0x1af] sm:$0xff]
        %v1714 = vld [vmem:[%s547 + $0x1c7] sm:$0xff]
        %v1715 = vld [vmem:[%s547 + $0x1cf] sm:$0xff]
        %v1716 = vld [vmem:[%s547 + $0x1e7] sm:$0xff]
        %v1717 = vld [vmem:[%s547 + $0x1ef] sm:$0xff]
        %s1718 = scalar_lea.vmem %s3, 12
        %v1719 = vld [vmem:[%s1718] sm:$0xf]
        %v1721 = vsel %vm500, %v1686, 0
        %v1724 = vsel %vm500, %v1687, 0
        %v1727 = vsel %vm500, %v1688, 0
        %v1730 = vsel %vm500, %v1689, 0
        %v1733 = vsel %vm500, %v1690, 0
        %v1736 = vsel %vm500, %v1691, 0
        %v1739 = vsel %vm500, %v1692, 0
        %v1742 = vsel %vm500, %v1693, 0
        %v1745 = vsel %vm500, %v1694, 0
        %v1748 = vsel %vm500, %v1695, 0
        %v1751 = vsel %vm500, %v1696, 0
        %v1754 = vsel %vm500, %v1697, 0
        %v1757 = vsel %vm500, %v1698, 0
        %v1760 = vsel %vm500, %v1699, 0
        %v1763 = vsel %vm500, %v1700, 0
        %v1766 = vsel %vm500, %v1701, 0
        %v1769 = vsel %vm500, %v1702, 0
        %v1772 = vsel %vm500, %v1703, 0
        %v1775 = vsel %vm500, %v1704, 0
        %v1778 = vsel %vm500, %v1705, 0
        %v1781 = vsel %vm500, %v1706, 0
        %v1784 = vsel %vm500, %v1707, 0
        %v1787 = vsel %vm500, %v1708, 0
        %v1790 = vsel %vm500, %v1709, 0
        %v1793 = vsel %vm500, %v1710, 0
        %v1796 = vsel %vm500, %v1711, 0
        %v1799 = vsel %vm500, %v1712, 0
        %v1802 = vsel %vm500, %v1713, 0
        %v1805 = vsel %vm500, %v1714, 0
        %v1808 = vsel %vm500, %v1715, 0
        %v1811 = vsel %vm500, %v1716, 0
        %v1814 = vsel %vm500, %v1717, 0
        %v1817 = vsel %vm743, %v1719, 0
        %1819 = vmatprep.subr.mxu0 0.0
        %1820 = vmatpush1.msra.mxu0 0.0
        %1821 = vmatprep.subr.mxu0 0.0
        %1822 = vmatpush1.msra.mxu0 0.0
        %1823 = vmatprep.subr.mxu0 0.0
        %1824 = vmatpush1.msra.mxu0 0.0
        %1825 = vmatprep.subr.mxu0 0.0
        %1826 = vmatpush1.msra.mxu0 0.0
        %1827 = vmatprep.subr.mxu0 0.0
        %1828 = vmatpush1.msra.mxu0 0.0
        %1829 = vmatprep.subr.mxu0 0.0
        %1830 = vmatpush1.msra.mxu0 0.0
        %1831 = vmatprep.subr.mxu0 0.0
        %1832 = vmatpush1.msra.mxu0 0.0
        %1833 = vmatprep.subr.mxu0 0.0
        %1834 = vmatpush1.msra.mxu0 0.0
        %1835 = vmatprep.subr.mxu0 0.0
        %1836 = vmatpush1.msra.mxu0 0.0
        %1837 = vmatprep.subr.mxu0 0.0
        %1838 = vmatpush1.msra.mxu0 0.0
        %1839 = vmatprep.subr.mxu0 0.0
        %1840 = vmatpush1.msra.mxu0 0.0
        %1841 = vmatprep.subr.mxu0 0.0
        %1842 = vmatpush1.msra.mxu0 0.0
        %1843 = vmatprep.subr.mxu0 0.0
        %1844 = vmatpush1.msra.mxu0 0.0
        %1845 = vmatprep.subr.mxu0 0.0
        %1846 = vmatpush1.msra.mxu0 0.0
        %1847 = vmatprep.subr.mxu0 0.0
        %1848 = vmatpush1.msra.mxu0 0.0
        %1849 = vmatprep.subr.mxu0 0.0
        %1850 = vmatpush1.msra.mxu0 %v1817
        %1851 = vmatprep.subr.mxu0 0.0
        %1852 = vmatpush2.msra.mxu0 0.0
        %1853 = vmatprep.subr.mxu0 0.0
        %1854 = vmatpush2.msra.mxu0 0.0
        %1855 = vmatprep.subr.mxu0 0.0
        %1856 = vmatpush2.msra.mxu0 0.0
        %1857 = vmatprep.subr.mxu0 0.0
        %1858 = vmatpush2.msra.mxu0 0.0
        %1859 = vmatprep.subr.mxu0 0.0
        %1860 = vmatpush2.msra.mxu0 0.0
        %1861 = vmatprep.subr.mxu0 0.0
        %1862 = vmatpush2.msra.mxu0 0.0
        %1863 = vmatprep.subr.mxu0 0.0
        %1864 = vmatpush2.msra.mxu0 0.0
        %1865 = vmatprep.subr.mxu0 0.0
        %1866 = vmatpush2.msra.mxu0 0.0
        %1867 = vmatprep.subr.mxu0 0.0
        %1868 = vmatpush2.msra.mxu0 0.0
        %1869 = vmatprep.subr.mxu0 0.0
        %1870 = vmatpush2.msra.mxu0 0.0
        %1871 = vmatprep.subr.mxu0 0.0
        %1872 = vmatpush2.msra.mxu0 0.0
        %1873 = vmatprep.subr.mxu0 0.0
        %1874 = vmatpush2.msra.mxu0 0.0
        %1875 = vmatprep.subr.mxu0 0.0
        %1876 = vmatpush2.msra.mxu0 0.0
        %1877 = vmatprep.subr.mxu0 0.0
        %1878 = vmatpush2.msra.mxu0 0.0
        %1879 = vmatprep.subr.mxu0 0.0
        %1880 = vmatpush2.msra.mxu0 0.0
        %1881 = vmatprep.subr.mxu0 0.0
        %1882 = vmatpush2.msra.mxu0 0.0
        %1883 = vmatprep.mubr.f32.mxu0 0.0
        %1884 = vmatmul.mubr.f32.gmra.mxu0 %v1721
        %v1885 = vpop.f32.mrf.mxu0
        %v1886 = vadd.f32 0.0, %v1885
        %v1887 = vpop.f32.mrf.mxu0
        %1888 = vmatprep.mubr.f32.mxu0 0.0
        %1889 = vmatmul.mubr.f32.gmra.mxu0 %v1724
        %v1890 = vpop.f32.mrf.mxu0
        %v1891 = vadd.f32 0.0, %v1890
        %v1892 = vpop.f32.mrf.mxu0
        %1893 = vmatprep.mubr.f32.mxu0 0.0
        %1894 = vmatmul.mubr.f32.gmra.mxu0 %v1727
        %v1895 = vpop.f32.mrf.mxu0
        %v1896 = vadd.f32 0.0, %v1895
        %v1897 = vpop.f32.mrf.mxu0
        %1898 = vmatprep.mubr.f32.mxu0 0.0
        %1899 = vmatmul.mubr.f32.gmra.mxu0 %v1730
        %v1900 = vpop.f32.mrf.mxu0
        %v1901 = vadd.f32 0.0, %v1900
        %v1902 = vpop.f32.mrf.mxu0
        %1903 = vmatprep.mubr.f32.mxu0 0.0
        %1904 = vmatmul.mubr.f32.gmra.mxu0 %v1733
        %v1905 = vpop.f32.mrf.mxu0
        %v1906 = vadd.f32 0.0, %v1905
        %v1907 = vpop.f32.mrf.mxu0
        %1908 = vmatprep.mubr.f32.mxu0 0.0
        %1909 = vmatmul.mubr.f32.gmra.mxu0 %v1736
        %v1910 = vpop.f32.mrf.mxu0
        %v1911 = vadd.f32 0.0, %v1910
        %v1912 = vpop.f32.mrf.mxu0
        %1913 = vmatprep.mubr.f32.mxu0 0.0
        %1914 = vmatmul.mubr.f32.gmra.mxu0 %v1739
        %v1915 = vpop.f32.mrf.mxu0
        %v1916 = vadd.f32 0.0, %v1915
        %v1917 = vpop.f32.mrf.mxu0
        %1918 = vmatprep.mubr.f32.mxu0 0.0
        %1919 = vmatmul.mubr.f32.gmra.mxu0 %v1742
        %v1920 = vpop.f32.mrf.mxu0
        %v1921 = vadd.f32 0.0, %v1920
        %v1922 = vpop.f32.mrf.mxu0
        %1923 = vmatprep.mubr.f32.mxu0 0.0
        %1924 = vmatmul.mubr.f32.gmra.mxu0 %v1745
        %v1925 = vpop.f32.mrf.mxu0
        %v1926 = vadd.f32 0.0, %v1925
        %v1927 = vpop.f32.mrf.mxu0
        %1928 = vmatprep.mubr.f32.mxu0 0.0
        %1929 = vmatmul.mubr.f32.gmra.mxu0 %v1748
        %v1930 = vpop.f32.mrf.mxu0
        %v1931 = vadd.f32 0.0, %v1930
        %v1932 = vpop.f32.mrf.mxu0
        %1933 = vmatprep.mubr.f32.mxu0 0.0
        %1934 = vmatmul.mubr.f32.gmra.mxu0 %v1751
        %v1935 = vpop.f32.mrf.mxu0
        %v1936 = vadd.f32 0.0, %v1935
        %v1937 = vpop.f32.mrf.mxu0
        %1938 = vmatprep.mubr.f32.mxu0 0.0
        %1939 = vmatmul.mubr.f32.gmra.mxu0 %v1754
        %v1940 = vpop.f32.mrf.mxu0
        %v1941 = vadd.f32 0.0, %v1940
        %v1942 = vpop.f32.mrf.mxu0
        %1943 = vmatprep.mubr.f32.mxu0 0.0
        %1944 = vmatmul.mubr.f32.gmra.mxu0 %v1757
        %v1945 = vpop.f32.mrf.mxu0
        %v1946 = vadd.f32 0.0, %v1945
        %v1947 = vpop.f32.mrf.mxu0
        %1948 = vmatprep.mubr.f32.mxu0 0.0
        %1949 = vmatmul.mubr.f32.gmra.mxu0 %v1760
        %v1950 = vpop.f32.mrf.mxu0
        %v1951 = vadd.f32 0.0, %v1950
        %v1952 = vpop.f32.mrf.mxu0
        %1953 = vmatprep.mubr.f32.mxu0 0.0
        %1954 = vmatmul.mubr.f32.gmra.mxu0 %v1763
        %v1955 = vpop.f32.mrf.mxu0
        %v1956 = vadd.f32 0.0, %v1955
        %v1957 = vpop.f32.mrf.mxu0
        %1958 = vmatprep.mubr.f32.mxu0 0.0
        %1959 = vmatmul.mubr.f32.gmra.mxu0 %v1766
        %v1960 = vpop.f32.mrf.mxu0
        %v1961 = vadd.f32 0.0, %v1960
        %v1962 = vpop.f32.mrf.mxu0
        %1963 = vmatprep.mubr.f32.mxu0 0.0
        %1964 = vmatmul.mubr.f32.gmra.mxu0 %v1769
        %v1965 = vpop.f32.mrf.mxu0
        %v1966 = vadd.f32 0.0, %v1965
        %v1967 = vpop.f32.mrf.mxu0
        %1968 = vmatprep.mubr.f32.mxu0 0.0
        %1969 = vmatmul.mubr.f32.gmra.mxu0 %v1772
        %v1970 = vpop.f32.mrf.mxu0
        %v1971 = vadd.f32 0.0, %v1970
        %v1972 = vpop.f32.mrf.mxu0
        %1973 = vmatprep.mubr.f32.mxu0 0.0
        %1974 = vmatmul.mubr.f32.gmra.mxu0 %v1775
        %v1975 = vpop.f32.mrf.mxu0
        %v1976 = vadd.f32 0.0, %v1975
        %v1977 = vpop.f32.mrf.mxu0
        %1978 = vmatprep.mubr.f32.mxu0 0.0
        %1979 = vmatmul.mubr.f32.gmra.mxu0 %v1778
        %v1980 = vpop.f32.mrf.mxu0
        %v1981 = vadd.f32 0.0, %v1980
        %v1982 = vpop.f32.mrf.mxu0
        %1983 = vmatprep.mubr.f32.mxu0 0.0
        %1984 = vmatmul.mubr.f32.gmra.mxu0 %v1781
        %v1985 = vpop.f32.mrf.mxu0
        %v1986 = vadd.f32 0.0, %v1985
        %v1987 = vpop.f32.mrf.mxu0
        %1988 = vmatprep.mubr.f32.mxu0 0.0
        %1989 = vmatmul.mubr.f32.gmra.mxu0 %v1784
        %v1990 = vpop.f32.mrf.mxu0
        %v1991 = vadd.f32 0.0, %v1990
        %v1992 = vpop.f32.mrf.mxu0
        %1993 = vmatprep.mubr.f32.mxu0 0.0
        %1994 = vmatmul.mubr.f32.gmra.mxu0 %v1787
        %v1995 = vpop.f32.mrf.mxu0
        %v1996 = vadd.f32 0.0, %v1995
        %v1997 = vpop.f32.mrf.mxu0
        %1998 = vmatprep.mubr.f32.mxu0 0.0
        %1999 = vmatmul.mubr.f32.gmra.mxu0 %v1790
        %v2000 = vpop.f32.mrf.mxu0
        %v2001 = vadd.f32 0.0, %v2000
        %v2002 = vpop.f32.mrf.mxu0
        %2003 = vmatprep.mubr.f32.mxu0 0.0
        %2004 = vmatmul.mubr.f32.gmra.mxu0 %v1793
        %v2005 = vpop.f32.mrf.mxu0
        %v2006 = vadd.f32 0.0, %v2005
        %v2007 = vpop.f32.mrf.mxu0
        %2008 = vmatprep.mubr.f32.mxu0 0.0
        %2009 = vmatmul.mubr.f32.gmra.mxu0 %v1796
        %v2010 = vpop.f32.mrf.mxu0
        %v2011 = vadd.f32 0.0, %v2010
        %v2012 = vpop.f32.mrf.mxu0
        %2013 = vmatprep.mubr.f32.mxu0 0.0
        %2014 = vmatmul.mubr.f32.gmra.mxu0 %v1799
        %v2015 = vpop.f32.mrf.mxu0
        %v2016 = vadd.f32 0.0, %v2015
        %v2017 = vpop.f32.mrf.mxu0
        %2018 = vmatprep.mubr.f32.mxu0 0.0
        %2019 = vmatmul.mubr.f32.gmra.mxu0 %v1802
        %v2020 = vpop.f32.mrf.mxu0
        %v2021 = vadd.f32 0.0, %v2020
        %v2022 = vpop.f32.mrf.mxu0
        %2023 = vmatprep.mubr.f32.mxu0 0.0
        %2024 = vmatmul.mubr.f32.gmra.mxu0 %v1805
        %v2025 = vpop.f32.mrf.mxu0
        %v2026 = vadd.f32 0.0, %v2025
        %v2027 = vpop.f32.mrf.mxu0
        %2028 = vmatprep.mubr.f32.mxu0 0.0
        %2029 = vmatmul.mubr.f32.gmra.mxu0 %v1808
        %v2030 = vpop.f32.mrf.mxu0
        %v2031 = vadd.f32 0.0, %v2030
        %v2032 = vpop.f32.mrf.mxu0
        %2033 = vmatprep.mubr.f32.mxu0 0.0
        %2034 = vmatmul.mubr.f32.gmra.mxu0 %v1811
        %v2035 = vpop.f32.mrf.mxu0
        %v2036 = vadd.f32 0.0, %v2035
        %v2037 = vpop.f32.mrf.mxu0
        %2038 = vmatprep.mubr.f32.mxu0 0.0
        %2039 = vmatmul.mubr.f32.gmra.mxu0 %v1814
        %v2040 = vpop.f32.mrf.mxu0
        %v2041 = vadd.f32 0.0, %v2040
        %v2042 = vpop.f32.mrf.mxu0
        %2043 = vdwg.mxu0
        %v2044 = vadd.f32 %v1654, %v1886
        %v2045 = vadd.f32 %v1655, %v1891
        %v2046 = vadd.f32 %v1656, %v1896
        %v2047 = vadd.f32 %v1657, %v1901
        %v2048 = vadd.f32 %v1658, %v1906
        %v2049 = vadd.f32 %v1659, %v1911
        %v2050 = vadd.f32 %v1660, %v1916
        %v2051 = vadd.f32 %v1661, %v1921
        %v2052 = vadd.f32 %v1662, %v1926
        %v2053 = vadd.f32 %v1663, %v1931
        %v2054 = vadd.f32 %v1664, %v1936
        %v2055 = vadd.f32 %v1665, %v1941
        %v2056 = vadd.f32 %v1666, %v1946
        %v2057 = vadd.f32 %v1667, %v1951
        %v2058 = vadd.f32 %v1668, %v1956
        %v2059 = vadd.f32 %v1669, %v1961
        %v2060 = vadd.f32 %v1670, %v1966
        %v2061 = vadd.f32 %v1671, %v1971
        %v2062 = vadd.f32 %v1672, %v1976
        %v2063 = vadd.f32 %v1673, %v1981
        %v2064 = vadd.f32 %v1674, %v1986
        %v2065 = vadd.f32 %v1675, %v1991
        %v2066 = vadd.f32 %v1676, %v1996
        %v2067 = vadd.f32 %v1677, %v2001
        %v2068 = vadd.f32 %v1678, %v2006
        %v2069 = vadd.f32 %v1679, %v2011
        %v2070 = vadd.f32 %v1680, %v2016
        %v2071 = vadd.f32 %v1681, %v2021
        %v2072 = vadd.f32 %v1682, %v2026
        %v2073 = vadd.f32 %v1683, %v2031
        %v2074 = vadd.f32 %v1684, %v2036
        %v2075 = vadd.f32 %v1685, %v2041
        %v2076 = vld [vmem:[%s547 + $0x8] sm:$0xff]
        %v2077 = vld [vmem:[%s547 + $0x10] sm:$0xff]
        %v2078 = vld [vmem:[%s547 + $0x28] sm:$0xff]
        %v2079 = vld [vmem:[%s547 + $0x30] sm:$0xff]
        %v2080 = vld [vmem:[%s547 + $0x48] sm:$0xff]
        %v2081 = vld [vmem:[%s547 + $0x50] sm:$0xff]
        %v2082 = vld [vmem:[%s547 + $0x68] sm:$0xff]
        %v2083 = vld [vmem:[%s547 + $0x70] sm:$0xff]
        %v2084 = vld [vmem:[%s547 + $0x88] sm:$0xff]
        %v2085 = vld [vmem:[%s547 + $0x90] sm:$0xff]
        %v2086 = vld [vmem:[%s547 + $0xa8] sm:$0xff]
        %v2087 = vld [vmem:[%s547 + $0xb0] sm:$0xff]
        %v2088 = vld [vmem:[%s547 + $0xc8] sm:$0xff]
        %v2089 = vld [vmem:[%s547 + $0xd0] sm:$0xff]
        %v2090 = vld [vmem:[%s547 + $0xe8] sm:$0xff]
        %v2091 = vld [vmem:[%s547 + $0xf0] sm:$0xff]
        %v2092 = vld [vmem:[%s547 + $0x108] sm:$0xff]
        %v2093 = vld [vmem:[%s547 + $0x110] sm:$0xff]
        %v2094 = vld [vmem:[%s547 + $0x128] sm:$0xff]
        %v2095 = vld [vmem:[%s547 + $0x130] sm:$0xff]
        %v2096 = vld [vmem:[%s547 + $0x148] sm:$0xff]
        %v2097 = vld [vmem:[%s547 + $0x150] sm:$0xff]
        %v2098 = vld [vmem:[%s547 + $0x168] sm:$0xff]
        %v2099 = vld [vmem:[%s547 + $0x170] sm:$0xff]
        %v2100 = vld [vmem:[%s547 + $0x188] sm:$0xff]
        %v2101 = vld [vmem:[%s547 + $0x190] sm:$0xff]
        %v2102 = vld [vmem:[%s547 + $0x1a8] sm:$0xff]
        %v2103 = vld [vmem:[%s547 + $0x1b0] sm:$0xff]
        %v2104 = vld [vmem:[%s547 + $0x1c8] sm:$0xff]
        %v2105 = vld [vmem:[%s547 + $0x1d0] sm:$0xff]
        %v2106 = vld [vmem:[%s547 + $0x1e8] sm:$0xff]
        %v2107 = vld [vmem:[%s547 + $0x1f0] sm:$0xff]
        %s2108 = scalar_lea.vmem %s3, 16
        %v2109 = vld [vmem:[%s2108] sm:$0xf]
        %v2111 = vsel %vm500, %v2076, 0
        %v2114 = vsel %vm500, %v2077, 0
        %v2117 = vsel %vm500, %v2078, 0
        %v2120 = vsel %vm500, %v2079, 0
        %v2123 = vsel %vm500, %v2080, 0
        %v2126 = vsel %vm500, %v2081, 0
        %v2129 = vsel %vm500, %v2082, 0
        %v2132 = vsel %vm500, %v2083, 0
        %v2135 = vsel %vm500, %v2084, 0
        %v2138 = vsel %vm500, %v2085, 0
        %v2141 = vsel %vm500, %v2086, 0
        %v2144 = vsel %vm500, %v2087, 0
        %v2147 = vsel %vm500, %v2088, 0
        %v2150 = vsel %vm500, %v2089, 0
        %v2153 = vsel %vm500, %v2090, 0
        %v2156 = vsel %vm500, %v2091, 0
        %v2159 = vsel %vm500, %v2092, 0
        %v2162 = vsel %vm500, %v2093, 0
        %v2165 = vsel %vm500, %v2094, 0
        %v2168 = vsel %vm500, %v2095, 0
        %v2171 = vsel %vm500, %v2096, 0
        %v2174 = vsel %vm500, %v2097, 0
        %v2177 = vsel %vm500, %v2098, 0
        %v2180 = vsel %vm500, %v2099, 0
        %v2183 = vsel %vm500, %v2100, 0
        %v2186 = vsel %vm500, %v2101, 0
        %v2189 = vsel %vm500, %v2102, 0
        %v2192 = vsel %vm500, %v2103, 0
        %v2195 = vsel %vm500, %v2104, 0
        %v2198 = vsel %vm500, %v2105, 0
        %v2201 = vsel %vm500, %v2106, 0
        %v2204 = vsel %vm500, %v2107, 0
        %v2207 = vsel %vm743, %v2109, 0
        %2209 = vmatprep.subr.mxu0 0.0
        %2210 = vmatpush1.msra.mxu0 0.0
        %2211 = vmatprep.subr.mxu0 0.0
        %2212 = vmatpush1.msra.mxu0 0.0
        %2213 = vmatprep.subr.mxu0 0.0
        %2214 = vmatpush1.msra.mxu0 0.0
        %2215 = vmatprep.subr.mxu0 0.0
        %2216 = vmatpush1.msra.mxu0 0.0
        %2217 = vmatprep.subr.mxu0 0.0
        %2218 = vmatpush1.msra.mxu0 0.0
        %2219 = vmatprep.subr.mxu0 0.0
        %2220 = vmatpush1.msra.mxu0 0.0
        %2221 = vmatprep.subr.mxu0 0.0
        %2222 = vmatpush1.msra.mxu0 0.0
        %2223 = vmatprep.subr.mxu0 0.0
        %2224 = vmatpush1.msra.mxu0 0.0
        %2225 = vmatprep.subr.mxu0 0.0
        %2226 = vmatpush1.msra.mxu0 0.0
        %2227 = vmatprep.subr.mxu0 0.0
        %2228 = vmatpush1.msra.mxu0 0.0
        %2229 = vmatprep.subr.mxu0 0.0
        %2230 = vmatpush1.msra.mxu0 0.0
        %2231 = vmatprep.subr.mxu0 0.0
        %2232 = vmatpush1.msra.mxu0 0.0
        %2233 = vmatprep.subr.mxu0 0.0
        %2234 = vmatpush1.msra.mxu0 0.0
        %2235 = vmatprep.subr.mxu0 0.0
        %2236 = vmatpush1.msra.mxu0 0.0
        %2237 = vmatprep.subr.mxu0 0.0
        %2238 = vmatpush1.msra.mxu0 0.0
        %2239 = vmatprep.subr.mxu0 0.0
        %2240 = vmatpush1.msra.mxu0 %v2207
        %2241 = vmatprep.subr.mxu0 0.0
        %2242 = vmatpush2.msra.mxu0 0.0
        %2243 = vmatprep.subr.mxu0 0.0
        %2244 = vmatpush2.msra.mxu0 0.0
        %2245 = vmatprep.subr.mxu0 0.0
        %2246 = vmatpush2.msra.mxu0 0.0
        %2247 = vmatprep.subr.mxu0 0.0
        %2248 = vmatpush2.msra.mxu0 0.0
        %2249 = vmatprep.subr.mxu0 0.0
        %2250 = vmatpush2.msra.mxu0 0.0
        %2251 = vmatprep.subr.mxu0 0.0
        %2252 = vmatpush2.msra.mxu0 0.0
        %2253 = vmatprep.subr.mxu0 0.0
        %2254 = vmatpush2.msra.mxu0 0.0
        %2255 = vmatprep.subr.mxu0 0.0
        %2256 = vmatpush2.msra.mxu0 0.0
        %2257 = vmatprep.subr.mxu0 0.0
        %2258 = vmatpush2.msra.mxu0 0.0
        %2259 = vmatprep.subr.mxu0 0.0
        %2260 = vmatpush2.msra.mxu0 0.0
        %2261 = vmatprep.subr.mxu0 0.0
        %2262 = vmatpush2.msra.mxu0 0.0
        %2263 = vmatprep.subr.mxu0 0.0
        %2264 = vmatpush2.msra.mxu0 0.0
        %2265 = vmatprep.subr.mxu0 0.0
        %2266 = vmatpush2.msra.mxu0 0.0
        %2267 = vmatprep.subr.mxu0 0.0
        %2268 = vmatpush2.msra.mxu0 0.0
        %2269 = vmatprep.subr.mxu0 0.0
        %2270 = vmatpush2.msra.mxu0 0.0
        %2271 = vmatprep.subr.mxu0 0.0
        %2272 = vmatpush2.msra.mxu0 0.0
        %2273 = vmatprep.mubr.f32.mxu0 0.0
        %2274 = vmatmul.mubr.f32.gmra.mxu0 %v2111
        %v2275 = vpop.f32.mrf.mxu0
        %v2276 = vadd.f32 0.0, %v2275
        %v2277 = vpop.f32.mrf.mxu0
        %2278 = vmatprep.mubr.f32.mxu0 0.0
        %2279 = vmatmul.mubr.f32.gmra.mxu0 %v2114
        %v2280 = vpop.f32.mrf.mxu0
        %v2281 = vadd.f32 0.0, %v2280
        %v2282 = vpop.f32.mrf.mxu0
        %2283 = vmatprep.mubr.f32.mxu0 0.0
        %2284 = vmatmul.mubr.f32.gmra.mxu0 %v2117
        %v2285 = vpop.f32.mrf.mxu0
        %v2286 = vadd.f32 0.0, %v2285
        %v2287 = vpop.f32.mrf.mxu0
        %2288 = vmatprep.mubr.f32.mxu0 0.0
        %2289 = vmatmul.mubr.f32.gmra.mxu0 %v2120
        %v2290 = vpop.f32.mrf.mxu0
        %v2291 = vadd.f32 0.0, %v2290
        %v2292 = vpop.f32.mrf.mxu0
        %2293 = vmatprep.mubr.f32.mxu0 0.0
        %2294 = vmatmul.mubr.f32.gmra.mxu0 %v2123
        %v2295 = vpop.f32.mrf.mxu0
        %v2296 = vadd.f32 0.0, %v2295
        %v2297 = vpop.f32.mrf.mxu0
        %2298 = vmatprep.mubr.f32.mxu0 0.0
        %2299 = vmatmul.mubr.f32.gmra.mxu0 %v2126
        %v2300 = vpop.f32.mrf.mxu0
        %v2301 = vadd.f32 0.0, %v2300
        %v2302 = vpop.f32.mrf.mxu0
        %2303 = vmatprep.mubr.f32.mxu0 0.0
        %2304 = vmatmul.mubr.f32.gmra.mxu0 %v2129
        %v2305 = vpop.f32.mrf.mxu0
        %v2306 = vadd.f32 0.0, %v2305
        %v2307 = vpop.f32.mrf.mxu0
        %2308 = vmatprep.mubr.f32.mxu0 0.0
        %2309 = vmatmul.mubr.f32.gmra.mxu0 %v2132
        %v2310 = vpop.f32.mrf.mxu0
        %v2311 = vadd.f32 0.0, %v2310
        %v2312 = vpop.f32.mrf.mxu0
        %2313 = vmatprep.mubr.f32.mxu0 0.0
        %2314 = vmatmul.mubr.f32.gmra.mxu0 %v2135
        %v2315 = vpop.f32.mrf.mxu0
        %v2316 = vadd.f32 0.0, %v2315
        %v2317 = vpop.f32.mrf.mxu0
        %2318 = vmatprep.mubr.f32.mxu0 0.0
        %2319 = vmatmul.mubr.f32.gmra.mxu0 %v2138
        %v2320 = vpop.f32.mrf.mxu0
        %v2321 = vadd.f32 0.0, %v2320
        %v2322 = vpop.f32.mrf.mxu0
        %2323 = vmatprep.mubr.f32.mxu0 0.0
        %2324 = vmatmul.mubr.f32.gmra.mxu0 %v2141
        %v2325 = vpop.f32.mrf.mxu0
        %v2326 = vadd.f32 0.0, %v2325
        %v2327 = vpop.f32.mrf.mxu0
        %2328 = vmatprep.mubr.f32.mxu0 0.0
        %2329 = vmatmul.mubr.f32.gmra.mxu0 %v2144
        %v2330 = vpop.f32.mrf.mxu0
        %v2331 = vadd.f32 0.0, %v2330
        %v2332 = vpop.f32.mrf.mxu0
        %2333 = vmatprep.mubr.f32.mxu0 0.0
        %2334 = vmatmul.mubr.f32.gmra.mxu0 %v2147
        %v2335 = vpop.f32.mrf.mxu0
        %v2336 = vadd.f32 0.0, %v2335
        %v2337 = vpop.f32.mrf.mxu0
        %2338 = vmatprep.mubr.f32.mxu0 0.0
        %2339 = vmatmul.mubr.f32.gmra.mxu0 %v2150
        %v2340 = vpop.f32.mrf.mxu0
        %v2341 = vadd.f32 0.0, %v2340
        %v2342 = vpop.f32.mrf.mxu0
        %2343 = vmatprep.mubr.f32.mxu0 0.0
        %2344 = vmatmul.mubr.f32.gmra.mxu0 %v2153
        %v2345 = vpop.f32.mrf.mxu0
        %v2346 = vadd.f32 0.0, %v2345
        %v2347 = vpop.f32.mrf.mxu0
        %2348 = vmatprep.mubr.f32.mxu0 0.0
        %2349 = vmatmul.mubr.f32.gmra.mxu0 %v2156
        %v2350 = vpop.f32.mrf.mxu0
        %v2351 = vadd.f32 0.0, %v2350
        %v2352 = vpop.f32.mrf.mxu0
        %2353 = vmatprep.mubr.f32.mxu0 0.0
        %2354 = vmatmul.mubr.f32.gmra.mxu0 %v2159
        %v2355 = vpop.f32.mrf.mxu0
        %v2356 = vadd.f32 0.0, %v2355
        %v2357 = vpop.f32.mrf.mxu0
        %2358 = vmatprep.mubr.f32.mxu0 0.0
        %2359 = vmatmul.mubr.f32.gmra.mxu0 %v2162
        %v2360 = vpop.f32.mrf.mxu0
        %v2361 = vadd.f32 0.0, %v2360
        %v2362 = vpop.f32.mrf.mxu0
        %2363 = vmatprep.mubr.f32.mxu0 0.0
        %2364 = vmatmul.mubr.f32.gmra.mxu0 %v2165
        %v2365 = vpop.f32.mrf.mxu0
        %v2366 = vadd.f32 0.0, %v2365
        %v2367 = vpop.f32.mrf.mxu0
        %2368 = vmatprep.mubr.f32.mxu0 0.0
        %2369 = vmatmul.mubr.f32.gmra.mxu0 %v2168
        %v2370 = vpop.f32.mrf.mxu0
        %v2371 = vadd.f32 0.0, %v2370
        %v2372 = vpop.f32.mrf.mxu0
        %2373 = vmatprep.mubr.f32.mxu0 0.0
        %2374 = vmatmul.mubr.f32.gmra.mxu0 %v2171
        %v2375 = vpop.f32.mrf.mxu0
        %v2376 = vadd.f32 0.0, %v2375
        %v2377 = vpop.f32.mrf.mxu0
        %2378 = vmatprep.mubr.f32.mxu0 0.0
        %2379 = vmatmul.mubr.f32.gmra.mxu0 %v2174
        %v2380 = vpop.f32.mrf.mxu0
        %v2381 = vadd.f32 0.0, %v2380
        %v2382 = vpop.f32.mrf.mxu0
        %2383 = vmatprep.mubr.f32.mxu0 0.0
        %2384 = vmatmul.mubr.f32.gmra.mxu0 %v2177
        %v2385 = vpop.f32.mrf.mxu0
        %v2386 = vadd.f32 0.0, %v2385
        %v2387 = vpop.f32.mrf.mxu0
        %2388 = vmatprep.mubr.f32.mxu0 0.0
        %2389 = vmatmul.mubr.f32.gmra.mxu0 %v2180
        %v2390 = vpop.f32.mrf.mxu0
        %v2391 = vadd.f32 0.0, %v2390
        %v2392 = vpop.f32.mrf.mxu0
        %2393 = vmatprep.mubr.f32.mxu0 0.0
        %2394 = vmatmul.mubr.f32.gmra.mxu0 %v2183
        %v2395 = vpop.f32.mrf.mxu0
        %v2396 = vadd.f32 0.0, %v2395
        %v2397 = vpop.f32.mrf.mxu0
        %2398 = vmatprep.mubr.f32.mxu0 0.0
        %2399 = vmatmul.mubr.f32.gmra.mxu0 %v2186
        %v2400 = vpop.f32.mrf.mxu0
        %v2401 = vadd.f32 0.0, %v2400
        %v2402 = vpop.f32.mrf.mxu0
        %2403 = vmatprep.mubr.f32.mxu0 0.0
        %2404 = vmatmul.mubr.f32.gmra.mxu0 %v2189
        %v2405 = vpop.f32.mrf.mxu0
        %v2406 = vadd.f32 0.0, %v2405
        %v2407 = vpop.f32.mrf.mxu0
        %2408 = vmatprep.mubr.f32.mxu0 0.0
        %2409 = vmatmul.mubr.f32.gmra.mxu0 %v2192
        %v2410 = vpop.f32.mrf.mxu0
        %v2411 = vadd.f32 0.0, %v2410
        %v2412 = vpop.f32.mrf.mxu0
        %2413 = vmatprep.mubr.f32.mxu0 0.0
        %2414 = vmatmul.mubr.f32.gmra.mxu0 %v2195
        %v2415 = vpop.f32.mrf.mxu0
        %v2416 = vadd.f32 0.0, %v2415
        %v2417 = vpop.f32.mrf.mxu0
        %2418 = vmatprep.mubr.f32.mxu0 0.0
        %2419 = vmatmul.mubr.f32.gmra.mxu0 %v2198
        %v2420 = vpop.f32.mrf.mxu0
        %v2421 = vadd.f32 0.0, %v2420
        %v2422 = vpop.f32.mrf.mxu0
        %2423 = vmatprep.mubr.f32.mxu0 0.0
        %2424 = vmatmul.mubr.f32.gmra.mxu0 %v2201
        %v2425 = vpop.f32.mrf.mxu0
        %v2426 = vadd.f32 0.0, %v2425
        %v2427 = vpop.f32.mrf.mxu0
        %2428 = vmatprep.mubr.f32.mxu0 0.0
        %2429 = vmatmul.mubr.f32.gmra.mxu0 %v2204
        %v2430 = vpop.f32.mrf.mxu0
        %v2431 = vadd.f32 0.0, %v2430
        %v2432 = vpop.f32.mrf.mxu0
        %2433 = vdwg.mxu0
        %v2434 = vadd.f32 %v2044, %v2276
        %v2435 = vadd.f32 %v2045, %v2281
        %v2436 = vadd.f32 %v2046, %v2286
        %v2437 = vadd.f32 %v2047, %v2291
        %v2438 = vadd.f32 %v2048, %v2296
        %v2439 = vadd.f32 %v2049, %v2301
        %v2440 = vadd.f32 %v2050, %v2306
        %v2441 = vadd.f32 %v2051, %v2311
        %v2442 = vadd.f32 %v2052, %v2316
        %v2443 = vadd.f32 %v2053, %v2321
        %v2444 = vadd.f32 %v2054, %v2326
        %v2445 = vadd.f32 %v2055, %v2331
        %v2446 = vadd.f32 %v2056, %v2336
        %v2447 = vadd.f32 %v2057, %v2341
        %v2448 = vadd.f32 %v2058, %v2346
        %v2449 = vadd.f32 %v2059, %v2351
        %v2450 = vadd.f32 %v2060, %v2356
        %v2451 = vadd.f32 %v2061, %v2361
        %v2452 = vadd.f32 %v2062, %v2366
        %v2453 = vadd.f32 %v2063, %v2371
        %v2454 = vadd.f32 %v2064, %v2376
        %v2455 = vadd.f32 %v2065, %v2381
        %v2456 = vadd.f32 %v2066, %v2386
        %v2457 = vadd.f32 %v2067, %v2391
        %v2458 = vadd.f32 %v2068, %v2396
        %v2459 = vadd.f32 %v2069, %v2401
        %v2460 = vadd.f32 %v2070, %v2406
        %v2461 = vadd.f32 %v2071, %v2411
        %v2462 = vadd.f32 %v2072, %v2416
        %v2463 = vadd.f32 %v2073, %v2421
        %v2464 = vadd.f32 %v2074, %v2426
        %v2465 = vadd.f32 %v2075, %v2431
        %v2466 = vld [vmem:[%s547 + $0x9] sm:$0xff]
        %v2467 = vld [vmem:[%s547 + $0x11] sm:$0xff]
        %v2468 = vld [vmem:[%s547 + $0x29] sm:$0xff]
        %v2469 = vld [vmem:[%s547 + $0x31] sm:$0xff]
        %v2470 = vld [vmem:[%s547 + $0x49] sm:$0xff]
        %v2471 = vld [vmem:[%s547 + $0x51] sm:$0xff]
        %v2472 = vld [vmem:[%s547 + $0x69] sm:$0xff]
        %v2473 = vld [vmem:[%s547 + $0x71] sm:$0xff]
        %v2474 = vld [vmem:[%s547 + $0x89] sm:$0xff]
        %v2475 = vld [vmem:[%s547 + $0x91] sm:$0xff]
        %v2476 = vld [vmem:[%s547 + $0xa9] sm:$0xff]
        %v2477 = vld [vmem:[%s547 + $0xb1] sm:$0xff]
        %v2478 = vld [vmem:[%s547 + $0xc9] sm:$0xff]
        %v2479 = vld [vmem:[%s547 + $0xd1] sm:$0xff]
        %v2480 = vld [vmem:[%s547 + $0xe9] sm:$0xff]
        %v2481 = vld [vmem:[%s547 + $0xf1] sm:$0xff]
        %v2482 = vld [vmem:[%s547 + $0x109] sm:$0xff]
        %v2483 = vld [vmem:[%s547 + $0x111] sm:$0xff]
        %v2484 = vld [vmem:[%s547 + $0x129] sm:$0xff]
        %v2485 = vld [vmem:[%s547 + $0x131] sm:$0xff]
        %v2486 = vld [vmem:[%s547 + $0x149] sm:$0xff]
        %v2487 = vld [vmem:[%s547 + $0x151] sm:$0xff]
        %v2488 = vld [vmem:[%s547 + $0x169] sm:$0xff]
        %v2489 = vld [vmem:[%s547 + $0x171] sm:$0xff]
        %v2490 = vld [vmem:[%s547 + $0x189] sm:$0xff]
        %v2491 = vld [vmem:[%s547 + $0x191] sm:$0xff]
        %v2492 = vld [vmem:[%s547 + $0x1a9] sm:$0xff]
        %v2493 = vld [vmem:[%s547 + $0x1b1] sm:$0xff]
        %v2494 = vld [vmem:[%s547 + $0x1c9] sm:$0xff]
        %v2495 = vld [vmem:[%s547 + $0x1d1] sm:$0xff]
        %v2496 = vld [vmem:[%s547 + $0x1e9] sm:$0xff]
        %v2497 = vld [vmem:[%s547 + $0x1f1] sm:$0xff]
        %s2498 = scalar_lea.vmem %s3, 20
        %v2499 = vld [vmem:[%s2498] sm:$0xf]
        %v2501 = vsel %vm500, %v2466, 0
        %v2504 = vsel %vm500, %v2467, 0
        %v2507 = vsel %vm500, %v2468, 0
        %v2510 = vsel %vm500, %v2469, 0
        %v2513 = vsel %vm500, %v2470, 0
        %v2516 = vsel %vm500, %v2471, 0
        %v2519 = vsel %vm500, %v2472, 0
        %v2522 = vsel %vm500, %v2473, 0
        %v2525 = vsel %vm500, %v2474, 0
        %v2528 = vsel %vm500, %v2475, 0
        %v2531 = vsel %vm500, %v2476, 0
        %v2534 = vsel %vm500, %v2477, 0
        %v2537 = vsel %vm500, %v2478, 0
        %v2540 = vsel %vm500, %v2479, 0
        %v2543 = vsel %vm500, %v2480, 0
        %v2546 = vsel %vm500, %v2481, 0
        %v2549 = vsel %vm500, %v2482, 0
        %v2552 = vsel %vm500, %v2483, 0
        %v2555 = vsel %vm500, %v2484, 0
        %v2558 = vsel %vm500, %v2485, 0
        %v2561 = vsel %vm500, %v2486, 0
        %v2564 = vsel %vm500, %v2487, 0
        %v2567 = vsel %vm500, %v2488, 0
        %v2570 = vsel %vm500, %v2489, 0
        %v2573 = vsel %vm500, %v2490, 0
        %v2576 = vsel %vm500, %v2491, 0
        %v2579 = vsel %vm500, %v2492, 0
        %v2582 = vsel %vm500, %v2493, 0
        %v2585 = vsel %vm500, %v2494, 0
        %v2588 = vsel %vm500, %v2495, 0
        %v2591 = vsel %vm500, %v2496, 0
        %v2594 = vsel %vm500, %v2497, 0
        %v2597 = vsel %vm743, %v2499, 0
        %2599 = vmatprep.subr.mxu0 0.0
        %2600 = vmatpush1.msra.mxu0 0.0
        %2601 = vmatprep.subr.mxu0 0.0
        %2602 = vmatpush1.msra.mxu0 0.0
        %2603 = vmatprep.subr.mxu0 0.0
        %2604 = vmatpush1.msra.mxu0 0.0
        %2605 = vmatprep.subr.mxu0 0.0
        %2606 = vmatpush1.msra.mxu0 0.0
        %2607 = vmatprep.subr.mxu0 0.0
        %2608 = vmatpush1.msra.mxu0 0.0
        %2609 = vmatprep.subr.mxu0 0.0
        %2610 = vmatpush1.msra.mxu0 0.0
        %2611 = vmatprep.subr.mxu0 0.0
        %2612 = vmatpush1.msra.mxu0 0.0
        %2613 = vmatprep.subr.mxu0 0.0
        %2614 = vmatpush1.msra.mxu0 0.0
        %2615 = vmatprep.subr.mxu0 0.0
        %2616 = vmatpush1.msra.mxu0 0.0
        %2617 = vmatprep.subr.mxu0 0.0
        %2618 = vmatpush1.msra.mxu0 0.0
        %2619 = vmatprep.subr.mxu0 0.0
        %2620 = vmatpush1.msra.mxu0 0.0
        %2621 = vmatprep.subr.mxu0 0.0
        %2622 = vmatpush1.msra.mxu0 0.0
        %2623 = vmatprep.subr.mxu0 0.0
        %2624 = vmatpush1.msra.mxu0 0.0
        %2625 = vmatprep.subr.mxu0 0.0
        %2626 = vmatpush1.msra.mxu0 0.0
        %2627 = vmatprep.subr.mxu0 0.0
        %2628 = vmatpush1.msra.mxu0 0.0
        %2629 = vmatprep.subr.mxu0 0.0
        %2630 = vmatpush1.msra.mxu0 %v2597
        %2631 = vmatprep.subr.mxu0 0.0
        %2632 = vmatpush2.msra.mxu0 0.0
        %2633 = vmatprep.subr.mxu0 0.0
        %2634 = vmatpush2.msra.mxu0 0.0
        %2635 = vmatprep.subr.mxu0 0.0
        %2636 = vmatpush2.msra.mxu0 0.0
        %2637 = vmatprep.subr.mxu0 0.0
        %2638 = vmatpush2.msra.mxu0 0.0
        %2639 = vmatprep.subr.mxu0 0.0
        %2640 = vmatpush2.msra.mxu0 0.0
        %2641 = vmatprep.subr.mxu0 0.0
        %2642 = vmatpush2.msra.mxu0 0.0
        %2643 = vmatprep.subr.mxu0 0.0
        %2644 = vmatpush2.msra.mxu0 0.0
        %2645 = vmatprep.subr.mxu0 0.0
        %2646 = vmatpush2.msra.mxu0 0.0
        %2647 = vmatprep.subr.mxu0 0.0
        %2648 = vmatpush2.msra.mxu0 0.0
        %2649 = vmatprep.subr.mxu0 0.0
        %2650 = vmatpush2.msra.mxu0 0.0
        %2651 = vmatprep.subr.mxu0 0.0
        %2652 = vmatpush2.msra.mxu0 0.0
        %2653 = vmatprep.subr.mxu0 0.0
        %2654 = vmatpush2.msra.mxu0 0.0
        %2655 = vmatprep.subr.mxu0 0.0
        %2656 = vmatpush2.msra.mxu0 0.0
        %2657 = vmatprep.subr.mxu0 0.0
        %2658 = vmatpush2.msra.mxu0 0.0
        %2659 = vmatprep.subr.mxu0 0.0
        %2660 = vmatpush2.msra.mxu0 0.0
        %2661 = vmatprep.subr.mxu0 0.0
        %2662 = vmatpush2.msra.mxu0 0.0
        %2663 = vmatprep.mubr.f32.mxu0 0.0
        %2664 = vmatmul.mubr.f32.gmra.mxu0 %v2501
        %v2665 = vpop.f32.mrf.mxu0
        %v2666 = vadd.f32 0.0, %v2665
        %v2667 = vpop.f32.mrf.mxu0
        %2668 = vmatprep.mubr.f32.mxu0 0.0
        %2669 = vmatmul.mubr.f32.gmra.mxu0 %v2504
        %v2670 = vpop.f32.mrf.mxu0
        %v2671 = vadd.f32 0.0, %v2670
        %v2672 = vpop.f32.mrf.mxu0
        %2673 = vmatprep.mubr.f32.mxu0 0.0
        %2674 = vmatmul.mubr.f32.gmra.mxu0 %v2507
        %v2675 = vpop.f32.mrf.mxu0
        %v2676 = vadd.f32 0.0, %v2675
        %v2677 = vpop.f32.mrf.mxu0
        %2678 = vmatprep.mubr.f32.mxu0 0.0
        %2679 = vmatmul.mubr.f32.gmra.mxu0 %v2510
        %v2680 = vpop.f32.mrf.mxu0
        %v2681 = vadd.f32 0.0, %v2680
        %v2682 = vpop.f32.mrf.mxu0
        %2683 = vmatprep.mubr.f32.mxu0 0.0
        %2684 = vmatmul.mubr.f32.gmra.mxu0 %v2513
        %v2685 = vpop.f32.mrf.mxu0
        %v2686 = vadd.f32 0.0, %v2685
        %v2687 = vpop.f32.mrf.mxu0
        %2688 = vmatprep.mubr.f32.mxu0 0.0
        %2689 = vmatmul.mubr.f32.gmra.mxu0 %v2516
        %v2690 = vpop.f32.mrf.mxu0
        %v2691 = vadd.f32 0.0, %v2690
        %v2692 = vpop.f32.mrf.mxu0
        %2693 = vmatprep.mubr.f32.mxu0 0.0
        %2694 = vmatmul.mubr.f32.gmra.mxu0 %v2519
        %v2695 = vpop.f32.mrf.mxu0
        %v2696 = vadd.f32 0.0, %v2695
        %v2697 = vpop.f32.mrf.mxu0
        %2698 = vmatprep.mubr.f32.mxu0 0.0
        %2699 = vmatmul.mubr.f32.gmra.mxu0 %v2522
        %v2700 = vpop.f32.mrf.mxu0
        %v2701 = vadd.f32 0.0, %v2700
        %v2702 = vpop.f32.mrf.mxu0
        %2703 = vmatprep.mubr.f32.mxu0 0.0
        %2704 = vmatmul.mubr.f32.gmra.mxu0 %v2525
        %v2705 = vpop.f32.mrf.mxu0
        %v2706 = vadd.f32 0.0, %v2705
        %v2707 = vpop.f32.mrf.mxu0
        %2708 = vmatprep.mubr.f32.mxu0 0.0
        %2709 = vmatmul.mubr.f32.gmra.mxu0 %v2528
        %v2710 = vpop.f32.mrf.mxu0
        %v2711 = vadd.f32 0.0, %v2710
        %v2712 = vpop.f32.mrf.mxu0
        %2713 = vmatprep.mubr.f32.mxu0 0.0
        %2714 = vmatmul.mubr.f32.gmra.mxu0 %v2531
        %v2715 = vpop.f32.mrf.mxu0
        %v2716 = vadd.f32 0.0, %v2715
        %v2717 = vpop.f32.mrf.mxu0
        %2718 = vmatprep.mubr.f32.mxu0 0.0
        %2719 = vmatmul.mubr.f32.gmra.mxu0 %v2534
        %v2720 = vpop.f32.mrf.mxu0
        %v2721 = vadd.f32 0.0, %v2720
        %v2722 = vpop.f32.mrf.mxu0
        %2723 = vmatprep.mubr.f32.mxu0 0.0
        %2724 = vmatmul.mubr.f32.gmra.mxu0 %v2537
        %v2725 = vpop.f32.mrf.mxu0
        %v2726 = vadd.f32 0.0, %v2725
        %v2727 = vpop.f32.mrf.mxu0
        %2728 = vmatprep.mubr.f32.mxu0 0.0
        %2729 = vmatmul.mubr.f32.gmra.mxu0 %v2540
        %v2730 = vpop.f32.mrf.mxu0
        %v2731 = vadd.f32 0.0, %v2730
        %v2732 = vpop.f32.mrf.mxu0
        %2733 = vmatprep.mubr.f32.mxu0 0.0
        %2734 = vmatmul.mubr.f32.gmra.mxu0 %v2543
        %v2735 = vpop.f32.mrf.mxu0
        %v2736 = vadd.f32 0.0, %v2735
        %v2737 = vpop.f32.mrf.mxu0
        %2738 = vmatprep.mubr.f32.mxu0 0.0
        %2739 = vmatmul.mubr.f32.gmra.mxu0 %v2546
        %v2740 = vpop.f32.mrf.mxu0
        %v2741 = vadd.f32 0.0, %v2740
        %v2742 = vpop.f32.mrf.mxu0
        %2743 = vmatprep.mubr.f32.mxu0 0.0
        %2744 = vmatmul.mubr.f32.gmra.mxu0 %v2549
        %v2745 = vpop.f32.mrf.mxu0
        %v2746 = vadd.f32 0.0, %v2745
        %v2747 = vpop.f32.mrf.mxu0
        %2748 = vmatprep.mubr.f32.mxu0 0.0
        %2749 = vmatmul.mubr.f32.gmra.mxu0 %v2552
        %v2750 = vpop.f32.mrf.mxu0
        %v2751 = vadd.f32 0.0, %v2750
        %v2752 = vpop.f32.mrf.mxu0
        %2753 = vmatprep.mubr.f32.mxu0 0.0
        %2754 = vmatmul.mubr.f32.gmra.mxu0 %v2555
        %v2755 = vpop.f32.mrf.mxu0
        %v2756 = vadd.f32 0.0, %v2755
        %v2757 = vpop.f32.mrf.mxu0
        %2758 = vmatprep.mubr.f32.mxu0 0.0
        %2759 = vmatmul.mubr.f32.gmra.mxu0 %v2558
        %v2760 = vpop.f32.mrf.mxu0
        %v2761 = vadd.f32 0.0, %v2760
        %v2762 = vpop.f32.mrf.mxu0
        %2763 = vmatprep.mubr.f32.mxu0 0.0
        %2764 = vmatmul.mubr.f32.gmra.mxu0 %v2561
        %v2765 = vpop.f32.mrf.mxu0
        %v2766 = vadd.f32 0.0, %v2765
        %v2767 = vpop.f32.mrf.mxu0
        %2768 = vmatprep.mubr.f32.mxu0 0.0
        %2769 = vmatmul.mubr.f32.gmra.mxu0 %v2564
        %v2770 = vpop.f32.mrf.mxu0
        %v2771 = vadd.f32 0.0, %v2770
        %v2772 = vpop.f32.mrf.mxu0
        %2773 = vmatprep.mubr.f32.mxu0 0.0
        %2774 = vmatmul.mubr.f32.gmra.mxu0 %v2567
        %v2775 = vpop.f32.mrf.mxu0
        %v2776 = vadd.f32 0.0, %v2775
        %v2777 = vpop.f32.mrf.mxu0
        %2778 = vmatprep.mubr.f32.mxu0 0.0
        %2779 = vmatmul.mubr.f32.gmra.mxu0 %v2570
        %v2780 = vpop.f32.mrf.mxu0
        %v2781 = vadd.f32 0.0, %v2780
        %v2782 = vpop.f32.mrf.mxu0
        %2783 = vmatprep.mubr.f32.mxu0 0.0
        %2784 = vmatmul.mubr.f32.gmra.mxu0 %v2573
        %v2785 = vpop.f32.mrf.mxu0
        %v2786 = vadd.f32 0.0, %v2785
        %v2787 = vpop.f32.mrf.mxu0
        %2788 = vmatprep.mubr.f32.mxu0 0.0
        %2789 = vmatmul.mubr.f32.gmra.mxu0 %v2576
        %v2790 = vpop.f32.mrf.mxu0
        %v2791 = vadd.f32 0.0, %v2790
        %v2792 = vpop.f32.mrf.mxu0
        %2793 = vmatprep.mubr.f32.mxu0 0.0
        %2794 = vmatmul.mubr.f32.gmra.mxu0 %v2579
        %v2795 = vpop.f32.mrf.mxu0
        %v2796 = vadd.f32 0.0, %v2795
        %v2797 = vpop.f32.mrf.mxu0
        %2798 = vmatprep.mubr.f32.mxu0 0.0
        %2799 = vmatmul.mubr.f32.gmra.mxu0 %v2582
        %v2800 = vpop.f32.mrf.mxu0
        %v2801 = vadd.f32 0.0, %v2800
        %v2802 = vpop.f32.mrf.mxu0
        %2803 = vmatprep.mubr.f32.mxu0 0.0
        %2804 = vmatmul.mubr.f32.gmra.mxu0 %v2585
        %v2805 = vpop.f32.mrf.mxu0
        %v2806 = vadd.f32 0.0, %v2805
        %v2807 = vpop.f32.mrf.mxu0
        %2808 = vmatprep.mubr.f32.mxu0 0.0
        %2809 = vmatmul.mubr.f32.gmra.mxu0 %v2588
        %v2810 = vpop.f32.mrf.mxu0
        %v2811 = vadd.f32 0.0, %v2810
        %v2812 = vpop.f32.mrf.mxu0
        %2813 = vmatprep.mubr.f32.mxu0 0.0
        %2814 = vmatmul.mubr.f32.gmra.mxu0 %v2591
        %v2815 = vpop.f32.mrf.mxu0
        %v2816 = vadd.f32 0.0, %v2815
        %v2817 = vpop.f32.mrf.mxu0
        %2818 = vmatprep.mubr.f32.mxu0 0.0
        %2819 = vmatmul.mubr.f32.gmra.mxu0 %v2594
        %v2820 = vpop.f32.mrf.mxu0
        %v2821 = vadd.f32 0.0, %v2820
        %v2822 = vpop.f32.mrf.mxu0
        %2823 = vdwg.mxu0
        %v2824 = vadd.f32 %v2434, %v2666
        %v2825 = vadd.f32 %v2435, %v2671
        %v2826 = vadd.f32 %v2436, %v2676
        %v2827 = vadd.f32 %v2437, %v2681
        %v2828 = vadd.f32 %v2438, %v2686
        %v2829 = vadd.f32 %v2439, %v2691
        %v2830 = vadd.f32 %v2440, %v2696
        %v2831 = vadd.f32 %v2441, %v2701
        %v2832 = vadd.f32 %v2442, %v2706
        %v2833 = vadd.f32 %v2443, %v2711
        %v2834 = vadd.f32 %v2444, %v2716
        %v2835 = vadd.f32 %v2445, %v2721
        %v2836 = vadd.f32 %v2446, %v2726
        %v2837 = vadd.f32 %v2447, %v2731
        %v2838 = vadd.f32 %v2448, %v2736
        %v2839 = vadd.f32 %v2449, %v2741
        %v2840 = vadd.f32 %v2450, %v2746
        %v2841 = vadd.f32 %v2451, %v2751
        %v2842 = vadd.f32 %v2452, %v2756
        %v2843 = vadd.f32 %v2453, %v2761
        %v2844 = vadd.f32 %v2454, %v2766
        %v2845 = vadd.f32 %v2455, %v2771
        %v2846 = vadd.f32 %v2456, %v2776
        %v2847 = vadd.f32 %v2457, %v2781
        %v2848 = vadd.f32 %v2458, %v2786
        %v2849 = vadd.f32 %v2459, %v2791
        %v2850 = vadd.f32 %v2460, %v2796
        %v2851 = vadd.f32 %v2461, %v2801
        %v2852 = vadd.f32 %v2462, %v2806
        %v2853 = vadd.f32 %v2463, %v2811
        %v2854 = vadd.f32 %v2464, %v2816
        %v2855 = vadd.f32 %v2465, %v2821
        %s2856 = scalar_lea.vmem [#allocation2], 64
        %v2857 = vld [vmem:[%s2856 + $0x7] sm:$0xff]
        %v2858 = vld [vmem:[%s2856 + $0xf] sm:$0xff]
        %v2859 = vld [vmem:[%s2856 + $0x27] sm:$0xff]
        %v2860 = vld [vmem:[%s2856 + $0x2f] sm:$0xff]
        %v2861 = vld [vmem:[%s2856 + $0x47] sm:$0xff]
        %v2862 = vld [vmem:[%s2856 + $0x4f] sm:$0xff]
        %v2863 = vld [vmem:[%s2856 + $0x67] sm:$0xff]
        %v2864 = vld [vmem:[%s2856 + $0x6f] sm:$0xff]
        %v2865 = vld [vmem:[%s2856 + $0x87] sm:$0xff]
        %v2866 = vld [vmem:[%s2856 + $0x8f] sm:$0xff]
        %v2867 = vld [vmem:[%s2856 + $0xa7] sm:$0xff]
        %v2868 = vld [vmem:[%s2856 + $0xaf] sm:$0xff]
        %v2869 = vld [vmem:[%s2856 + $0xc7] sm:$0xff]
        %v2870 = vld [vmem:[%s2856 + $0xcf] sm:$0xff]
        %v2871 = vld [vmem:[%s2856 + $0xe7] sm:$0xff]
        %v2872 = vld [vmem:[%s2856 + $0xef] sm:$0xff]
        %v2873 = vld [vmem:[%s2856 + $0x107] sm:$0xff]
        %v2874 = vld [vmem:[%s2856 + $0x10f] sm:$0xff]
        %v2875 = vld [vmem:[%s2856 + $0x127] sm:$0xff]
        %v2876 = vld [vmem:[%s2856 + $0x12f] sm:$0xff]
        %v2877 = vld [vmem:[%s2856 + $0x147] sm:$0xff]
        %v2878 = vld [vmem:[%s2856 + $0x14f] sm:$0xff]
        %v2879 = vld [vmem:[%s2856 + $0x167] sm:$0xff]
        %v2880 = vld [vmem:[%s2856 + $0x16f] sm:$0xff]
        %v2881 = vld [vmem:[%s2856 + $0x187] sm:$0xff]
        %v2882 = vld [vmem:[%s2856 + $0x18f] sm:$0xff]
        %v2883 = vld [vmem:[%s2856 + $0x1a7] sm:$0xff]
        %v2884 = vld [vmem:[%s2856 + $0x1af] sm:$0xff]
        %v2885 = vld [vmem:[%s2856 + $0x1c7] sm:$0xff]
        %v2886 = vld [vmem:[%s2856 + $0x1cf] sm:$0xff]
        %v2887 = vld [vmem:[%s2856 + $0x1e7] sm:$0xff]
        %v2888 = vld [vmem:[%s2856 + $0x1ef] sm:$0xff]
        %s2889 = scalar_lea.vmem %s3, 24
        %v2890 = vld [vmem:[%s2889] sm:$0xf]
        %v2892 = vsel %vm500, %v2857, 0
        %v2895 = vsel %vm500, %v2858, 0
        %v2898 = vsel %vm500, %v2859, 0
        %v2901 = vsel %vm500, %v2860, 0
        %v2904 = vsel %vm500, %v2861, 0
        %v2907 = vsel %vm500, %v2862, 0
        %v2910 = vsel %vm500, %v2863, 0
        %v2913 = vsel %vm500, %v2864, 0
        %v2916 = vsel %vm500, %v2865, 0
        %v2919 = vsel %vm500, %v2866, 0
        %v2922 = vsel %vm500, %v2867, 0
        %v2925 = vsel %vm500, %v2868, 0
        %v2928 = vsel %vm500, %v2869, 0
        %v2931 = vsel %vm500, %v2870, 0
        %v2934 = vsel %vm500, %v2871, 0
        %v2937 = vsel %vm500, %v2872, 0
        %v2940 = vsel %vm500, %v2873, 0
        %v2943 = vsel %vm500, %v2874, 0
        %v2946 = vsel %vm500, %v2875, 0
        %v2949 = vsel %vm500, %v2876, 0
        %v2952 = vsel %vm500, %v2877, 0
        %v2955 = vsel %vm500, %v2878, 0
        %v2958 = vsel %vm500, %v2879, 0
        %v2961 = vsel %vm500, %v2880, 0
        %v2964 = vsel %vm500, %v2881, 0
        %v2967 = vsel %vm500, %v2882, 0
        %v2970 = vsel %vm500, %v2883, 0
        %v2973 = vsel %vm500, %v2884, 0
        %v2976 = vsel %vm500, %v2885, 0
        %v2979 = vsel %vm500, %v2886, 0
        %v2982 = vsel %vm500, %v2887, 0
        %v2985 = vsel %vm500, %v2888, 0
        %v2988 = vsel %vm743, %v2890, 0
        %2990 = vmatprep.subr.mxu0 0.0
        %2991 = vmatpush1.msra.mxu0 0.0
        %2992 = vmatprep.subr.mxu0 0.0
        %2993 = vmatpush1.msra.mxu0 0.0
        %2994 = vmatprep.subr.mxu0 0.0
        %2995 = vmatpush1.msra.mxu0 0.0
        %2996 = vmatprep.subr.mxu0 0.0
        %2997 = vmatpush1.msra.mxu0 0.0
        %2998 = vmatprep.subr.mxu0 0.0
        %2999 = vmatpush1.msra.mxu0 0.0
        %3000 = vmatprep.subr.mxu0 0.0
        %3001 = vmatpush1.msra.mxu0 0.0
        %3002 = vmatprep.subr.mxu0 0.0
        %3003 = vmatpush1.msra.mxu0 0.0
        %3004 = vmatprep.subr.mxu0 0.0
        %3005 = vmatpush1.msra.mxu0 0.0
        %3006 = vmatprep.subr.mxu0 0.0
        %3007 = vmatpush1.msra.mxu0 0.0
        %3008 = vmatprep.subr.mxu0 0.0
        %3009 = vmatpush1.msra.mxu0 0.0
        %3010 = vmatprep.subr.mxu0 0.0
        %3011 = vmatpush1.msra.mxu0 0.0
        %3012 = vmatprep.subr.mxu0 0.0
        %3013 = vmatpush1.msra.mxu0 0.0
        %3014 = vmatprep.subr.mxu0 0.0
        %3015 = vmatpush1.msra.mxu0 0.0
        %3016 = vmatprep.subr.mxu0 0.0
        %3017 = vmatpush1.msra.mxu0 0.0
        %3018 = vmatprep.subr.mxu0 0.0
        %3019 = vmatpush1.msra.mxu0 0.0
        %3020 = vmatprep.subr.mxu0 0.0
        %3021 = vmatpush1.msra.mxu0 %v2988
        %3022 = vmatprep.subr.mxu0 0.0
        %3023 = vmatpush2.msra.mxu0 0.0
        %3024 = vmatprep.subr.mxu0 0.0
        %3025 = vmatpush2.msra.mxu0 0.0
        %3026 = vmatprep.subr.mxu0 0.0
        %3027 = vmatpush2.msra.mxu0 0.0
        %3028 = vmatprep.subr.mxu0 0.0
        %3029 = vmatpush2.msra.mxu0 0.0
        %3030 = vmatprep.subr.mxu0 0.0
        %3031 = vmatpush2.msra.mxu0 0.0
        %3032 = vmatprep.subr.mxu0 0.0
        %3033 = vmatpush2.msra.mxu0 0.0
        %3034 = vmatprep.subr.mxu0 0.0
        %3035 = vmatpush2.msra.mxu0 0.0
        %3036 = vmatprep.subr.mxu0 0.0
        %3037 = vmatpush2.msra.mxu0 0.0
        %3038 = vmatprep.subr.mxu0 0.0
        %3039 = vmatpush2.msra.mxu0 0.0
        %3040 = vmatprep.subr.mxu0 0.0
        %3041 = vmatpush2.msra.mxu0 0.0
        %3042 = vmatprep.subr.mxu0 0.0
        %3043 = vmatpush2.msra.mxu0 0.0
        %3044 = vmatprep.subr.mxu0 0.0
        %3045 = vmatpush2.msra.mxu0 0.0
        %3046 = vmatprep.subr.mxu0 0.0
        %3047 = vmatpush2.msra.mxu0 0.0
        %3048 = vmatprep.subr.mxu0 0.0
        %3049 = vmatpush2.msra.mxu0 0.0
        %3050 = vmatprep.subr.mxu0 0.0
        %3051 = vmatpush2.msra.mxu0 0.0
        %3052 = vmatprep.subr.mxu0 0.0
        %3053 = vmatpush2.msra.mxu0 0.0
        %3054 = vmatprep.mubr.f32.mxu0 0.0
        %3055 = vmatmul.mubr.f32.gmra.mxu0 %v2892
        %v3056 = vpop.f32.mrf.mxu0
        %v3057 = vadd.f32 0.0, %v3056
        %v3058 = vpop.f32.mrf.mxu0
        %3059 = vmatprep.mubr.f32.mxu0 0.0
        %3060 = vmatmul.mubr.f32.gmra.mxu0 %v2895
        %v3061 = vpop.f32.mrf.mxu0
        %v3062 = vadd.f32 0.0, %v3061
        %v3063 = vpop.f32.mrf.mxu0
        %3064 = vmatprep.mubr.f32.mxu0 0.0
        %3065 = vmatmul.mubr.f32.gmra.mxu0 %v2898
        %v3066 = vpop.f32.mrf.mxu0
        %v3067 = vadd.f32 0.0, %v3066
        %v3068 = vpop.f32.mrf.mxu0
        %3069 = vmatprep.mubr.f32.mxu0 0.0
        %3070 = vmatmul.mubr.f32.gmra.mxu0 %v2901
        %v3071 = vpop.f32.mrf.mxu0
        %v3072 = vadd.f32 0.0, %v3071
        %v3073 = vpop.f32.mrf.mxu0
        %3074 = vmatprep.mubr.f32.mxu0 0.0
        %3075 = vmatmul.mubr.f32.gmra.mxu0 %v2904
        %v3076 = vpop.f32.mrf.mxu0
        %v3077 = vadd.f32 0.0, %v3076
        %v3078 = vpop.f32.mrf.mxu0
        %3079 = vmatprep.mubr.f32.mxu0 0.0
        %3080 = vmatmul.mubr.f32.gmra.mxu0 %v2907
        %v3081 = vpop.f32.mrf.mxu0
        %v3082 = vadd.f32 0.0, %v3081
        %v3083 = vpop.f32.mrf.mxu0
        %3084 = vmatprep.mubr.f32.mxu0 0.0
        %3085 = vmatmul.mubr.f32.gmra.mxu0 %v2910
        %v3086 = vpop.f32.mrf.mxu0
        %v3087 = vadd.f32 0.0, %v3086
        %v3088 = vpop.f32.mrf.mxu0
        %3089 = vmatprep.mubr.f32.mxu0 0.0
        %3090 = vmatmul.mubr.f32.gmra.mxu0 %v2913
        %v3091 = vpop.f32.mrf.mxu0
        %v3092 = vadd.f32 0.0, %v3091
        %v3093 = vpop.f32.mrf.mxu0
        %3094 = vmatprep.mubr.f32.mxu0 0.0
        %3095 = vmatmul.mubr.f32.gmra.mxu0 %v2916
        %v3096 = vpop.f32.mrf.mxu0
        %v3097 = vadd.f32 0.0, %v3096
        %v3098 = vpop.f32.mrf.mxu0
        %3099 = vmatprep.mubr.f32.mxu0 0.0
        %3100 = vmatmul.mubr.f32.gmra.mxu0 %v2919
        %v3101 = vpop.f32.mrf.mxu0
        %v3102 = vadd.f32 0.0, %v3101
        %v3103 = vpop.f32.mrf.mxu0
        %3104 = vmatprep.mubr.f32.mxu0 0.0
        %3105 = vmatmul.mubr.f32.gmra.mxu0 %v2922
        %v3106 = vpop.f32.mrf.mxu0
        %v3107 = vadd.f32 0.0, %v3106
        %v3108 = vpop.f32.mrf.mxu0
        %3109 = vmatprep.mubr.f32.mxu0 0.0
        %3110 = vmatmul.mubr.f32.gmra.mxu0 %v2925
        %v3111 = vpop.f32.mrf.mxu0
        %v3112 = vadd.f32 0.0, %v3111
        %v3113 = vpop.f32.mrf.mxu0
        %3114 = vmatprep.mubr.f32.mxu0 0.0
        %3115 = vmatmul.mubr.f32.gmra.mxu0 %v2928
        %v3116 = vpop.f32.mrf.mxu0
        %v3117 = vadd.f32 0.0, %v3116
        %v3118 = vpop.f32.mrf.mxu0
        %3119 = vmatprep.mubr.f32.mxu0 0.0
        %3120 = vmatmul.mubr.f32.gmra.mxu0 %v2931
        %v3121 = vpop.f32.mrf.mxu0
        %v3122 = vadd.f32 0.0, %v3121
        %v3123 = vpop.f32.mrf.mxu0
        %3124 = vmatprep.mubr.f32.mxu0 0.0
        %3125 = vmatmul.mubr.f32.gmra.mxu0 %v2934
        %v3126 = vpop.f32.mrf.mxu0
        %v3127 = vadd.f32 0.0, %v3126
        %v3128 = vpop.f32.mrf.mxu0
        %3129 = vmatprep.mubr.f32.mxu0 0.0
        %3130 = vmatmul.mubr.f32.gmra.mxu0 %v2937
        %v3131 = vpop.f32.mrf.mxu0
        %v3132 = vadd.f32 0.0, %v3131
        %v3133 = vpop.f32.mrf.mxu0
        %3134 = vmatprep.mubr.f32.mxu0 0.0
        %3135 = vmatmul.mubr.f32.gmra.mxu0 %v2940
        %v3136 = vpop.f32.mrf.mxu0
        %v3137 = vadd.f32 0.0, %v3136
        %v3138 = vpop.f32.mrf.mxu0
        %3139 = vmatprep.mubr.f32.mxu0 0.0
        %3140 = vmatmul.mubr.f32.gmra.mxu0 %v2943
        %v3141 = vpop.f32.mrf.mxu0
        %v3142 = vadd.f32 0.0, %v3141
        %v3143 = vpop.f32.mrf.mxu0
        %3144 = vmatprep.mubr.f32.mxu0 0.0
        %3145 = vmatmul.mubr.f32.gmra.mxu0 %v2946
        %v3146 = vpop.f32.mrf.mxu0
        %v3147 = vadd.f32 0.0, %v3146
        %v3148 = vpop.f32.mrf.mxu0
        %3149 = vmatprep.mubr.f32.mxu0 0.0
        %3150 = vmatmul.mubr.f32.gmra.mxu0 %v2949
        %v3151 = vpop.f32.mrf.mxu0
        %v3152 = vadd.f32 0.0, %v3151
        %v3153 = vpop.f32.mrf.mxu0
        %3154 = vmatprep.mubr.f32.mxu0 0.0
        %3155 = vmatmul.mubr.f32.gmra.mxu0 %v2952
        %v3156 = vpop.f32.mrf.mxu0
        %v3157 = vadd.f32 0.0, %v3156
        %v3158 = vpop.f32.mrf.mxu0
        %3159 = vmatprep.mubr.f32.mxu0 0.0
        %3160 = vmatmul.mubr.f32.gmra.mxu0 %v2955
        %v3161 = vpop.f32.mrf.mxu0
        %v3162 = vadd.f32 0.0, %v3161
        %v3163 = vpop.f32.mrf.mxu0
        %3164 = vmatprep.mubr.f32.mxu0 0.0
        %3165 = vmatmul.mubr.f32.gmra.mxu0 %v2958
        %v3166 = vpop.f32.mrf.mxu0
        %v3167 = vadd.f32 0.0, %v3166
        %v3168 = vpop.f32.mrf.mxu0
        %3169 = vmatprep.mubr.f32.mxu0 0.0
        %3170 = vmatmul.mubr.f32.gmra.mxu0 %v2961
        %v3171 = vpop.f32.mrf.mxu0
        %v3172 = vadd.f32 0.0, %v3171
        %v3173 = vpop.f32.mrf.mxu0
        %3174 = vmatprep.mubr.f32.mxu0 0.0
        %3175 = vmatmul.mubr.f32.gmra.mxu0 %v2964
        %v3176 = vpop.f32.mrf.mxu0
        %v3177 = vadd.f32 0.0, %v3176
        %v3178 = vpop.f32.mrf.mxu0
        %3179 = vmatprep.mubr.f32.mxu0 0.0
        %3180 = vmatmul.mubr.f32.gmra.mxu0 %v2967
        %v3181 = vpop.f32.mrf.mxu0
        %v3182 = vadd.f32 0.0, %v3181
        %v3183 = vpop.f32.mrf.mxu0
        %3184 = vmatprep.mubr.f32.mxu0 0.0
        %3185 = vmatmul.mubr.f32.gmra.mxu0 %v2970
        %v3186 = vpop.f32.mrf.mxu0
        %v3187 = vadd.f32 0.0, %v3186
        %v3188 = vpop.f32.mrf.mxu0
        %3189 = vmatprep.mubr.f32.mxu0 0.0
        %3190 = vmatmul.mubr.f32.gmra.mxu0 %v2973
        %v3191 = vpop.f32.mrf.mxu0
        %v3192 = vadd.f32 0.0, %v3191
        %v3193 = vpop.f32.mrf.mxu0
        %3194 = vmatprep.mubr.f32.mxu0 0.0
        %3195 = vmatmul.mubr.f32.gmra.mxu0 %v2976
        %v3196 = vpop.f32.mrf.mxu0
        %v3197 = vadd.f32 0.0, %v3196
        %v3198 = vpop.f32.mrf.mxu0
        %3199 = vmatprep.mubr.f32.mxu0 0.0
        %3200 = vmatmul.mubr.f32.gmra.mxu0 %v2979
        %v3201 = vpop.f32.mrf.mxu0
        %v3202 = vadd.f32 0.0, %v3201
        %v3203 = vpop.f32.mrf.mxu0
        %3204 = vmatprep.mubr.f32.mxu0 0.0
        %3205 = vmatmul.mubr.f32.gmra.mxu0 %v2982
        %v3206 = vpop.f32.mrf.mxu0
        %v3207 = vadd.f32 0.0, %v3206
        %v3208 = vpop.f32.mrf.mxu0
        %3209 = vmatprep.mubr.f32.mxu0 0.0
        %3210 = vmatmul.mubr.f32.gmra.mxu0 %v2985
        %v3211 = vpop.f32.mrf.mxu0
        %v3212 = vadd.f32 0.0, %v3211
        %v3213 = vpop.f32.mrf.mxu0
        %3214 = vdwg.mxu0
        %v3215 = vadd.f32 %v2824, %v3057
        %v3216 = vadd.f32 %v2825, %v3062
        %v3217 = vadd.f32 %v2826, %v3067
        %v3218 = vadd.f32 %v2827, %v3072
        %v3219 = vadd.f32 %v2828, %v3077
        %v3220 = vadd.f32 %v2829, %v3082
        %v3221 = vadd.f32 %v2830, %v3087
        %v3222 = vadd.f32 %v2831, %v3092
        %v3223 = vadd.f32 %v2832, %v3097
        %v3224 = vadd.f32 %v2833, %v3102
        %v3225 = vadd.f32 %v2834, %v3107
        %v3226 = vadd.f32 %v2835, %v3112
        %v3227 = vadd.f32 %v2836, %v3117
        %v3228 = vadd.f32 %v2837, %v3122
        %v3229 = vadd.f32 %v2838, %v3127
        %v3230 = vadd.f32 %v2839, %v3132
        %v3231 = vadd.f32 %v2840, %v3137
        %v3232 = vadd.f32 %v2841, %v3142
        %v3233 = vadd.f32 %v2842, %v3147
        %v3234 = vadd.f32 %v2843, %v3152
        %v3235 = vadd.f32 %v2844, %v3157
        %v3236 = vadd.f32 %v2845, %v3162
        %v3237 = vadd.f32 %v2846, %v3167
        %v3238 = vadd.f32 %v2847, %v3172
        %v3239 = vadd.f32 %v2848, %v3177
        %v3240 = vadd.f32 %v2849, %v3182
        %v3241 = vadd.f32 %v2850, %v3187
        %v3242 = vadd.f32 %v2851, %v3192
        %v3243 = vadd.f32 %v2852, %v3197
        %v3244 = vadd.f32 %v2853, %v3202
        %v3245 = vadd.f32 %v2854, %v3207
        %v3246 = vadd.f32 %v2855, %v3212
        %v3247 = vld [vmem:[%s2856 + $0x8] sm:$0xff]
        %v3248 = vld [vmem:[%s2856 + $0x10] sm:$0xff]
        %v3249 = vld [vmem:[%s2856 + $0x28] sm:$0xff]
        %v3250 = vld [vmem:[%s2856 + $0x30] sm:$0xff]
        %v3251 = vld [vmem:[%s2856 + $0x48] sm:$0xff]
        %v3252 = vld [vmem:[%s2856 + $0x50] sm:$0xff]
        %v3253 = vld [vmem:[%s2856 + $0x68] sm:$0xff]
        %v3254 = vld [vmem:[%s2856 + $0x70] sm:$0xff]
        %v3255 = vld [vmem:[%s2856 + $0x88] sm:$0xff]
        %v3256 = vld [vmem:[%s2856 + $0x90] sm:$0xff]
        %v3257 = vld [vmem:[%s2856 + $0xa8] sm:$0xff]
        %v3258 = vld [vmem:[%s2856 + $0xb0] sm:$0xff]
        %v3259 = vld [vmem:[%s2856 + $0xc8] sm:$0xff]
        %v3260 = vld [vmem:[%s2856 + $0xd0] sm:$0xff]
        %v3261 = vld [vmem:[%s2856 + $0xe8] sm:$0xff]
        %v3262 = vld [vmem:[%s2856 + $0xf0] sm:$0xff]
        %v3263 = vld [vmem:[%s2856 + $0x108] sm:$0xff]
        %v3264 = vld [vmem:[%s2856 + $0x110] sm:$0xff]
        %v3265 = vld [vmem:[%s2856 + $0x128] sm:$0xff]
        %v3266 = vld [vmem:[%s2856 + $0x130] sm:$0xff]
        %v3267 = vld [vmem:[%s2856 + $0x148] sm:$0xff]
        %v3268 = vld [vmem:[%s2856 + $0x150] sm:$0xff]
        %v3269 = vld [vmem:[%s2856 + $0x168] sm:$0xff]
        %v3270 = vld [vmem:[%s2856 + $0x170] sm:$0xff]
        %v3271 = vld [vmem:[%s2856 + $0x188] sm:$0xff]
        %v3272 = vld [vmem:[%s2856 + $0x190] sm:$0xff]
        %v3273 = vld [vmem:[%s2856 + $0x1a8] sm:$0xff]
        %v3274 = vld [vmem:[%s2856 + $0x1b0] sm:$0xff]
        %v3275 = vld [vmem:[%s2856 + $0x1c8] sm:$0xff]
        %v3276 = vld [vmem:[%s2856 + $0x1d0] sm:$0xff]
        %v3277 = vld [vmem:[%s2856 + $0x1e8] sm:$0xff]
        %v3278 = vld [vmem:[%s2856 + $0x1f0] sm:$0xff]
        %s3279 = scalar_lea.vmem %s3, 28
        %v3280 = vld [vmem:[%s3279] sm:$0xf]
        %v3282 = vsel %vm500, %v3247, 0
        %v3285 = vsel %vm500, %v3248, 0
        %v3288 = vsel %vm500, %v3249, 0
        %v3291 = vsel %vm500, %v3250, 0
        %v3294 = vsel %vm500, %v3251, 0
        %v3297 = vsel %vm500, %v3252, 0
        %v3300 = vsel %vm500, %v3253, 0
        %v3303 = vsel %vm500, %v3254, 0
        %v3306 = vsel %vm500, %v3255, 0
        %v3309 = vsel %vm500, %v3256, 0
        %v3312 = vsel %vm500, %v3257, 0
        %v3315 = vsel %vm500, %v3258, 0
        %v3318 = vsel %vm500, %v3259, 0
        %v3321 = vsel %vm500, %v3260, 0
        %v3324 = vsel %vm500, %v3261, 0
        %v3327 = vsel %vm500, %v3262, 0
        %v3330 = vsel %vm500, %v3263, 0
        %v3333 = vsel %vm500, %v3264, 0
        %v3336 = vsel %vm500, %v3265, 0
        %v3339 = vsel %vm500, %v3266, 0
        %v3342 = vsel %vm500, %v3267, 0
        %v3345 = vsel %vm500, %v3268, 0
        %v3348 = vsel %vm500, %v3269, 0
        %v3351 = vsel %vm500, %v3270, 0
        %v3354 = vsel %vm500, %v3271, 0
        %v3357 = vsel %vm500, %v3272, 0
        %v3360 = vsel %vm500, %v3273, 0
        %v3363 = vsel %vm500, %v3274, 0
        %v3366 = vsel %vm500, %v3275, 0
        %v3369 = vsel %vm500, %v3276, 0
        %v3372 = vsel %vm500, %v3277, 0
        %v3375 = vsel %vm500, %v3278, 0
        %v3378 = vsel %vm743, %v3280, 0
        %3380 = vmatprep.subr.mxu0 0.0
        %3381 = vmatpush1.msra.mxu0 0.0
        %3382 = vmatprep.subr.mxu0 0.0
        %3383 = vmatpush1.msra.mxu0 0.0
        %3384 = vmatprep.subr.mxu0 0.0
        %3385 = vmatpush1.msra.mxu0 0.0
        %3386 = vmatprep.subr.mxu0 0.0
        %3387 = vmatpush1.msra.mxu0 0.0
        %3388 = vmatprep.subr.mxu0 0.0
        %3389 = vmatpush1.msra.mxu0 0.0
        %3390 = vmatprep.subr.mxu0 0.0
        %3391 = vmatpush1.msra.mxu0 0.0
        %3392 = vmatprep.subr.mxu0 0.0
        %3393 = vmatpush1.msra.mxu0 0.0
        %3394 = vmatprep.subr.mxu0 0.0
        %3395 = vmatpush1.msra.mxu0 0.0
        %3396 = vmatprep.subr.mxu0 0.0
        %3397 = vmatpush1.msra.mxu0 0.0
        %3398 = vmatprep.subr.mxu0 0.0
        %3399 = vmatpush1.msra.mxu0 0.0
        %3400 = vmatprep.subr.mxu0 0.0
        %3401 = vmatpush1.msra.mxu0 0.0
        %3402 = vmatprep.subr.mxu0 0.0
        %3403 = vmatpush1.msra.mxu0 0.0
        %3404 = vmatprep.subr.mxu0 0.0
        %3405 = vmatpush1.msra.mxu0 0.0
        %3406 = vmatprep.subr.mxu0 0.0
        %3407 = vmatpush1.msra.mxu0 0.0
        %3408 = vmatprep.subr.mxu0 0.0
        %3409 = vmatpush1.msra.mxu0 0.0
        %3410 = vmatprep.subr.mxu0 0.0
        %3411 = vmatpush1.msra.mxu0 %v3378
        %3412 = vmatprep.subr.mxu0 0.0
        %3413 = vmatpush2.msra.mxu0 0.0
        %3414 = vmatprep.subr.mxu0 0.0
        %3415 = vmatpush2.msra.mxu0 0.0
        %3416 = vmatprep.subr.mxu0 0.0
        %3417 = vmatpush2.msra.mxu0 0.0
        %3418 = vmatprep.subr.mxu0 0.0
        %3419 = vmatpush2.msra.mxu0 0.0
        %3420 = vmatprep.subr.mxu0 0.0
        %3421 = vmatpush2.msra.mxu0 0.0
        %3422 = vmatprep.subr.mxu0 0.0
        %3423 = vmatpush2.msra.mxu0 0.0
        %3424 = vmatprep.subr.mxu0 0.0
        %3425 = vmatpush2.msra.mxu0 0.0
        %3426 = vmatprep.subr.mxu0 0.0
        %3427 = vmatpush2.msra.mxu0 0.0
        %3428 = vmatprep.subr.mxu0 0.0
        %3429 = vmatpush2.msra.mxu0 0.0
        %3430 = vmatprep.subr.mxu0 0.0
        %3431 = vmatpush2.msra.mxu0 0.0
        %3432 = vmatprep.subr.mxu0 0.0
        %3433 = vmatpush2.msra.mxu0 0.0
        %3434 = vmatprep.subr.mxu0 0.0
        %3435 = vmatpush2.msra.mxu0 0.0
        %3436 = vmatprep.subr.mxu0 0.0
        %3437 = vmatpush2.msra.mxu0 0.0
        %3438 = vmatprep.subr.mxu0 0.0
        %3439 = vmatpush2.msra.mxu0 0.0
        %3440 = vmatprep.subr.mxu0 0.0
        %3441 = vmatpush2.msra.mxu0 0.0
        %3442 = vmatprep.subr.mxu0 0.0
        %3443 = vmatpush2.msra.mxu0 0.0
        %3444 = vmatprep.mubr.f32.mxu0 0.0
        %3445 = vmatmul.mubr.f32.gmra.mxu0 %v3282
        %v3446 = vpop.f32.mrf.mxu0
        %v3447 = vadd.f32 0.0, %v3446
        %v3448 = vpop.f32.mrf.mxu0
        %3449 = vmatprep.mubr.f32.mxu0 0.0
        %3450 = vmatmul.mubr.f32.gmra.mxu0 %v3285
        %v3451 = vpop.f32.mrf.mxu0
        %v3452 = vadd.f32 0.0, %v3451
        %v3453 = vpop.f32.mrf.mxu0
        %3454 = vmatprep.mubr.f32.mxu0 0.0
        %3455 = vmatmul.mubr.f32.gmra.mxu0 %v3288
        %v3456 = vpop.f32.mrf.mxu0
        %v3457 = vadd.f32 0.0, %v3456
        %v3458 = vpop.f32.mrf.mxu0
        %3459 = vmatprep.mubr.f32.mxu0 0.0
        %3460 = vmatmul.mubr.f32.gmra.mxu0 %v3291
        %v3461 = vpop.f32.mrf.mxu0
        %v3462 = vadd.f32 0.0, %v3461
        %v3463 = vpop.f32.mrf.mxu0
        %3464 = vmatprep.mubr.f32.mxu0 0.0
        %3465 = vmatmul.mubr.f32.gmra.mxu0 %v3294
        %v3466 = vpop.f32.mrf.mxu0
        %v3467 = vadd.f32 0.0, %v3466
        %v3468 = vpop.f32.mrf.mxu0
        %3469 = vmatprep.mubr.f32.mxu0 0.0
        %3470 = vmatmul.mubr.f32.gmra.mxu0 %v3297
        %v3471 = vpop.f32.mrf.mxu0
        %v3472 = vadd.f32 0.0, %v3471
        %v3473 = vpop.f32.mrf.mxu0
        %3474 = vmatprep.mubr.f32.mxu0 0.0
        %3475 = vmatmul.mubr.f32.gmra.mxu0 %v3300
        %v3476 = vpop.f32.mrf.mxu0
        %v3477 = vadd.f32 0.0, %v3476
        %v3478 = vpop.f32.mrf.mxu0
        %3479 = vmatprep.mubr.f32.mxu0 0.0
        %3480 = vmatmul.mubr.f32.gmra.mxu0 %v3303
        %v3481 = vpop.f32.mrf.mxu0
        %v3482 = vadd.f32 0.0, %v3481
        %v3483 = vpop.f32.mrf.mxu0
        %3484 = vmatprep.mubr.f32.mxu0 0.0
        %3485 = vmatmul.mubr.f32.gmra.mxu0 %v3306
        %v3486 = vpop.f32.mrf.mxu0
        %v3487 = vadd.f32 0.0, %v3486
        %v3488 = vpop.f32.mrf.mxu0
        %3489 = vmatprep.mubr.f32.mxu0 0.0
        %3490 = vmatmul.mubr.f32.gmra.mxu0 %v3309
        %v3491 = vpop.f32.mrf.mxu0
        %v3492 = vadd.f32 0.0, %v3491
        %v3493 = vpop.f32.mrf.mxu0
        %3494 = vmatprep.mubr.f32.mxu0 0.0
        %3495 = vmatmul.mubr.f32.gmra.mxu0 %v3312
        %v3496 = vpop.f32.mrf.mxu0
        %v3497 = vadd.f32 0.0, %v3496
        %v3498 = vpop.f32.mrf.mxu0
        %3499 = vmatprep.mubr.f32.mxu0 0.0
        %3500 = vmatmul.mubr.f32.gmra.mxu0 %v3315
        %v3501 = vpop.f32.mrf.mxu0
        %v3502 = vadd.f32 0.0, %v3501
        %v3503 = vpop.f32.mrf.mxu0
        %3504 = vmatprep.mubr.f32.mxu0 0.0
        %3505 = vmatmul.mubr.f32.gmra.mxu0 %v3318
        %v3506 = vpop.f32.mrf.mxu0
        %v3507 = vadd.f32 0.0, %v3506
        %v3508 = vpop.f32.mrf.mxu0
        %3509 = vmatprep.mubr.f32.mxu0 0.0
        %3510 = vmatmul.mubr.f32.gmra.mxu0 %v3321
        %v3511 = vpop.f32.mrf.mxu0
        %v3512 = vadd.f32 0.0, %v3511
        %v3513 = vpop.f32.mrf.mxu0
        %3514 = vmatprep.mubr.f32.mxu0 0.0
        %3515 = vmatmul.mubr.f32.gmra.mxu0 %v3324
        %v3516 = vpop.f32.mrf.mxu0
        %v3517 = vadd.f32 0.0, %v3516
        %v3518 = vpop.f32.mrf.mxu0
        %3519 = vmatprep.mubr.f32.mxu0 0.0
        %3520 = vmatmul.mubr.f32.gmra.mxu0 %v3327
        %v3521 = vpop.f32.mrf.mxu0
        %v3522 = vadd.f32 0.0, %v3521
        %v3523 = vpop.f32.mrf.mxu0
        %3524 = vmatprep.mubr.f32.mxu0 0.0
        %3525 = vmatmul.mubr.f32.gmra.mxu0 %v3330
        %v3526 = vpop.f32.mrf.mxu0
        %v3527 = vadd.f32 0.0, %v3526
        %v3528 = vpop.f32.mrf.mxu0
        %3529 = vmatprep.mubr.f32.mxu0 0.0
        %3530 = vmatmul.mubr.f32.gmra.mxu0 %v3333
        %v3531 = vpop.f32.mrf.mxu0
        %v3532 = vadd.f32 0.0, %v3531
        %v3533 = vpop.f32.mrf.mxu0
        %3534 = vmatprep.mubr.f32.mxu0 0.0
        %3535 = vmatmul.mubr.f32.gmra.mxu0 %v3336
        %v3536 = vpop.f32.mrf.mxu0
        %v3537 = vadd.f32 0.0, %v3536
        %v3538 = vpop.f32.mrf.mxu0
        %3539 = vmatprep.mubr.f32.mxu0 0.0
        %3540 = vmatmul.mubr.f32.gmra.mxu0 %v3339
        %v3541 = vpop.f32.mrf.mxu0
        %v3542 = vadd.f32 0.0, %v3541
        %v3543 = vpop.f32.mrf.mxu0
        %3544 = vmatprep.mubr.f32.mxu0 0.0
        %3545 = vmatmul.mubr.f32.gmra.mxu0 %v3342
        %v3546 = vpop.f32.mrf.mxu0
        %v3547 = vadd.f32 0.0, %v3546
        %v3548 = vpop.f32.mrf.mxu0
        %3549 = vmatprep.mubr.f32.mxu0 0.0
        %3550 = vmatmul.mubr.f32.gmra.mxu0 %v3345
        %v3551 = vpop.f32.mrf.mxu0
        %v3552 = vadd.f32 0.0, %v3551
        %v3553 = vpop.f32.mrf.mxu0
        %3554 = vmatprep.mubr.f32.mxu0 0.0
        %3555 = vmatmul.mubr.f32.gmra.mxu0 %v3348
        %v3556 = vpop.f32.mrf.mxu0
        %v3557 = vadd.f32 0.0, %v3556
        %v3558 = vpop.f32.mrf.mxu0
        %3559 = vmatprep.mubr.f32.mxu0 0.0
        %3560 = vmatmul.mubr.f32.gmra.mxu0 %v3351
        %v3561 = vpop.f32.mrf.mxu0
        %v3562 = vadd.f32 0.0, %v3561
        %v3563 = vpop.f32.mrf.mxu0
        %3564 = vmatprep.mubr.f32.mxu0 0.0
        %3565 = vmatmul.mubr.f32.gmra.mxu0 %v3354
        %v3566 = vpop.f32.mrf.mxu0
        %v3567 = vadd.f32 0.0, %v3566
        %v3568 = vpop.f32.mrf.mxu0
        %3569 = vmatprep.mubr.f32.mxu0 0.0
        %3570 = vmatmul.mubr.f32.gmra.mxu0 %v3357
        %v3571 = vpop.f32.mrf.mxu0
        %v3572 = vadd.f32 0.0, %v3571
        %v3573 = vpop.f32.mrf.mxu0
        %3574 = vmatprep.mubr.f32.mxu0 0.0
        %3575 = vmatmul.mubr.f32.gmra.mxu0 %v3360
        %v3576 = vpop.f32.mrf.mxu0
        %v3577 = vadd.f32 0.0, %v3576
        %v3578 = vpop.f32.mrf.mxu0
        %3579 = vmatprep.mubr.f32.mxu0 0.0
        %3580 = vmatmul.mubr.f32.gmra.mxu0 %v3363
        %v3581 = vpop.f32.mrf.mxu0
        %v3582 = vadd.f32 0.0, %v3581
        %v3583 = vpop.f32.mrf.mxu0
        %3584 = vmatprep.mubr.f32.mxu0 0.0
        %3585 = vmatmul.mubr.f32.gmra.mxu0 %v3366
        %v3586 = vpop.f32.mrf.mxu0
        %v3587 = vadd.f32 0.0, %v3586
        %v3588 = vpop.f32.mrf.mxu0
        %3589 = vmatprep.mubr.f32.mxu0 0.0
        %3590 = vmatmul.mubr.f32.gmra.mxu0 %v3369
        %v3591 = vpop.f32.mrf.mxu0
        %v3592 = vadd.f32 0.0, %v3591
        %v3593 = vpop.f32.mrf.mxu0
        %3594 = vmatprep.mubr.f32.mxu0 0.0
        %3595 = vmatmul.mubr.f32.gmra.mxu0 %v3372
        %v3596 = vpop.f32.mrf.mxu0
        %v3597 = vadd.f32 0.0, %v3596
        %v3598 = vpop.f32.mrf.mxu0
        %3599 = vmatprep.mubr.f32.mxu0 0.0
        %3600 = vmatmul.mubr.f32.gmra.mxu0 %v3375
        %v3601 = vpop.f32.mrf.mxu0
        %v3602 = vadd.f32 0.0, %v3601
        %v3603 = vpop.f32.mrf.mxu0
        %3604 = vdwg.mxu0
        %v3605 = vadd.f32 %v3215, %v3447
        %v3606 = vadd.f32 %v3216, %v3452
        %v3607 = vadd.f32 %v3217, %v3457
        %v3608 = vadd.f32 %v3218, %v3462
        %v3609 = vadd.f32 %v3219, %v3467
        %v3610 = vadd.f32 %v3220, %v3472
        %v3611 = vadd.f32 %v3221, %v3477
        %v3612 = vadd.f32 %v3222, %v3482
        %v3613 = vadd.f32 %v3223, %v3487
        %v3614 = vadd.f32 %v3224, %v3492
        %v3615 = vadd.f32 %v3225, %v3497
        %v3616 = vadd.f32 %v3226, %v3502
        %v3617 = vadd.f32 %v3227, %v3507
        %v3618 = vadd.f32 %v3228, %v3512
        %v3619 = vadd.f32 %v3229, %v3517
        %v3620 = vadd.f32 %v3230, %v3522
        %v3621 = vadd.f32 %v3231, %v3527
        %v3622 = vadd.f32 %v3232, %v3532
        %v3623 = vadd.f32 %v3233, %v3537
        %v3624 = vadd.f32 %v3234, %v3542
        %v3625 = vadd.f32 %v3235, %v3547
        %v3626 = vadd.f32 %v3236, %v3552
        %v3627 = vadd.f32 %v3237, %v3557
        %v3628 = vadd.f32 %v3238, %v3562
        %v3629 = vadd.f32 %v3239, %v3567
        %v3630 = vadd.f32 %v3240, %v3572
        %v3631 = vadd.f32 %v3241, %v3577
        %v3632 = vadd.f32 %v3242, %v3582
        %v3633 = vadd.f32 %v3243, %v3587
        %v3634 = vadd.f32 %v3244, %v3592
        %v3635 = vadd.f32 %v3245, %v3597
        %v3636 = vadd.f32 %v3246, %v3602
        %v3637 = vld [vmem:[%s2856 + $0x9] sm:$0xff]
        %v3638 = vld [vmem:[%s2856 + $0x11] sm:$0xff]
        %v3639 = vld [vmem:[%s2856 + $0x29] sm:$0xff]
        %v3640 = vld [vmem:[%s2856 + $0x31] sm:$0xff]
        %v3641 = vld [vmem:[%s2856 + $0x49] sm:$0xff]
        %v3642 = vld [vmem:[%s2856 + $0x51] sm:$0xff]
        %v3643 = vld [vmem:[%s2856 + $0x69] sm:$0xff]
        %v3644 = vld [vmem:[%s2856 + $0x71] sm:$0xff]
        %v3645 = vld [vmem:[%s2856 + $0x89] sm:$0xff]
        %v3646 = vld [vmem:[%s2856 + $0x91] sm:$0xff]
        %v3647 = vld [vmem:[%s2856 + $0xa9] sm:$0xff]
        %v3648 = vld [vmem:[%s2856 + $0xb1] sm:$0xff]
        %v3649 = vld [vmem:[%s2856 + $0xc9] sm:$0xff]
        %v3650 = vld [vmem:[%s2856 + $0xd1] sm:$0xff]
        %v3651 = vld [vmem:[%s2856 + $0xe9] sm:$0xff]
        %v3652 = vld [vmem:[%s2856 + $0xf1] sm:$0xff]
        %v3653 = vld [vmem:[%s2856 + $0x109] sm:$0xff]
        %v3654 = vld [vmem:[%s2856 + $0x111] sm:$0xff]
        %v3655 = vld [vmem:[%s2856 + $0x129] sm:$0xff]
        %v3656 = vld [vmem:[%s2856 + $0x131] sm:$0xff]
        %v3657 = vld [vmem:[%s2856 + $0x149] sm:$0xff]
        %v3658 = vld [vmem:[%s2856 + $0x151] sm:$0xff]
        %v3659 = vld [vmem:[%s2856 + $0x169] sm:$0xff]
        %v3660 = vld [vmem:[%s2856 + $0x171] sm:$0xff]
        %v3661 = vld [vmem:[%s2856 + $0x189] sm:$0xff]
        %v3662 = vld [vmem:[%s2856 + $0x191] sm:$0xff]
        %v3663 = vld [vmem:[%s2856 + $0x1a9] sm:$0xff]
        %v3664 = vld [vmem:[%s2856 + $0x1b1] sm:$0xff]
        %v3665 = vld [vmem:[%s2856 + $0x1c9] sm:$0xff]
        %v3666 = vld [vmem:[%s2856 + $0x1d1] sm:$0xff]
        %v3667 = vld [vmem:[%s2856 + $0x1e9] sm:$0xff]
        %v3668 = vld [vmem:[%s2856 + $0x1f1] sm:$0xff]
        %s3669 = scalar_lea.vmem %s3, 32
        %v3670 = vld [vmem:[%s3669] sm:$0xf]
        %v3672 = vsel %vm500, %v3637, 0
        %v3675 = vsel %vm500, %v3638, 0
        %v3678 = vsel %vm500, %v3639, 0
        %v3681 = vsel %vm500, %v3640, 0
        %v3684 = vsel %vm500, %v3641, 0
        %v3687 = vsel %vm500, %v3642, 0
        %v3690 = vsel %vm500, %v3643, 0
        %v3693 = vsel %vm500, %v3644, 0
        %v3696 = vsel %vm500, %v3645, 0
        %v3699 = vsel %vm500, %v3646, 0
        %v3702 = vsel %vm500, %v3647, 0
        %v3705 = vsel %vm500, %v3648, 0
        %v3708 = vsel %vm500, %v3649, 0
        %v3711 = vsel %vm500, %v3650, 0
        %v3714 = vsel %vm500, %v3651, 0
        %v3717 = vsel %vm500, %v3652, 0
        %v3720 = vsel %vm500, %v3653, 0
        %v3723 = vsel %vm500, %v3654, 0
        %v3726 = vsel %vm500, %v3655, 0
        %v3729 = vsel %vm500, %v3656, 0
        %v3732 = vsel %vm500, %v3657, 0
        %v3735 = vsel %vm500, %v3658, 0
        %v3738 = vsel %vm500, %v3659, 0
        %v3741 = vsel %vm500, %v3660, 0
        %v3744 = vsel %vm500, %v3661, 0
        %v3747 = vsel %vm500, %v3662, 0
        %v3750 = vsel %vm500, %v3663, 0
        %v3753 = vsel %vm500, %v3664, 0
        %v3756 = vsel %vm500, %v3665, 0
        %v3759 = vsel %vm500, %v3666, 0
        %v3762 = vsel %vm500, %v3667, 0
        %v3765 = vsel %vm500, %v3668, 0
        %v3768 = vsel %vm743, %v3670, 0
        %3770 = vmatprep.subr.mxu0 0.0
        %3771 = vmatpush1.msra.mxu0 0.0
        %3772 = vmatprep.subr.mxu0 0.0
        %3773 = vmatpush1.msra.mxu0 0.0
        %3774 = vmatprep.subr.mxu0 0.0
        %3775 = vmatpush1.msra.mxu0 0.0
        %3776 = vmatprep.subr.mxu0 0.0
        %3777 = vmatpush1.msra.mxu0 0.0
        %3778 = vmatprep.subr.mxu0 0.0
        %3779 = vmatpush1.msra.mxu0 0.0
        %3780 = vmatprep.subr.mxu0 0.0
        %3781 = vmatpush1.msra.mxu0 0.0
        %3782 = vmatprep.subr.mxu0 0.0
        %3783 = vmatpush1.msra.mxu0 0.0
        %3784 = vmatprep.subr.mxu0 0.0
        %3785 = vmatpush1.msra.mxu0 0.0
        %3786 = vmatprep.subr.mxu0 0.0
        %3787 = vmatpush1.msra.mxu0 0.0
        %3788 = vmatprep.subr.mxu0 0.0
        %3789 = vmatpush1.msra.mxu0 0.0
        %3790 = vmatprep.subr.mxu0 0.0
        %3791 = vmatpush1.msra.mxu0 0.0
        %3792 = vmatprep.subr.mxu0 0.0
        %3793 = vmatpush1.msra.mxu0 0.0
        %3794 = vmatprep.subr.mxu0 0.0
        %3795 = vmatpush1.msra.mxu0 0.0
        %3796 = vmatprep.subr.mxu0 0.0
        %3797 = vmatpush1.msra.mxu0 0.0
        %3798 = vmatprep.subr.mxu0 0.0
        %3799 = vmatpush1.msra.mxu0 0.0
        %3800 = vmatprep.subr.mxu0 0.0
        %3801 = vmatpush1.msra.mxu0 %v3768
        %3802 = vmatprep.subr.mxu0 0.0
        %3803 = vmatpush2.msra.mxu0 0.0
        %3804 = vmatprep.subr.mxu0 0.0
        %3805 = vmatpush2.msra.mxu0 0.0
        %3806 = vmatprep.subr.mxu0 0.0
        %3807 = vmatpush2.msra.mxu0 0.0
        %3808 = vmatprep.subr.mxu0 0.0
        %3809 = vmatpush2.msra.mxu0 0.0
        %3810 = vmatprep.subr.mxu0 0.0
        %3811 = vmatpush2.msra.mxu0 0.0
        %3812 = vmatprep.subr.mxu0 0.0
        %3813 = vmatpush2.msra.mxu0 0.0
        %3814 = vmatprep.subr.mxu0 0.0
        %3815 = vmatpush2.msra.mxu0 0.0
        %3816 = vmatprep.subr.mxu0 0.0
        %3817 = vmatpush2.msra.mxu0 0.0
        %3818 = vmatprep.subr.mxu0 0.0
        %3819 = vmatpush2.msra.mxu0 0.0
        %3820 = vmatprep.subr.mxu0 0.0
        %3821 = vmatpush2.msra.mxu0 0.0
        %3822 = vmatprep.subr.mxu0 0.0
        %3823 = vmatpush2.msra.mxu0 0.0
        %3824 = vmatprep.subr.mxu0 0.0
        %3825 = vmatpush2.msra.mxu0 0.0
        %3826 = vmatprep.subr.mxu0 0.0
        %3827 = vmatpush2.msra.mxu0 0.0
        %3828 = vmatprep.subr.mxu0 0.0
        %3829 = vmatpush2.msra.mxu0 0.0
        %3830 = vmatprep.subr.mxu0 0.0
        %3831 = vmatpush2.msra.mxu0 0.0
        %3832 = vmatprep.subr.mxu0 0.0
        %3833 = vmatpush2.msra.mxu0 0.0
        %3834 = vmatprep.mubr.f32.mxu0 0.0
        %3835 = vmatmul.mubr.f32.gmra.mxu0 %v3672
        %v3836 = vpop.f32.mrf.mxu0
        %v3837 = vadd.f32 0.0, %v3836
        %v3838 = vpop.f32.mrf.mxu0
        %3839 = vmatprep.mubr.f32.mxu0 0.0
        %3840 = vmatmul.mubr.f32.gmra.mxu0 %v3675
        %v3841 = vpop.f32.mrf.mxu0
        %v3842 = vadd.f32 0.0, %v3841
        %v3843 = vpop.f32.mrf.mxu0
        %3844 = vmatprep.mubr.f32.mxu0 0.0
        %3845 = vmatmul.mubr.f32.gmra.mxu0 %v3678
        %v3846 = vpop.f32.mrf.mxu0
        %v3847 = vadd.f32 0.0, %v3846
        %v3848 = vpop.f32.mrf.mxu0
        %3849 = vmatprep.mubr.f32.mxu0 0.0
        %3850 = vmatmul.mubr.f32.gmra.mxu0 %v3681
        %v3851 = vpop.f32.mrf.mxu0
        %v3852 = vadd.f32 0.0, %v3851
        %v3853 = vpop.f32.mrf.mxu0
        %3854 = vmatprep.mubr.f32.mxu0 0.0
        %3855 = vmatmul.mubr.f32.gmra.mxu0 %v3684
        %v3856 = vpop.f32.mrf.mxu0
        %v3857 = vadd.f32 0.0, %v3856
        %v3858 = vpop.f32.mrf.mxu0
        %3859 = vmatprep.mubr.f32.mxu0 0.0
        %3860 = vmatmul.mubr.f32.gmra.mxu0 %v3687
        %v3861 = vpop.f32.mrf.mxu0
        %v3862 = vadd.f32 0.0, %v3861
        %v3863 = vpop.f32.mrf.mxu0
        %3864 = vmatprep.mubr.f32.mxu0 0.0
        %3865 = vmatmul.mubr.f32.gmra.mxu0 %v3690
        %v3866 = vpop.f32.mrf.mxu0
        %v3867 = vadd.f32 0.0, %v3866
        %v3868 = vpop.f32.mrf.mxu0
        %3869 = vmatprep.mubr.f32.mxu0 0.0
        %3870 = vmatmul.mubr.f32.gmra.mxu0 %v3693
        %v3871 = vpop.f32.mrf.mxu0
        %v3872 = vadd.f32 0.0, %v3871
        %v3873 = vpop.f32.mrf.mxu0
        %3874 = vmatprep.mubr.f32.mxu0 0.0
        %3875 = vmatmul.mubr.f32.gmra.mxu0 %v3696
        %v3876 = vpop.f32.mrf.mxu0
        %v3877 = vadd.f32 0.0, %v3876
        %v3878 = vpop.f32.mrf.mxu0
        %3879 = vmatprep.mubr.f32.mxu0 0.0
        %3880 = vmatmul.mubr.f32.gmra.mxu0 %v3699
        %v3881 = vpop.f32.mrf.mxu0
        %v3882 = vadd.f32 0.0, %v3881
        %v3883 = vpop.f32.mrf.mxu0
        %3884 = vmatprep.mubr.f32.mxu0 0.0
        %3885 = vmatmul.mubr.f32.gmra.mxu0 %v3702
        %v3886 = vpop.f32.mrf.mxu0
        %v3887 = vadd.f32 0.0, %v3886
        %v3888 = vpop.f32.mrf.mxu0
        %3889 = vmatprep.mubr.f32.mxu0 0.0
        %3890 = vmatmul.mubr.f32.gmra.mxu0 %v3705
        %v3891 = vpop.f32.mrf.mxu0
        %v3892 = vadd.f32 0.0, %v3891
        %v3893 = vpop.f32.mrf.mxu0
        %3894 = vmatprep.mubr.f32.mxu0 0.0
        %3895 = vmatmul.mubr.f32.gmra.mxu0 %v3708
        %v3896 = vpop.f32.mrf.mxu0
        %v3897 = vadd.f32 0.0, %v3896
        %v3898 = vpop.f32.mrf.mxu0
        %3899 = vmatprep.mubr.f32.mxu0 0.0
        %3900 = vmatmul.mubr.f32.gmra.mxu0 %v3711
        %v3901 = vpop.f32.mrf.mxu0
        %v3902 = vadd.f32 0.0, %v3901
        %v3903 = vpop.f32.mrf.mxu0
        %3904 = vmatprep.mubr.f32.mxu0 0.0
        %3905 = vmatmul.mubr.f32.gmra.mxu0 %v3714
        %v3906 = vpop.f32.mrf.mxu0
        %v3907 = vadd.f32 0.0, %v3906
        %v3908 = vpop.f32.mrf.mxu0
        %3909 = vmatprep.mubr.f32.mxu0 0.0
        %3910 = vmatmul.mubr.f32.gmra.mxu0 %v3717
        %v3911 = vpop.f32.mrf.mxu0
        %v3912 = vadd.f32 0.0, %v3911
        %v3913 = vpop.f32.mrf.mxu0
        %3914 = vmatprep.mubr.f32.mxu0 0.0
        %3915 = vmatmul.mubr.f32.gmra.mxu0 %v3720
        %v3916 = vpop.f32.mrf.mxu0
        %v3917 = vadd.f32 0.0, %v3916
        %v3918 = vpop.f32.mrf.mxu0
        %3919 = vmatprep.mubr.f32.mxu0 0.0
        %3920 = vmatmul.mubr.f32.gmra.mxu0 %v3723
        %v3921 = vpop.f32.mrf.mxu0
        %v3922 = vadd.f32 0.0, %v3921
        %v3923 = vpop.f32.mrf.mxu0
        %3924 = vmatprep.mubr.f32.mxu0 0.0
        %3925 = vmatmul.mubr.f32.gmra.mxu0 %v3726
        %v3926 = vpop.f32.mrf.mxu0
        %v3927 = vadd.f32 0.0, %v3926
        %v3928 = vpop.f32.mrf.mxu0
        %3929 = vmatprep.mubr.f32.mxu0 0.0
        %3930 = vmatmul.mubr.f32.gmra.mxu0 %v3729
        %v3931 = vpop.f32.mrf.mxu0
        %v3932 = vadd.f32 0.0, %v3931
        %v3933 = vpop.f32.mrf.mxu0
        %3934 = vmatprep.mubr.f32.mxu0 0.0
        %3935 = vmatmul.mubr.f32.gmra.mxu0 %v3732
        %v3936 = vpop.f32.mrf.mxu0
        %v3937 = vadd.f32 0.0, %v3936
        %v3938 = vpop.f32.mrf.mxu0
        %3939 = vmatprep.mubr.f32.mxu0 0.0
        %3940 = vmatmul.mubr.f32.gmra.mxu0 %v3735
        %v3941 = vpop.f32.mrf.mxu0
        %v3942 = vadd.f32 0.0, %v3941
        %v3943 = vpop.f32.mrf.mxu0
        %3944 = vmatprep.mubr.f32.mxu0 0.0
        %3945 = vmatmul.mubr.f32.gmra.mxu0 %v3738
        %v3946 = vpop.f32.mrf.mxu0
        %v3947 = vadd.f32 0.0, %v3946
        %v3948 = vpop.f32.mrf.mxu0
        %3949 = vmatprep.mubr.f32.mxu0 0.0
        %3950 = vmatmul.mubr.f32.gmra.mxu0 %v3741
        %v3951 = vpop.f32.mrf.mxu0
        %v3952 = vadd.f32 0.0, %v3951
        %v3953 = vpop.f32.mrf.mxu0
        %3954 = vmatprep.mubr.f32.mxu0 0.0
        %3955 = vmatmul.mubr.f32.gmra.mxu0 %v3744
        %v3956 = vpop.f32.mrf.mxu0
        %v3957 = vadd.f32 0.0, %v3956
        %v3958 = vpop.f32.mrf.mxu0
        %3959 = vmatprep.mubr.f32.mxu0 0.0
        %3960 = vmatmul.mubr.f32.gmra.mxu0 %v3747
        %v3961 = vpop.f32.mrf.mxu0
        %v3962 = vadd.f32 0.0, %v3961
        %v3963 = vpop.f32.mrf.mxu0
        %3964 = vmatprep.mubr.f32.mxu0 0.0
        %3965 = vmatmul.mubr.f32.gmra.mxu0 %v3750
        %v3966 = vpop.f32.mrf.mxu0
        %v3967 = vadd.f32 0.0, %v3966
        %v3968 = vpop.f32.mrf.mxu0
        %3969 = vmatprep.mubr.f32.mxu0 0.0
        %3970 = vmatmul.mubr.f32.gmra.mxu0 %v3753
        %v3971 = vpop.f32.mrf.mxu0
        %v3972 = vadd.f32 0.0, %v3971
        %v3973 = vpop.f32.mrf.mxu0
        %3974 = vmatprep.mubr.f32.mxu0 0.0
        %3975 = vmatmul.mubr.f32.gmra.mxu0 %v3756
        %v3976 = vpop.f32.mrf.mxu0
        %v3977 = vadd.f32 0.0, %v3976
        %v3978 = vpop.f32.mrf.mxu0
        %3979 = vmatprep.mubr.f32.mxu0 0.0
        %3980 = vmatmul.mubr.f32.gmra.mxu0 %v3759
        %v3981 = vpop.f32.mrf.mxu0
        %v3982 = vadd.f32 0.0, %v3981
        %v3983 = vpop.f32.mrf.mxu0
        %3984 = vmatprep.mubr.f32.mxu0 0.0
        %3985 = vmatmul.mubr.f32.gmra.mxu0 %v3762
        %v3986 = vpop.f32.mrf.mxu0
        %v3987 = vadd.f32 0.0, %v3986
        %v3988 = vpop.f32.mrf.mxu0
        %3989 = vmatprep.mubr.f32.mxu0 0.0
        %3990 = vmatmul.mubr.f32.gmra.mxu0 %v3765
        %v3991 = vpop.f32.mrf.mxu0
        %v3992 = vadd.f32 0.0, %v3991
        %v3993 = vpop.f32.mrf.mxu0
        %3994 = vdwg.mxu0
        %v3995 = vadd.f32 %v3605, %v3837
        %v3996 = vadd.f32 %v3606, %v3842
        %v3997 = vadd.f32 %v3607, %v3847
        %v3998 = vadd.f32 %v3608, %v3852
        %v3999 = vadd.f32 %v3609, %v3857
        %v4000 = vadd.f32 %v3610, %v3862
        %v4001 = vadd.f32 %v3611, %v3867
        %v4002 = vadd.f32 %v3612, %v3872
        %v4003 = vadd.f32 %v3613, %v3877
        %v4004 = vadd.f32 %v3614, %v3882
        %v4005 = vadd.f32 %v3615, %v3887
        %v4006 = vadd.f32 %v3616, %v3892
        %v4007 = vadd.f32 %v3617, %v3897
        %v4008 = vadd.f32 %v3618, %v3902
        %v4009 = vadd.f32 %v3619, %v3907
        %v4010 = vadd.f32 %v3620, %v3912
        %v4011 = vadd.f32 %v3621, %v3917
        %v4012 = vadd.f32 %v3622, %v3922
        %v4013 = vadd.f32 %v3623, %v3927
        %v4014 = vadd.f32 %v3624, %v3932
        %v4015 = vadd.f32 %v3625, %v3937
        %v4016 = vadd.f32 %v3626, %v3942
        %v4017 = vadd.f32 %v3627, %v3947
        %v4018 = vadd.f32 %v3628, %v3952
        %v4019 = vadd.f32 %v3629, %v3957
        %v4020 = vadd.f32 %v3630, %v3962
        %v4021 = vadd.f32 %v3631, %v3967
        %v4022 = vadd.f32 %v3632, %v3972
        %v4023 = vadd.f32 %v3633, %v3977
        %v4024 = vadd.f32 %v3634, %v3982
        %v4025 = vadd.f32 %v3635, %v3987
        %v4026 = vadd.f32 %v3636, %v3992
        %v4027 = vld [vmem:[%s4] sm:$0x1]
        %v4029 = vlaneseq
        %v4030 = vshrl.u32 %v4029, 7
        %v4031 = vsub.s32 0, %v4030
        %v4032 = vrot.slane %v4027, %v4031
        %v4034 = vmul.f32 %v3995, %v4032
        %v4035 = vmul.f32 %v3996, %v4032
        %v4036 = vmul.f32 %v3997, %v4032
        %v4037 = vmul.f32 %v3998, %v4032
        %v4038 = vmul.f32 %v3999, %v4032
        %v4039 = vmul.f32 %v4000, %v4032
        %v4040 = vmul.f32 %v4001, %v4032
        %v4041 = vmul.f32 %v4002, %v4032
        %v4042 = vmul.f32 %v4003, %v4032
        %v4043 = vmul.f32 %v4004, %v4032
        %v4044 = vmul.f32 %v4005, %v4032
        %v4045 = vmul.f32 %v4006, %v4032
        %v4046 = vmul.f32 %v4007, %v4032
        %v4047 = vmul.f32 %v4008, %v4032
        %v4048 = vmul.f32 %v4009, %v4032
        %v4049 = vmul.f32 %v4010, %v4032
        %v4050 = vmul.f32 %v4011, %v4032
        %v4051 = vmul.f32 %v4012, %v4032
        %v4052 = vmul.f32 %v4013, %v4032
        %v4053 = vmul.f32 %v4014, %v4032
        %v4054 = vmul.f32 %v4015, %v4032
        %v4055 = vmul.f32 %v4016, %v4032
        %v4056 = vmul.f32 %v4017, %v4032
        %v4057 = vmul.f32 %v4018, %v4032
        %v4058 = vmul.f32 %v4019, %v4032
        %v4059 = vmul.f32 %v4020, %v4032
        %v4060 = vmul.f32 %v4021, %v4032
        %v4061 = vmul.f32 %v4022, %v4032
        %v4062 = vmul.f32 %v4023, %v4032
        %v4063 = vmul.f32 %v4024, %v4032
        %v4064 = vmul.f32 %v4025, %v4032
        %v4065 = vmul.f32 %v4026, %v4032
        %v4066 = vld [vmem:[%s5] sm:$0x1]
        %v4068 = vlaneseq
        %v4069 = vshrl.u32 %v4068, 7
        %v4070 = vsub.s32 0, %v4069
        %v4071 = vrot.slane %v4066, %v4070
        %v4073 = vadd.f32 %v4034, %v4071
        %v4074 = vadd.f32 %v4035, %v4071
        %v4075 = vadd.f32 %v4036, %v4071
        %v4076 = vadd.f32 %v4037, %v4071
        %v4077 = vadd.f32 %v4038, %v4071
        %v4078 = vadd.f32 %v4039, %v4071
        %v4079 = vadd.f32 %v4040, %v4071
        %v4080 = vadd.f32 %v4041, %v4071
        %v4081 = vadd.f32 %v4042, %v4071
        %v4082 = vadd.f32 %v4043, %v4071
        %v4083 = vadd.f32 %v4044, %v4071
        %v4084 = vadd.f32 %v4045, %v4071
        %v4085 = vadd.f32 %v4046, %v4071
        %v4086 = vadd.f32 %v4047, %v4071
        %v4087 = vadd.f32 %v4048, %v4071
        %v4088 = vadd.f32 %v4049, %v4071
        %v4089 = vadd.f32 %v4050, %v4071
        %v4090 = vadd.f32 %v4051, %v4071
        %v4091 = vadd.f32 %v4052, %v4071
        %v4092 = vadd.f32 %v4053, %v4071
        %v4093 = vadd.f32 %v4054, %v4071
        %v4094 = vadd.f32 %v4055, %v4071
        %v4095 = vadd.f32 %v4056, %v4071
        %v4096 = vadd.f32 %v4057, %v4071
        %v4097 = vadd.f32 %v4058, %v4071
        %v4098 = vadd.f32 %v4059, %v4071
        %v4099 = vadd.f32 %v4060, %v4071
        %v4100 = vadd.f32 %v4061, %v4071
        %v4101 = vadd.f32 %v4062, %v4071
        %v4102 = vadd.f32 %v4063, %v4071
        %v4103 = vadd.f32 %v4064, %v4071
        %v4104 = vadd.f32 %v4065, %v4071
        %v4105 = vmax.f32 %v4073, 0.0
        %v4106 = vmax.f32 %v4074, 0.0
        %v4107 = vmax.f32 %v4075, 0.0
        %v4108 = vmax.f32 %v4076, 0.0
        %v4109 = vmax.f32 %v4077, 0.0
        %v4110 = vmax.f32 %v4078, 0.0
        %v4111 = vmax.f32 %v4079, 0.0
        %v4112 = vmax.f32 %v4080, 0.0
        %v4113 = vmax.f32 %v4081, 0.0
        %v4114 = vmax.f32 %v4082, 0.0
        %v4115 = vmax.f32 %v4083, 0.0
        %v4116 = vmax.f32 %v4084, 0.0
        %v4117 = vmax.f32 %v4085, 0.0
        %v4118 = vmax.f32 %v4086, 0.0
        %v4119 = vmax.f32 %v4087, 0.0
        %v4120 = vmax.f32 %v4088, 0.0
        %v4121 = vmax.f32 %v4089, 0.0
        %v4122 = vmax.f32 %v4090, 0.0
        %v4123 = vmax.f32 %v4091, 0.0
        %v4124 = vmax.f32 %v4092, 0.0
        %v4125 = vmax.f32 %v4093, 0.0
        %v4126 = vmax.f32 %v4094, 0.0
        %v4127 = vmax.f32 %v4095, 0.0
        %v4128 = vmax.f32 %v4096, 0.0
        %v4129 = vmax.f32 %v4097, 0.0
        %v4130 = vmax.f32 %v4098, 0.0
        %v4131 = vmax.f32 %v4099, 0.0
        %v4132 = vmax.f32 %v4100, 0.0
        %v4133 = vmax.f32 %v4101, 0.0
        %v4134 = vmax.f32 %v4102, 0.0
        %v4135 = vmax.f32 %v4103, 0.0
        %v4136 = vmax.f32 %v4104, 0.0
        %vm4137 = vcmask 64512
        %4138 = vst.msk [vmem:[#allocation3] sm:$0xff] %vm4137, 0.0
        %4139 = vst.msk [vmem:[#allocation3 + $0x8] sm:$0xff] %vm4137, 0.0
        %4140 = vst.msk [vmem:[#allocation3 + $0x10] sm:$0xff] %vm4137, 0.0
        %vm4141 = vcmask 57344
        %4142 = vst.msk [vmem:[#allocation3 + $0x18] sm:$0x1] %vm4141, 0.0
        %s4143 = scalar_lea.vmem [#allocation3], 544
        %4144 = vst.msk [vmem:[%s4143] sm:$0xff] %vm4137, 0.0
        %4145 = vst.msk [vmem:[%s4143 + $0x8] sm:$0xff] %vm4137, 0.0
        %4146 = vst.msk [vmem:[%s4143 + $0x10] sm:$0xff] %vm4137, 0.0
        %4147 = vst.msk [vmem:[%s4143 + $0x18] sm:$0x1] %vm4141, 0.0
        %4148 = vst.msk [vmem:[#allocation3 + $0x7] sm:$0x1] %vm4141, 0.0
        %4149 = vst.msk [vmem:[#allocation3 + $0x27] sm:$0x1] %vm4141, 0.0
        %4150 = vst.msk [vmem:[#allocation3 + $0x47] sm:$0x1] %vm4141, 0.0
        %4151 = vst.msk [vmem:[#allocation3 + $0x67] sm:$0x1] %vm4141, 0.0
        %4152 = vst.msk [vmem:[#allocation3 + $0x87] sm:$0x1] %vm4141, 0.0
        %4153 = vst.msk [vmem:[#allocation3 + $0xa7] sm:$0x1] %vm4141, 0.0
        %4154 = vst.msk [vmem:[#allocation3 + $0xc7] sm:$0x1] %vm4141, 0.0
        %4155 = vst.msk [vmem:[#allocation3 + $0xe7] sm:$0x1] %vm4141, 0.0
        %4156 = vst.msk [vmem:[#allocation3 + $0x107] sm:$0x1] %vm4141, 0.0
        %4157 = vst.msk [vmem:[#allocation3 + $0x127] sm:$0x1] %vm4141, 0.0
        %4158 = vst.msk [vmem:[#allocation3 + $0x147] sm:$0x1] %vm4141, 0.0
        %4159 = vst.msk [vmem:[#allocation3 + $0x167] sm:$0x1] %vm4141, 0.0
        %4160 = vst.msk [vmem:[#allocation3 + $0x187] sm:$0x1] %vm4141, 0.0
        %4161 = vst.msk [vmem:[#allocation3 + $0x1a7] sm:$0x1] %vm4141, 0.0
        %4162 = vst.msk [vmem:[#allocation3 + $0x1c7] sm:$0x1] %vm4141, 0.0
        %4163 = vst.msk [vmem:[#allocation3 + $0x1e7] sm:$0x1] %vm4141, 0.0
        %4164 = vst.msk [vmem:[#allocation3 + $0x207] sm:$0x1] %vm4141, 0.0
        %4165 = vst.msk [vmem:[#allocation3 + $0x227] sm:$0x1] %vm4141, 0.0
        %4166 = vst.msk [vmem:[#allocation3 + $0x18] sm:$0x1] %vm4141, 0.0
        %4167 = vst.msk [vmem:[#allocation3 + $0x38] sm:$0x1] %vm4141, 0.0
        %4168 = vst.msk [vmem:[#allocation3 + $0x58] sm:$0x1] %vm4141, 0.0
        %4169 = vst.msk [vmem:[#allocation3 + $0x78] sm:$0x1] %vm4141, 0.0
        %4170 = vst.msk [vmem:[#allocation3 + $0x98] sm:$0x1] %vm4141, 0.0
        %4171 = vst.msk [vmem:[#allocation3 + $0xb8] sm:$0x1] %vm4141, 0.0
        %4172 = vst.msk [vmem:[#allocation3 + $0xd8] sm:$0x1] %vm4141, 0.0
        %4173 = vst.msk [vmem:[#allocation3 + $0xf8] sm:$0x1] %vm4141, 0.0
        %4174 = vst.msk [vmem:[#allocation3 + $0x118] sm:$0x1] %vm4141, 0.0
        %4175 = vst.msk [vmem:[#allocation3 + $0x138] sm:$0x1] %vm4141, 0.0
        %4176 = vst.msk [vmem:[#allocation3 + $0x158] sm:$0x1] %vm4141, 0.0
        %4177 = vst.msk [vmem:[#allocation3 + $0x178] sm:$0x1] %vm4141, 0.0
        %4178 = vst.msk [vmem:[#allocation3 + $0x198] sm:$0x1] %vm4141, 0.0
        %4179 = vst.msk [vmem:[#allocation3 + $0x1b8] sm:$0x1] %vm4141, 0.0
        %4180 = vst.msk [vmem:[#allocation3 + $0x1d8] sm:$0x1] %vm4141, 0.0
        %4181 = vst.msk [vmem:[#allocation3 + $0x1f8] sm:$0x1] %vm4141, 0.0
        %4182 = vst.msk [vmem:[#allocation3 + $0x218] sm:$0x1] %vm4141, 0.0
        %4183 = vst.msk [vmem:[#allocation3 + $0x238] sm:$0x1] %vm4141, 0.0
        %s4184 = scalar_lea.vmem [#allocation3], 32
        %4185 = vst.msk [vmem:[%s4184 + $0x8] sm:$0xff] %vm4137, %v4105
        %4186 = vst.msk [vmem:[%s4184 + $0x10] sm:$0xff] %vm4137, %v4106
        %4187 = vst.msk [vmem:[%s4184 + $0x28] sm:$0xff] %vm4137, %v4107
        %4188 = vst.msk [vmem:[%s4184 + $0x30] sm:$0xff] %vm4137, %v4108
        %4189 = vst.msk [vmem:[%s4184 + $0x48] sm:$0xff] %vm4137, %v4109
        %4190 = vst.msk [vmem:[%s4184 + $0x50] sm:$0xff] %vm4137, %v4110
        %4191 = vst.msk [vmem:[%s4184 + $0x68] sm:$0xff] %vm4137, %v4111
        %4192 = vst.msk [vmem:[%s4184 + $0x70] sm:$0xff] %vm4137, %v4112
        %4193 = vst.msk [vmem:[%s4184 + $0x88] sm:$0xff] %vm4137, %v4113
        %4194 = vst.msk [vmem:[%s4184 + $0x90] sm:$0xff] %vm4137, %v4114
        %4195 = vst.msk [vmem:[%s4184 + $0xa8] sm:$0xff] %vm4137, %v4115
        %4196 = vst.msk [vmem:[%s4184 + $0xb0] sm:$0xff] %vm4137, %v4116
        %4197 = vst.msk [vmem:[%s4184 + $0xc8] sm:$0xff] %vm4137, %v4117
        %4198 = vst.msk [vmem:[%s4184 + $0xd0] sm:$0xff] %vm4137, %v4118
        %4199 = vst.msk [vmem:[%s4184 + $0xe8] sm:$0xff] %vm4137, %v4119
        %4200 = vst.msk [vmem:[%s4184 + $0xf0] sm:$0xff] %vm4137, %v4120
        %4201 = vst.msk [vmem:[%s4184 + $0x108] sm:$0xff] %vm4137, %v4121
        %4202 = vst.msk [vmem:[%s4184 + $0x110] sm:$0xff] %vm4137, %v4122
        %4203 = vst.msk [vmem:[%s4184 + $0x128] sm:$0xff] %vm4137, %v4123
        %4204 = vst.msk [vmem:[%s4184 + $0x130] sm:$0xff] %vm4137, %v4124
        %4205 = vst.msk [vmem:[%s4184 + $0x148] sm:$0xff] %vm4137, %v4125
        %4206 = vst.msk [vmem:[%s4184 + $0x150] sm:$0xff] %vm4137, %v4126
        %4207 = vst.msk [vmem:[%s4184 + $0x168] sm:$0xff] %vm4137, %v4127
        %4208 = vst.msk [vmem:[%s4184 + $0x170] sm:$0xff] %vm4137, %v4128
        %4209 = vst.msk [vmem:[%s4184 + $0x188] sm:$0xff] %vm4137, %v4129
        %4210 = vst.msk [vmem:[%s4184 + $0x190] sm:$0xff] %vm4137, %v4130
        %4211 = vst.msk [vmem:[%s4184 + $0x1a8] sm:$0xff] %vm4137, %v4131
        %4212 = vst.msk [vmem:[%s4184 + $0x1b0] sm:$0xff] %vm4137, %v4132
        %4213 = vst.msk [vmem:[%s4184 + $0x1c8] sm:$0xff] %vm4137, %v4133
        %4214 = vst.msk [vmem:[%s4184 + $0x1d0] sm:$0xff] %vm4137, %v4134
        %4215 = vst.msk [vmem:[%s4184 + $0x1e8] sm:$0xff] %vm4137, %v4135
        %4216 = vst.msk [vmem:[%s4184 + $0x1f0] sm:$0xff] %vm4137, %v4136
        %s4217 = scalar_lea.vmem [#allocation3], 7
        %v4218 = vld [vmem:[%s4217] ss:$2 sm:$0xff]
        %s4219 = scalar_lea.vmem [#allocation3], 39
        %v4220 = vld [vmem:[%s4219] ss:$2 sm:$0xff]
        %s4221 = scalar_lea.vmem [#allocation3], 71
        %v4222 = vld [vmem:[%s4221] ss:$2 sm:$0xff]
        %s4223 = scalar_lea.vmem [#allocation3], 103
        %v4224 = vld [vmem:[%s4223] ss:$2 sm:$0xff]
        %s4225 = scalar_lea.vmem [#allocation3], 135
        %v4226 = vld [vmem:[%s4225] ss:$2 sm:$0xff]
        %s4227 = scalar_lea.vmem [#allocation3], 167
        %v4228 = vld [vmem:[%s4227] ss:$2 sm:$0xff]
        %s4229 = scalar_lea.vmem [#allocation3], 199
        %v4230 = vld [vmem:[%s4229] ss:$2 sm:$0xff]
        %s4231 = scalar_lea.vmem [#allocation3], 231
        %v4232 = vld [vmem:[%s4231] ss:$2 sm:$0xff]
        %s4233 = scalar_lea.vmem [#allocation3], 263
        %v4234 = vld [vmem:[%s4233] ss:$2 sm:$0xff]
        %s4235 = scalar_lea.vmem [#allocation3], 295
        %v4236 = vld [vmem:[%s4235] ss:$2 sm:$0xff]
        %s4237 = scalar_lea.vmem [#allocation3], 327
        %v4238 = vld [vmem:[%s4237] ss:$2 sm:$0xff]
        %s4239 = scalar_lea.vmem [#allocation3], 359
        %v4240 = vld [vmem:[%s4239] ss:$2 sm:$0xff]
        %s4241 = scalar_lea.vmem [#allocation3], 391
        %v4242 = vld [vmem:[%s4241] ss:$2 sm:$0xff]
        %s4243 = scalar_lea.vmem [#allocation3], 423
        %v4244 = vld [vmem:[%s4243] ss:$2 sm:$0xff]
        %s4245 = scalar_lea.vmem [#allocation3], 455
        %v4246 = vld [vmem:[%s4245] ss:$2 sm:$0xff]
        %s4247 = scalar_lea.vmem [#allocation3], 487
        %v4248 = vld [vmem:[%s4247] ss:$2 sm:$0xff]
        %s4249 = scalar_lea.vmem [#allocation3], 519
        %v4250 = vld [vmem:[%s4249] ss:$2 sm:$0xff]
        %s4251 = scalar_lea.vmem [#allocation3], 551
        %v4252 = vld [vmem:[%s4251] ss:$2 sm:$0xff]
        %4253 = vst.msk [vmem:[#allocation4] sm:$0xff] %vm4137, %v4218
        %4254 = vst.msk [vmem:[#allocation4 + $0x8] sm:$0xff] %vm4137, %v4220
        %4255 = vst.msk [vmem:[#allocation4 + $0x10] sm:$0xff] %vm4137, %v4222
        %4256 = vst.msk [vmem:[#allocation4 + $0x18] sm:$0xff] %vm4137, %v4224
        %4257 = vst.msk [vmem:[#allocation4 + $0x20] sm:$0xff] %vm4137, %v4226
        %4258 = vst.msk [vmem:[#allocation4 + $0x28] sm:$0xff] %vm4137, %v4228
        %4259 = vst.msk [vmem:[#allocation4 + $0x30] sm:$0xff] %vm4137, %v4230
        %4260 = vst.msk [vmem:[#allocation4 + $0x38] sm:$0xff] %vm4137, %v4232
        %4261 = vst.msk [vmem:[#allocation4 + $0x40] sm:$0xff] %vm4137, %v4234
        %4262 = vst.msk [vmem:[#allocation4 + $0x48] sm:$0xff] %vm4137, %v4236
        %4263 = vst.msk [vmem:[#allocation4 + $0x50] sm:$0xff] %vm4137, %v4238
        %4264 = vst.msk [vmem:[#allocation4 + $0x58] sm:$0xff] %vm4137, %v4240
        %4265 = vst.msk [vmem:[#allocation4 + $0x60] sm:$0xff] %vm4137, %v4242
        %4266 = vst.msk [vmem:[#allocation4 + $0x68] sm:$0xff] %vm4137, %v4244
        %4267 = vst.msk [vmem:[#allocation4 + $0x70] sm:$0xff] %vm4137, %v4246
        %4268 = vst.msk [vmem:[#allocation4 + $0x78] sm:$0xff] %vm4137, %v4248
        %4269 = vst.msk [vmem:[#allocation4 + $0x80] sm:$0xff] %vm4137, %v4250
        %4270 = vst.msk [vmem:[#allocation4 + $0x88] sm:$0xff] %vm4137, %v4252
        %v4271 = vld [vmem:[#allocation4] sm:$0xff]
        %v4272 = vld [vmem:[#allocation4 + $0x10] sm:$0xff]
        %v4273 = vld [vmem:[#allocation4 + $0x20] sm:$0xff]
        %v4274 = vld [vmem:[#allocation4 + $0x30] sm:$0xff]
        %v4275 = vld [vmem:[#allocation4 + $0x40] sm:$0xff]
        %v4276 = vld [vmem:[#allocation4 + $0x50] sm:$0xff]
        %v4277 = vld [vmem:[#allocation4 + $0x60] sm:$0xff]
        %v4278 = vld [vmem:[#allocation4 + $0x70] sm:$0xff]
        %v4279 = vld [vmem:[%s6] sm:$0xff]
        %s4280 = scalar_lea.vmem [#allocation4], 8
        %v4281 = vld [vmem:[%s4280] sm:$0xff]
        %v4282 = vld [vmem:[%s4280 + $0x10] sm:$0xff]
        %v4283 = vld [vmem:[%s4280 + $0x20] sm:$0xff]
        %v4284 = vld [vmem:[%s4280 + $0x30] sm:$0xff]
        %v4285 = vld [vmem:[%s4280 + $0x40] sm:$0xff]
        %v4286 = vld [vmem:[%s4280 + $0x50] sm:$0xff]
        %v4287 = vld [vmem:[%s4280 + $0x60] sm:$0xff]
        %v4288 = vld [vmem:[%s4280 + $0x70] sm:$0xff]
        %s4289 = scalar_lea.vmem %s6, 24
        %v4290 = vld [vmem:[%s4289] sm:$0xff]
        %v4292 = vsel %vm4137, %v4281, 0
        %v4295 = vsel %vm4137, %v4282, 0
        %v4298 = vsel %vm4137, %v4283, 0
        %v4301 = vsel %vm4137, %v4284, 0
        %v4304 = vsel %vm4137, %v4285, 0
        %v4307 = vsel %vm4137, %v4286, 0
        %v4310 = vsel %vm4137, %v4287, 0
        %v4313 = vsel %vm4137, %v4288, 0
        %4315 = vmatprep.subr.mxu0 0.0
        %4316 = vmatpush1.msra.mxu0 0.0
        %4317 = vmatprep.subr.mxu0 0.0
        %4318 = vmatpush1.msra.mxu0 0.0
        %4319 = vmatprep.subr.mxu0 0.0
        %4320 = vmatpush1.msra.mxu0 0.0
        %4321 = vmatprep.subr.mxu0 0.0
        %4322 = vmatpush1.msra.mxu0 0.0
        %4323 = vmatprep.subr.mxu0 0.0
        %4324 = vmatpush1.msra.mxu0 0.0
        %4325 = vmatprep.subr.mxu0 0.0
        %4326 = vmatpush1.msra.mxu0 0.0
        %4327 = vmatprep.subr.mxu0 0.0
        %4328 = vmatpush1.msra.mxu0 0.0
        %4329 = vmatprep.subr.mxu0 0.0
        %4330 = vmatpush1.msra.mxu0 0.0
        %4331 = vmatprep.subr.mxu0 0.0
        %4332 = vmatpush1.msra.mxu0 0.0
        %4333 = vmatprep.subr.mxu0 0.0
        %4334 = vmatpush1.msra.mxu0 0.0
        %4335 = vmatprep.subr.mxu0 0.0
        %4336 = vmatpush1.msra.mxu0 0.0
        %4337 = vmatprep.subr.mxu0 0.0
        %4338 = vmatpush1.msra.mxu0 0.0
        %4339 = vmatprep.subr.mxu0 0.0
        %4340 = vmatpush1.msra.mxu0 0.0
        %4341 = vmatprep.subr.mxu0 0.0
        %4342 = vmatpush1.msra.mxu0 0.0
        %4343 = vmatprep.subr.mxu0 0.0
        %4344 = vmatpush1.msra.mxu0 0.0
        %4345 = vmatprep.subr.mxu0 0.0
        %4346 = vmatpush1.msra.mxu0 %v4290
        %4347 = vmatprep.subr.mxu0 0.0
        %4348 = vmatpush2.msra.mxu0 0.0
        %4349 = vmatprep.subr.mxu0 0.0
        %4350 = vmatpush2.msra.mxu0 0.0
        %4351 = vmatprep.subr.mxu0 0.0
        %4352 = vmatpush2.msra.mxu0 0.0
        %4353 = vmatprep.subr.mxu0 0.0
        %4354 = vmatpush2.msra.mxu0 0.0
        %4355 = vmatprep.subr.mxu0 0.0
        %4356 = vmatpush2.msra.mxu0 0.0
        %4357 = vmatprep.subr.mxu0 0.0
        %4358 = vmatpush2.msra.mxu0 0.0
        %4359 = vmatprep.subr.mxu0 0.0
        %4360 = vmatpush2.msra.mxu0 0.0
        %4361 = vmatprep.subr.mxu0 0.0
        %4362 = vmatpush2.msra.mxu0 0.0
        %4363 = vmatprep.subr.mxu0 0.0
        %4364 = vmatpush2.msra.mxu0 0.0
        %4365 = vmatprep.subr.mxu0 0.0
        %4366 = vmatpush2.msra.mxu0 0.0
        %4367 = vmatprep.subr.mxu0 0.0
        %4368 = vmatpush2.msra.mxu0 0.0
        %4369 = vmatprep.subr.mxu0 0.0
        %4370 = vmatpush2.msra.mxu0 0.0
        %4371 = vmatprep.subr.mxu0 0.0
        %4372 = vmatpush2.msra.mxu0 0.0
        %4373 = vmatprep.subr.mxu0 0.0
        %4374 = vmatpush2.msra.mxu0 0.0
        %4375 = vmatprep.subr.mxu0 0.0
        %4376 = vmatpush2.msra.mxu0 0.0
        %4377 = vmatprep.subr.mxu0 0.0
        %4378 = vmatpush2.msra.mxu0 0.0
        %4379 = vmatprep.mubr.f32.mxu0 0.0
        %4380 = vmatmul.mubr.f32.gmra.mxu0 %v4292
        %v4381 = vpop.f32.mrf.mxu0
        %v4382 = vadd.f32 0.0, %v4381
        %v4383 = vpop.f32.mrf.mxu0
        %4384 = vmatprep.mubr.f32.mxu0 0.0
        %4385 = vmatmul.mubr.f32.gmra.mxu0 %v4295
        %v4386 = vpop.f32.mrf.mxu0
        %v4387 = vadd.f32 0.0, %v4386
        %v4388 = vpop.f32.mrf.mxu0
        %4389 = vmatprep.mubr.f32.mxu0 0.0
        %4390 = vmatmul.mubr.f32.gmra.mxu0 %v4298
        %v4391 = vpop.f32.mrf.mxu0
        %v4392 = vadd.f32 0.0, %v4391
        %v4393 = vpop.f32.mrf.mxu0
        %4394 = vmatprep.mubr.f32.mxu0 0.0
        %4395 = vmatmul.mubr.f32.gmra.mxu0 %v4301
        %v4396 = vpop.f32.mrf.mxu0
        %v4397 = vadd.f32 0.0, %v4396
        %v4398 = vpop.f32.mrf.mxu0
        %4399 = vmatprep.mubr.f32.mxu0 0.0
        %4400 = vmatmul.mubr.f32.gmra.mxu0 %v4304
        %v4401 = vpop.f32.mrf.mxu0
        %v4402 = vadd.f32 0.0, %v4401
        %v4403 = vpop.f32.mrf.mxu0
        %4404 = vmatprep.mubr.f32.mxu0 0.0
        %4405 = vmatmul.mubr.f32.gmra.mxu0 %v4307
        %v4406 = vpop.f32.mrf.mxu0
        %v4407 = vadd.f32 0.0, %v4406
        %v4408 = vpop.f32.mrf.mxu0
        %4409 = vmatprep.mubr.f32.mxu0 0.0
        %4410 = vmatmul.mubr.f32.gmra.mxu0 %v4310
        %v4411 = vpop.f32.mrf.mxu0
        %v4412 = vadd.f32 0.0, %v4411
        %v4413 = vpop.f32.mrf.mxu0
        %4414 = vmatprep.mubr.f32.mxu0 0.0
        %4415 = vmatmul.mubr.f32.gmra.mxu0 %v4313
        %v4416 = vpop.f32.mrf.mxu0
        %v4417 = vadd.f32 0.0, %v4416
        %v4418 = vpop.f32.mrf.mxu0
        %4419 = vdwg.mxu0
        %v4421 = vsel %vm4137, %v4271, 0
        %v4424 = vsel %vm4137, %v4272, 0
        %v4427 = vsel %vm4137, %v4273, 0
        %v4430 = vsel %vm4137, %v4274, 0
        %v4433 = vsel %vm4137, %v4275, 0
        %v4436 = vsel %vm4137, %v4276, 0
        %v4439 = vsel %vm4137, %v4277, 0
        %v4442 = vsel %vm4137, %v4278, 0
        %4444 = vmatprep.subr.mxu0 0.0
        %4445 = vmatpush1.msra.mxu0 0.0
        %4446 = vmatprep.subr.mxu0 0.0
        %4447 = vmatpush1.msra.mxu0 0.0
        %4448 = vmatprep.subr.mxu0 0.0
        %4449 = vmatpush1.msra.mxu0 0.0
        %4450 = vmatprep.subr.mxu0 0.0
        %4451 = vmatpush1.msra.mxu0 0.0
        %4452 = vmatprep.subr.mxu0 0.0
        %4453 = vmatpush1.msra.mxu0 0.0
        %4454 = vmatprep.subr.mxu0 0.0
        %4455 = vmatpush1.msra.mxu0 0.0
        %4456 = vmatprep.subr.mxu0 0.0
        %4457 = vmatpush1.msra.mxu0 0.0
        %4458 = vmatprep.subr.mxu0 0.0
        %4459 = vmatpush1.msra.mxu0 0.0
        %4460 = vmatprep.subr.mxu0 0.0
        %4461 = vmatpush1.msra.mxu0 0.0
        %4462 = vmatprep.subr.mxu0 0.0
        %4463 = vmatpush1.msra.mxu0 0.0
        %4464 = vmatprep.subr.mxu0 0.0
        %4465 = vmatpush1.msra.mxu0 0.0
        %4466 = vmatprep.subr.mxu0 0.0
        %4467 = vmatpush1.msra.mxu0 0.0
        %4468 = vmatprep.subr.mxu0 0.0
        %4469 = vmatpush1.msra.mxu0 0.0
        %4470 = vmatprep.subr.mxu0 0.0
        %4471 = vmatpush1.msra.mxu0 0.0
        %4472 = vmatprep.subr.mxu0 0.0
        %4473 = vmatpush1.msra.mxu0 0.0
        %4474 = vmatprep.subr.mxu0 0.0
        %4475 = vmatpush1.msra.mxu0 %v4279
        %4476 = vmatprep.subr.mxu0 0.0
        %4477 = vmatpush2.msra.mxu0 0.0
        %4478 = vmatprep.subr.mxu0 0.0
        %4479 = vmatpush2.msra.mxu0 0.0
        %4480 = vmatprep.subr.mxu0 0.0
        %4481 = vmatpush2.msra.mxu0 0.0
        %4482 = vmatprep.subr.mxu0 0.0
        %4483 = vmatpush2.msra.mxu0 0.0
        %4484 = vmatprep.subr.mxu0 0.0
        %4485 = vmatpush2.msra.mxu0 0.0
        %4486 = vmatprep.subr.mxu0 0.0
        %4487 = vmatpush2.msra.mxu0 0.0
        %4488 = vmatprep.subr.mxu0 0.0
        %4489 = vmatpush2.msra.mxu0 0.0
        %4490 = vmatprep.subr.mxu0 0.0
        %4491 = vmatpush2.msra.mxu0 0.0
        %4492 = vmatprep.subr.mxu0 0.0
        %4493 = vmatpush2.msra.mxu0 0.0
        %4494 = vmatprep.subr.mxu0 0.0
        %4495 = vmatpush2.msra.mxu0 0.0
        %4496 = vmatprep.subr.mxu0 0.0
        %4497 = vmatpush2.msra.mxu0 0.0
        %4498 = vmatprep.subr.mxu0 0.0
        %4499 = vmatpush2.msra.mxu0 0.0
        %4500 = vmatprep.subr.mxu0 0.0
        %4501 = vmatpush2.msra.mxu0 0.0
        %4502 = vmatprep.subr.mxu0 0.0
        %4503 = vmatpush2.msra.mxu0 0.0
        %4504 = vmatprep.subr.mxu0 0.0
        %4505 = vmatpush2.msra.mxu0 0.0
        %4506 = vmatprep.subr.mxu0 0.0
        %4507 = vmatpush2.msra.mxu0 0.0
        %4508 = vmatprep.mubr.f32.mxu0 0.0
        %4509 = vmatmul.mubr.f32.gmra.mxu0 %v4421
        %v4510 = vpop.f32.mrf.mxu0
        %v4511 = vadd.f32 %v4382, %v4510
        %v4512 = vpop.f32.mrf.mxu0
        %4513 = vmatprep.mubr.f32.mxu0 0.0
        %4514 = vmatmul.mubr.f32.gmra.mxu0 %v4424
        %v4515 = vpop.f32.mrf.mxu0
        %v4516 = vadd.f32 %v4387, %v4515
        %v4517 = vpop.f32.mrf.mxu0
        %4518 = vmatprep.mubr.f32.mxu0 0.0
        %4519 = vmatmul.mubr.f32.gmra.mxu0 %v4427
        %v4520 = vpop.f32.mrf.mxu0
        %v4521 = vadd.f32 %v4392, %v4520
        %v4522 = vpop.f32.mrf.mxu0
        %4523 = vmatprep.mubr.f32.mxu0 0.0
        %4524 = vmatmul.mubr.f32.gmra.mxu0 %v4430
        %v4525 = vpop.f32.mrf.mxu0
        %v4526 = vadd.f32 %v4397, %v4525
        %v4527 = vpop.f32.mrf.mxu0
        %4528 = vmatprep.mubr.f32.mxu0 0.0
        %4529 = vmatmul.mubr.f32.gmra.mxu0 %v4433
        %v4530 = vpop.f32.mrf.mxu0
        %v4531 = vadd.f32 %v4402, %v4530
        %v4532 = vpop.f32.mrf.mxu0
        %4533 = vmatprep.mubr.f32.mxu0 0.0
        %4534 = vmatmul.mubr.f32.gmra.mxu0 %v4436
        %v4535 = vpop.f32.mrf.mxu0
        %v4536 = vadd.f32 %v4407, %v4535
        %v4537 = vpop.f32.mrf.mxu0
        %4538 = vmatprep.mubr.f32.mxu0 0.0
        %4539 = vmatmul.mubr.f32.gmra.mxu0 %v4439
        %v4540 = vpop.f32.mrf.mxu0
        %v4541 = vadd.f32 %v4412, %v4540
        %v4542 = vpop.f32.mrf.mxu0
        %4543 = vmatprep.mubr.f32.mxu0 0.0
        %4544 = vmatmul.mubr.f32.gmra.mxu0 %v4442
        %v4545 = vpop.f32.mrf.mxu0
        %v4546 = vadd.f32 %v4417, %v4545
        %v4547 = vpop.f32.mrf.mxu0
        %4548 = vdwg.mxu0
        %s4549 = scalar_lea.vmem [#allocation4], 16
        %v4550 = vld [vmem:[%s4549] sm:$0xff]
        %v4551 = vld [vmem:[%s4549 + $0x10] sm:$0xff]
        %v4552 = vld [vmem:[%s4549 + $0x20] sm:$0xff]
        %v4553 = vld [vmem:[%s4549 + $0x30] sm:$0xff]
        %v4554 = vld [vmem:[%s4549 + $0x40] sm:$0xff]
        %v4555 = vld [vmem:[%s4549 + $0x50] sm:$0xff]
        %v4556 = vld [vmem:[%s4549 + $0x60] sm:$0xff]
        %v4557 = vld [vmem:[%s4549 + $0x70] sm:$0xff]
        %s4558 = scalar_lea.vmem %s6, 48
        %v4559 = vld [vmem:[%s4558] sm:$0xff]
        %v4561 = vsel %vm4137, %v4550, 0
        %v4564 = vsel %vm4137, %v4551, 0
        %v4567 = vsel %vm4137, %v4552, 0
        %v4570 = vsel %vm4137, %v4553, 0
        %v4573 = vsel %vm4137, %v4554, 0
        %v4576 = vsel %vm4137, %v4555, 0
        %v4579 = vsel %vm4137, %v4556, 0
        %v4582 = vsel %vm4137, %v4557, 0
        %4584 = vmatprep.subr.mxu0 0.0
        %4585 = vmatpush1.msra.mxu0 0.0
        %4586 = vmatprep.subr.mxu0 0.0
        %4587 = vmatpush1.msra.mxu0 0.0
        %4588 = vmatprep.subr.mxu0 0.0
        %4589 = vmatpush1.msra.mxu0 0.0
        %4590 = vmatprep.subr.mxu0 0.0
        %4591 = vmatpush1.msra.mxu0 0.0
        %4592 = vmatprep.subr.mxu0 0.0
        %4593 = vmatpush1.msra.mxu0 0.0
        %4594 = vmatprep.subr.mxu0 0.0
        %4595 = vmatpush1.msra.mxu0 0.0
        %4596 = vmatprep.subr.mxu0 0.0
        %4597 = vmatpush1.msra.mxu0 0.0
        %4598 = vmatprep.subr.mxu0 0.0
        %4599 = vmatpush1.msra.mxu0 0.0
        %4600 = vmatprep.subr.mxu0 0.0
        %4601 = vmatpush1.msra.mxu0 0.0
        %4602 = vmatprep.subr.mxu0 0.0
        %4603 = vmatpush1.msra.mxu0 0.0
        %4604 = vmatprep.subr.mxu0 0.0
        %4605 = vmatpush1.msra.mxu0 0.0
        %4606 = vmatprep.subr.mxu0 0.0
        %4607 = vmatpush1.msra.mxu0 0.0
        %4608 = vmatprep.subr.mxu0 0.0
        %4609 = vmatpush1.msra.mxu0 0.0
        %4610 = vmatprep.subr.mxu0 0.0
        %4611 = vmatpush1.msra.mxu0 0.0
        %4612 = vmatprep.subr.mxu0 0.0
        %4613 = vmatpush1.msra.mxu0 0.0
        %4614 = vmatprep.subr.mxu0 0.0
        %4615 = vmatpush1.msra.mxu0 %v4559
        %4616 = vmatprep.subr.mxu0 0.0
        %4617 = vmatpush2.msra.mxu0 0.0
        %4618 = vmatprep.subr.mxu0 0.0
        %4619 = vmatpush2.msra.mxu0 0.0
        %4620 = vmatprep.subr.mxu0 0.0
        %4621 = vmatpush2.msra.mxu0 0.0
        %4622 = vmatprep.subr.mxu0 0.0
        %4623 = vmatpush2.msra.mxu0 0.0
        %4624 = vmatprep.subr.mxu0 0.0
        %4625 = vmatpush2.msra.mxu0 0.0
        %4626 = vmatprep.subr.mxu0 0.0
        %4627 = vmatpush2.msra.mxu0 0.0
        %4628 = vmatprep.subr.mxu0 0.0
        %4629 = vmatpush2.msra.mxu0 0.0
        %4630 = vmatprep.subr.mxu0 0.0
        %4631 = vmatpush2.msra.mxu0 0.0
        %4632 = vmatprep.subr.mxu0 0.0
        %4633 = vmatpush2.msra.mxu0 0.0
        %4634 = vmatprep.subr.mxu0 0.0
        %4635 = vmatpush2.msra.mxu0 0.0
        %4636 = vmatprep.subr.mxu0 0.0
        %4637 = vmatpush2.msra.mxu0 0.0
        %4638 = vmatprep.subr.mxu0 0.0
        %4639 = vmatpush2.msra.mxu0 0.0
        %4640 = vmatprep.subr.mxu0 0.0
        %4641 = vmatpush2.msra.mxu0 0.0
        %4642 = vmatprep.subr.mxu0 0.0
        %4643 = vmatpush2.msra.mxu0 0.0
        %4644 = vmatprep.subr.mxu0 0.0
        %4645 = vmatpush2.msra.mxu0 0.0
        %4646 = vmatprep.subr.mxu0 0.0
        %4647 = vmatpush2.msra.mxu0 0.0
        %4648 = vmatprep.mubr.f32.mxu0 0.0
        %4649 = vmatmul.mubr.f32.gmra.mxu0 %v4561
        %v4650 = vpop.f32.mrf.mxu0
        %v4651 = vadd.f32 0.0, %v4650
        %v4652 = vpop.f32.mrf.mxu0
        %4653 = vmatprep.mubr.f32.mxu0 0.0
        %4654 = vmatmul.mubr.f32.gmra.mxu0 %v4564
        %v4655 = vpop.f32.mrf.mxu0
        %v4656 = vadd.f32 0.0, %v4655
        %v4657 = vpop.f32.mrf.mxu0
        %4658 = vmatprep.mubr.f32.mxu0 0.0
        %4659 = vmatmul.mubr.f32.gmra.mxu0 %v4567
        %v4660 = vpop.f32.mrf.mxu0
        %v4661 = vadd.f32 0.0, %v4660
        %v4662 = vpop.f32.mrf.mxu0
        %4663 = vmatprep.mubr.f32.mxu0 0.0
        %4664 = vmatmul.mubr.f32.gmra.mxu0 %v4570
        %v4665 = vpop.f32.mrf.mxu0
        %v4666 = vadd.f32 0.0, %v4665
        %v4667 = vpop.f32.mrf.mxu0
        %4668 = vmatprep.mubr.f32.mxu0 0.0
        %4669 = vmatmul.mubr.f32.gmra.mxu0 %v4573
        %v4670 = vpop.f32.mrf.mxu0
        %v4671 = vadd.f32 0.0, %v4670
        %v4672 = vpop.f32.mrf.mxu0
        %4673 = vmatprep.mubr.f32.mxu0 0.0
        %4674 = vmatmul.mubr.f32.gmra.mxu0 %v4576
        %v4675 = vpop.f32.mrf.mxu0
        %v4676 = vadd.f32 0.0, %v4675
        %v4677 = vpop.f32.mrf.mxu0
        %4678 = vmatprep.mubr.f32.mxu0 0.0
        %4679 = vmatmul.mubr.f32.gmra.mxu0 %v4579
        %v4680 = vpop.f32.mrf.mxu0
        %v4681 = vadd.f32 0.0, %v4680
        %v4682 = vpop.f32.mrf.mxu0
        %4683 = vmatprep.mubr.f32.mxu0 0.0
        %4684 = vmatmul.mubr.f32.gmra.mxu0 %v4582
        %v4685 = vpop.f32.mrf.mxu0
        %v4686 = vadd.f32 0.0, %v4685
        %v4687 = vpop.f32.mrf.mxu0
        %4688 = vdwg.mxu0
        %v4689 = vadd.f32 %v4511, %v4651
        %v4690 = vadd.f32 %v4516, %v4656
        %v4691 = vadd.f32 %v4521, %v4661
        %v4692 = vadd.f32 %v4526, %v4666
        %v4693 = vadd.f32 %v4531, %v4671
        %v4694 = vadd.f32 %v4536, %v4676
        %v4695 = vadd.f32 %v4541, %v4681
        %v4696 = vadd.f32 %v4546, %v4686
        %s4697 = scalar_lea.vmem [#allocation3], 8
        %v4698 = vld [vmem:[%s4697] ss:$2 sm:$0xff]
        %s4699 = scalar_lea.vmem [#allocation3], 40
        %v4700 = vld [vmem:[%s4699] ss:$2 sm:$0xff]
        %s4701 = scalar_lea.vmem [#allocation3], 72
        %v4702 = vld [vmem:[%s4701] ss:$2 sm:$0xff]
        %s4703 = scalar_lea.vmem [#allocation3], 104
        %v4704 = vld [vmem:[%s4703] ss:$2 sm:$0xff]
        %s4705 = scalar_lea.vmem [#allocation3], 136
        %v4706 = vld [vmem:[%s4705] ss:$2 sm:$0xff]
        %s4707 = scalar_lea.vmem [#allocation3], 168
        %v4708 = vld [vmem:[%s4707] ss:$2 sm:$0xff]
        %s4709 = scalar_lea.vmem [#allocation3], 200
        %v4710 = vld [vmem:[%s4709] ss:$2 sm:$0xff]
        %s4711 = scalar_lea.vmem [#allocation3], 232
        %v4712 = vld [vmem:[%s4711] ss:$2 sm:$0xff]
        %s4713 = scalar_lea.vmem [#allocation3], 264
        %v4714 = vld [vmem:[%s4713] ss:$2 sm:$0xff]
        %s4715 = scalar_lea.vmem [#allocation3], 296
        %v4716 = vld [vmem:[%s4715] ss:$2 sm:$0xff]
        %s4717 = scalar_lea.vmem [#allocation3], 328
        %v4718 = vld [vmem:[%s4717] ss:$2 sm:$0xff]
        %s4719 = scalar_lea.vmem [#allocation3], 360
        %v4720 = vld [vmem:[%s4719] ss:$2 sm:$0xff]
        %s4721 = scalar_lea.vmem [#allocation3], 392
        %v4722 = vld [vmem:[%s4721] ss:$2 sm:$0xff]
        %s4723 = scalar_lea.vmem [#allocation3], 424
        %v4724 = vld [vmem:[%s4723] ss:$2 sm:$0xff]
        %s4725 = scalar_lea.vmem [#allocation3], 456
        %v4726 = vld [vmem:[%s4725] ss:$2 sm:$0xff]
        %s4727 = scalar_lea.vmem [#allocation3], 488
        %v4728 = vld [vmem:[%s4727] ss:$2 sm:$0xff]
        %s4729 = scalar_lea.vmem [#allocation3], 520
        %v4730 = vld [vmem:[%s4729] ss:$2 sm:$0xff]
        %s4731 = scalar_lea.vmem [#allocation3], 552
        %v4732 = vld [vmem:[%s4731] ss:$2 sm:$0xff]
        %4733 = vst.msk [vmem:[#allocation4] sm:$0xff] %vm4137, %v4698
        %4734 = vst.msk [vmem:[#allocation4 + $0x8] sm:$0xff] %vm4137, %v4700
        %4735 = vst.msk [vmem:[#allocation4 + $0x10] sm:$0xff] %vm4137, %v4702
        %4736 = vst.msk [vmem:[#allocation4 + $0x18] sm:$0xff] %vm4137, %v4704
        %4737 = vst.msk [vmem:[#allocation4 + $0x20] sm:$0xff] %vm4137, %v4706
        %4738 = vst.msk [vmem:[#allocation4 + $0x28] sm:$0xff] %vm4137, %v4708
        %4739 = vst.msk [vmem:[#allocation4 + $0x30] sm:$0xff] %vm4137, %v4710
        %4740 = vst.msk [vmem:[#allocation4 + $0x38] sm:$0xff] %vm4137, %v4712
        %4741 = vst.msk [vmem:[#allocation4 + $0x40] sm:$0xff] %vm4137, %v4714
        %4742 = vst.msk [vmem:[#allocation4 + $0x48] sm:$0xff] %vm4137, %v4716
        %4743 = vst.msk [vmem:[#allocation4 + $0x50] sm:$0xff] %vm4137, %v4718
        %4744 = vst.msk [vmem:[#allocation4 + $0x58] sm:$0xff] %vm4137, %v4720
        %4745 = vst.msk [vmem:[#allocation4 + $0x60] sm:$0xff] %vm4137, %v4722
        %4746 = vst.msk [vmem:[#allocation4 + $0x68] sm:$0xff] %vm4137, %v4724
        %4747 = vst.msk [vmem:[#allocation4 + $0x70] sm:$0xff] %vm4137, %v4726
        %4748 = vst.msk [vmem:[#allocation4 + $0x78] sm:$0xff] %vm4137, %v4728
        %4749 = vst.msk [vmem:[#allocation4 + $0x80] sm:$0xff] %vm4137, %v4730
        %4750 = vst.msk [vmem:[#allocation4 + $0x88] sm:$0xff] %vm4137, %v4732
        %v4751 = vld [vmem:[#allocation4] sm:$0xff]
        %v4752 = vld [vmem:[#allocation4 + $0x10] sm:$0xff]
        %v4753 = vld [vmem:[#allocation4 + $0x20] sm:$0xff]
        %v4754 = vld [vmem:[#allocation4 + $0x30] sm:$0xff]
        %v4755 = vld [vmem:[#allocation4 + $0x40] sm:$0xff]
        %v4756 = vld [vmem:[#allocation4 + $0x50] sm:$0xff]
        %v4757 = vld [vmem:[#allocation4 + $0x60] sm:$0xff]
        %v4758 = vld [vmem:[#allocation4 + $0x70] sm:$0xff]
        %s4759 = scalar_lea.vmem %s6, 8
        %v4760 = vld [vmem:[%s4759] sm:$0xff]
        %v4762 = vsel %vm4137, %v4751, 0
        %v4765 = vsel %vm4137, %v4752, 0
        %v4768 = vsel %vm4137, %v4753, 0
        %v4771 = vsel %vm4137, %v4754, 0
        %v4774 = vsel %vm4137, %v4755, 0
        %v4777 = vsel %vm4137, %v4756, 0
        %v4780 = vsel %vm4137, %v4757, 0
        %v4783 = vsel %vm4137, %v4758, 0
        %4785 = vmatprep.subr.mxu0 0.0
        %4786 = vmatpush1.msra.mxu0 0.0
        %4787 = vmatprep.subr.mxu0 0.0
        %4788 = vmatpush1.msra.mxu0 0.0
        %4789 = vmatprep.subr.mxu0 0.0
        %4790 = vmatpush1.msra.mxu0 0.0
        %4791 = vmatprep.subr.mxu0 0.0
        %4792 = vmatpush1.msra.mxu0 0.0
        %4793 = vmatprep.subr.mxu0 0.0
        %4794 = vmatpush1.msra.mxu0 0.0
        %4795 = vmatprep.subr.mxu0 0.0
        %4796 = vmatpush1.msra.mxu0 0.0
        %4797 = vmatprep.subr.mxu0 0.0
        %4798 = vmatpush1.msra.mxu0 0.0
        %4799 = vmatprep.subr.mxu0 0.0
        %4800 = vmatpush1.msra.mxu0 0.0
        %4801 = vmatprep.subr.mxu0 0.0
        %4802 = vmatpush1.msra.mxu0 0.0
        %4803 = vmatprep.subr.mxu0 0.0
        %4804 = vmatpush1.msra.mxu0 0.0
        %4805 = vmatprep.subr.mxu0 0.0
        %4806 = vmatpush1.msra.mxu0 0.0
        %4807 = vmatprep.subr.mxu0 0.0
        %4808 = vmatpush1.msra.mxu0 0.0
        %4809 = vmatprep.subr.mxu0 0.0
        %4810 = vmatpush1.msra.mxu0 0.0
        %4811 = vmatprep.subr.mxu0 0.0
        %4812 = vmatpush1.msra.mxu0 0.0
        %4813 = vmatprep.subr.mxu0 0.0
        %4814 = vmatpush1.msra.mxu0 0.0
        %4815 = vmatprep.subr.mxu0 0.0
        %4816 = vmatpush1.msra.mxu0 %v4760
        %4817 = vmatprep.subr.mxu0 0.0
        %4818 = vmatpush2.msra.mxu0 0.0
        %4819 = vmatprep.subr.mxu0 0.0
        %4820 = vmatpush2.msra.mxu0 0.0
        %4821 = vmatprep.subr.mxu0 0.0
        %4822 = vmatpush2.msra.mxu0 0.0
        %4823 = vmatprep.subr.mxu0 0.0
        %4824 = vmatpush2.msra.mxu0 0.0
        %4825 = vmatprep.subr.mxu0 0.0
        %4826 = vmatpush2.msra.mxu0 0.0
        %4827 = vmatprep.subr.mxu0 0.0
        %4828 = vmatpush2.msra.mxu0 0.0
        %4829 = vmatprep.subr.mxu0 0.0
        %4830 = vmatpush2.msra.mxu0 0.0
        %4831 = vmatprep.subr.mxu0 0.0
        %4832 = vmatpush2.msra.mxu0 0.0
        %4833 = vmatprep.subr.mxu0 0.0
        %4834 = vmatpush2.msra.mxu0 0.0
        %4835 = vmatprep.subr.mxu0 0.0
        %4836 = vmatpush2.msra.mxu0 0.0
        %4837 = vmatprep.subr.mxu0 0.0
        %4838 = vmatpush2.msra.mxu0 0.0
        %4839 = vmatprep.subr.mxu0 0.0
        %4840 = vmatpush2.msra.mxu0 0.0
        %4841 = vmatprep.subr.mxu0 0.0
        %4842 = vmatpush2.msra.mxu0 0.0
        %4843 = vmatprep.subr.mxu0 0.0
        %4844 = vmatpush2.msra.mxu0 0.0
        %4845 = vmatprep.subr.mxu0 0.0
        %4846 = vmatpush2.msra.mxu0 0.0
        %4847 = vmatprep.subr.mxu0 0.0
        %4848 = vmatpush2.msra.mxu0 0.0
        %4849 = vmatprep.mubr.f32.mxu0 0.0
        %4850 = vmatmul.mubr.f32.gmra.mxu0 %v4762
        %v4851 = vpop.f32.mrf.mxu0
        %v4852 = vadd.f32 0.0, %v4851
        %v4853 = vpop.f32.mrf.mxu0
        %4854 = vmatprep.mubr.f32.mxu0 0.0
        %4855 = vmatmul.mubr.f32.gmra.mxu0 %v4765
        %v4856 = vpop.f32.mrf.mxu0
        %v4857 = vadd.f32 0.0, %v4856
        %v4858 = vpop.f32.mrf.mxu0
        %4859 = vmatprep.mubr.f32.mxu0 0.0
        %4860 = vmatmul.mubr.f32.gmra.mxu0 %v4768
        %v4861 = vpop.f32.mrf.mxu0
        %v4862 = vadd.f32 0.0, %v4861
        %v4863 = vpop.f32.mrf.mxu0
        %4864 = vmatprep.mubr.f32.mxu0 0.0
        %4865 = vmatmul.mubr.f32.gmra.mxu0 %v4771
        %v4866 = vpop.f32.mrf.mxu0
        %v4867 = vadd.f32 0.0, %v4866
        %v4868 = vpop.f32.mrf.mxu0
        %4869 = vmatprep.mubr.f32.mxu0 0.0
        %4870 = vmatmul.mubr.f32.gmra.mxu0 %v4774
        %v4871 = vpop.f32.mrf.mxu0
        %v4872 = vadd.f32 0.0, %v4871
        %v4873 = vpop.f32.mrf.mxu0
        %4874 = vmatprep.mubr.f32.mxu0 0.0
        %4875 = vmatmul.mubr.f32.gmra.mxu0 %v4777
        %v4876 = vpop.f32.mrf.mxu0
        %v4877 = vadd.f32 0.0, %v4876
        %v4878 = vpop.f32.mrf.mxu0
        %4879 = vmatprep.mubr.f32.mxu0 0.0
        %4880 = vmatmul.mubr.f32.gmra.mxu0 %v4780
        %v4881 = vpop.f32.mrf.mxu0
        %v4882 = vadd.f32 0.0, %v4881
        %v4883 = vpop.f32.mrf.mxu0
        %4884 = vmatprep.mubr.f32.mxu0 0.0
        %4885 = vmatmul.mubr.f32.gmra.mxu0 %v4783
        %v4886 = vpop.f32.mrf.mxu0
        %v4887 = vadd.f32 0.0, %v4886
        %v4888 = vpop.f32.mrf.mxu0
        %4889 = vdwg.mxu0
        %v4890 = vadd.f32 %v4689, %v4852
        %v4891 = vadd.f32 %v4690, %v4857
        %v4892 = vadd.f32 %v4691, %v4862
        %v4893 = vadd.f32 %v4692, %v4867
        %v4894 = vadd.f32 %v4693, %v4872
        %v4895 = vadd.f32 %v4694, %v4877
        %v4896 = vadd.f32 %v4695, %v4882
        %v4897 = vadd.f32 %v4696, %v4887
        %v4898 = vld [vmem:[%s4280] sm:$0xff]
        %v4899 = vld [vmem:[%s4280 + $0x10] sm:$0xff]
        %v4900 = vld [vmem:[%s4280 + $0x20] sm:$0xff]
        %v4901 = vld [vmem:[%s4280 + $0x30] sm:$0xff]
        %v4902 = vld [vmem:[%s4280 + $0x40] sm:$0xff]
        %v4903 = vld [vmem:[%s4280 + $0x50] sm:$0xff]
        %v4904 = vld [vmem:[%s4280 + $0x60] sm:$0xff]
        %v4905 = vld [vmem:[%s4280 + $0x70] sm:$0xff]
        %s4906 = scalar_lea.vmem %s6, 32
        %v4907 = vld [vmem:[%s4906] sm:$0xff]
        %v4909 = vsel %vm4137, %v4898, 0
        %v4912 = vsel %vm4137, %v4899, 0
        %v4915 = vsel %vm4137, %v4900, 0
        %v4918 = vsel %vm4137, %v4901, 0
        %v4921 = vsel %vm4137, %v4902, 0
        %v4924 = vsel %vm4137, %v4903, 0
        %v4927 = vsel %vm4137, %v4904, 0
        %v4930 = vsel %vm4137, %v4905, 0
        %4932 = vmatprep.subr.mxu0 0.0
        %4933 = vmatpush1.msra.mxu0 0.0
        %4934 = vmatprep.subr.mxu0 0.0
        %4935 = vmatpush1.msra.mxu0 0.0
        %4936 = vmatprep.subr.mxu0 0.0
        %4937 = vmatpush1.msra.mxu0 0.0
        %4938 = vmatprep.subr.mxu0 0.0
        %4939 = vmatpush1.msra.mxu0 0.0
        %4940 = vmatprep.subr.mxu0 0.0
        %4941 = vmatpush1.msra.mxu0 0.0
        %4942 = vmatprep.subr.mxu0 0.0
        %4943 = vmatpush1.msra.mxu0 0.0
        %4944 = vmatprep.subr.mxu0 0.0
        %4945 = vmatpush1.msra.mxu0 0.0
        %4946 = vmatprep.subr.mxu0 0.0
        %4947 = vmatpush1.msra.mxu0 0.0
        %4948 = vmatprep.subr.mxu0 0.0
        %4949 = vmatpush1.msra.mxu0 0.0
        %4950 = vmatprep.subr.mxu0 0.0
        %4951 = vmatpush1.msra.mxu0 0.0
        %4952 = vmatprep.subr.mxu0 0.0
        %4953 = vmatpush1.msra.mxu0 0.0
        %4954 = vmatprep.subr.mxu0 0.0
        %4955 = vmatpush1.msra.mxu0 0.0
        %4956 = vmatprep.subr.mxu0 0.0
        %4957 = vmatpush1.msra.mxu0 0.0
        %4958 = vmatprep.subr.mxu0 0.0
        %4959 = vmatpush1.msra.mxu0 0.0
        %4960 = vmatprep.subr.mxu0 0.0
        %4961 = vmatpush1.msra.mxu0 0.0
        %4962 = vmatprep.subr.mxu0 0.0
        %4963 = vmatpush1.msra.mxu0 %v4907
        %4964 = vmatprep.subr.mxu0 0.0
        %4965 = vmatpush2.msra.mxu0 0.0
        %4966 = vmatprep.subr.mxu0 0.0
        %4967 = vmatpush2.msra.mxu0 0.0
        %4968 = vmatprep.subr.mxu0 0.0
        %4969 = vmatpush2.msra.mxu0 0.0
        %4970 = vmatprep.subr.mxu0 0.0
        %4971 = vmatpush2.msra.mxu0 0.0
        %4972 = vmatprep.subr.mxu0 0.0
        %4973 = vmatpush2.msra.mxu0 0.0
        %4974 = vmatprep.subr.mxu0 0.0
        %4975 = vmatpush2.msra.mxu0 0.0
        %4976 = vmatprep.subr.mxu0 0.0
        %4977 = vmatpush2.msra.mxu0 0.0
        %4978 = vmatprep.subr.mxu0 0.0
        %4979 = vmatpush2.msra.mxu0 0.0
        %4980 = vmatprep.subr.mxu0 0.0
        %4981 = vmatpush2.msra.mxu0 0.0
        %4982 = vmatprep.subr.mxu0 0.0
        %4983 = vmatpush2.msra.mxu0 0.0
        %4984 = vmatprep.subr.mxu0 0.0
        %4985 = vmatpush2.msra.mxu0 0.0
        %4986 = vmatprep.subr.mxu0 0.0
        %4987 = vmatpush2.msra.mxu0 0.0
        %4988 = vmatprep.subr.mxu0 0.0
        %4989 = vmatpush2.msra.mxu0 0.0
        %4990 = vmatprep.subr.mxu0 0.0
        %4991 = vmatpush2.msra.mxu0 0.0
        %4992 = vmatprep.subr.mxu0 0.0
        %4993 = vmatpush2.msra.mxu0 0.0
        %4994 = vmatprep.subr.mxu0 0.0
        %4995 = vmatpush2.msra.mxu0 0.0
        %4996 = vmatprep.mubr.f32.mxu0 0.0
        %4997 = vmatmul.mubr.f32.gmra.mxu0 %v4909
        %v4998 = vpop.f32.mrf.mxu0
        %v4999 = vadd.f32 0.0, %v4998
        %v5000 = vpop.f32.mrf.mxu0
        %5001 = vmatprep.mubr.f32.mxu0 0.0
        %5002 = vmatmul.mubr.f32.gmra.mxu0 %v4912
        %v5003 = vpop.f32.mrf.mxu0
        %v5004 = vadd.f32 0.0, %v5003
        %v5005 = vpop.f32.mrf.mxu0
        %5006 = vmatprep.mubr.f32.mxu0 0.0
        %5007 = vmatmul.mubr.f32.gmra.mxu0 %v4915
        %v5008 = vpop.f32.mrf.mxu0
        %v5009 = vadd.f32 0.0, %v5008
        %v5010 = vpop.f32.mrf.mxu0
        %5011 = vmatprep.mubr.f32.mxu0 0.0
        %5012 = vmatmul.mubr.f32.gmra.mxu0 %v4918
        %v5013 = vpop.f32.mrf.mxu0
        %v5014 = vadd.f32 0.0, %v5013
        %v5015 = vpop.f32.mrf.mxu0
        %5016 = vmatprep.mubr.f32.mxu0 0.0
        %5017 = vmatmul.mubr.f32.gmra.mxu0 %v4921
        %v5018 = vpop.f32.mrf.mxu0
        %v5019 = vadd.f32 0.0, %v5018
        %v5020 = vpop.f32.mrf.mxu0
        %5021 = vmatprep.mubr.f32.mxu0 0.0
        %5022 = vmatmul.mubr.f32.gmra.mxu0 %v4924
        %v5023 = vpop.f32.mrf.mxu0
        %v5024 = vadd.f32 0.0, %v5023
        %v5025 = vpop.f32.mrf.mxu0
        %5026 = vmatprep.mubr.f32.mxu0 0.0
        %5027 = vmatmul.mubr.f32.gmra.mxu0 %v4927
        %v5028 = vpop.f32.mrf.mxu0
        %v5029 = vadd.f32 0.0, %v5028
        %v5030 = vpop.f32.mrf.mxu0
        %5031 = vmatprep.mubr.f32.mxu0 0.0
        %5032 = vmatmul.mubr.f32.gmra.mxu0 %v4930
        %v5033 = vpop.f32.mrf.mxu0
        %v5034 = vadd.f32 0.0, %v5033
        %v5035 = vpop.f32.mrf.mxu0
        %5036 = vdwg.mxu0
        %v5037 = vadd.f32 %v4890, %v4999
        %v5038 = vadd.f32 %v4891, %v5004
        %v5039 = vadd.f32 %v4892, %v5009
        %v5040 = vadd.f32 %v4893, %v5014
        %v5041 = vadd.f32 %v4894, %v5019
        %v5042 = vadd.f32 %v4895, %v5024
        %v5043 = vadd.f32 %v4896, %v5029
        %v5044 = vadd.f32 %v4897, %v5034
        %v5045 = vld [vmem:[%s4549] sm:$0xff]
        %v5046 = vld [vmem:[%s4549 + $0x10] sm:$0xff]
        %v5047 = vld [vmem:[%s4549 + $0x20] sm:$0xff]
        %v5048 = vld [vmem:[%s4549 + $0x30] sm:$0xff]
        %v5049 = vld [vmem:[%s4549 + $0x40] sm:$0xff]
        %v5050 = vld [vmem:[%s4549 + $0x50] sm:$0xff]
        %v5051 = vld [vmem:[%s4549 + $0x60] sm:$0xff]
        %v5052 = vld [vmem:[%s4549 + $0x70] sm:$0xff]
        %s5053 = scalar_lea.vmem %s6, 56
        %v5054 = vld [vmem:[%s5053] sm:$0xff]
        %v5056 = vsel %vm4137, %v5045, 0
        %v5059 = vsel %vm4137, %v5046, 0
        %v5062 = vsel %vm4137, %v5047, 0
        %v5065 = vsel %vm4137, %v5048, 0
        %v5068 = vsel %vm4137, %v5049, 0
        %v5071 = vsel %vm4137, %v5050, 0
        %v5074 = vsel %vm4137, %v5051, 0
        %v5077 = vsel %vm4137, %v5052, 0
        %5079 = vmatprep.subr.mxu0 0.0
        %5080 = vmatpush1.msra.mxu0 0.0
        %5081 = vmatprep.subr.mxu0 0.0
        %5082 = vmatpush1.msra.mxu0 0.0
        %5083 = vmatprep.subr.mxu0 0.0
        %5084 = vmatpush1.msra.mxu0 0.0
        %5085 = vmatprep.subr.mxu0 0.0
        %5086 = vmatpush1.msra.mxu0 0.0
        %5087 = vmatprep.subr.mxu0 0.0
        %5088 = vmatpush1.msra.mxu0 0.0
        %5089 = vmatprep.subr.mxu0 0.0
        %5090 = vmatpush1.msra.mxu0 0.0
        %5091 = vmatprep.subr.mxu0 0.0
        %5092 = vmatpush1.msra.mxu0 0.0
        %5093 = vmatprep.subr.mxu0 0.0
        %5094 = vmatpush1.msra.mxu0 0.0
        %5095 = vmatprep.subr.mxu0 0.0
        %5096 = vmatpush1.msra.mxu0 0.0
        %5097 = vmatprep.subr.mxu0 0.0
        %5098 = vmatpush1.msra.mxu0 0.0
        %5099 = vmatprep.subr.mxu0 0.0
        %5100 = vmatpush1.msra.mxu0 0.0
        %5101 = vmatprep.subr.mxu0 0.0
        %5102 = vmatpush1.msra.mxu0 0.0
        %5103 = vmatprep.subr.mxu0 0.0
        %5104 = vmatpush1.msra.mxu0 0.0
        %5105 = vmatprep.subr.mxu0 0.0
        %5106 = vmatpush1.msra.mxu0 0.0
        %5107 = vmatprep.subr.mxu0 0.0
        %5108 = vmatpush1.msra.mxu0 0.0
        %5109 = vmatprep.subr.mxu0 0.0
        %5110 = vmatpush1.msra.mxu0 %v5054
        %5111 = vmatprep.subr.mxu0 0.0
        %5112 = vmatpush2.msra.mxu0 0.0
        %5113 = vmatprep.subr.mxu0 0.0
        %5114 = vmatpush2.msra.mxu0 0.0
        %5115 = vmatprep.subr.mxu0 0.0
        %5116 = vmatpush2.msra.mxu0 0.0
        %5117 = vmatprep.subr.mxu0 0.0
        %5118 = vmatpush2.msra.mxu0 0.0
        %5119 = vmatprep.subr.mxu0 0.0
        %5120 = vmatpush2.msra.mxu0 0.0
        %5121 = vmatprep.subr.mxu0 0.0
        %5122 = vmatpush2.msra.mxu0 0.0
        %5123 = vmatprep.subr.mxu0 0.0
        %5124 = vmatpush2.msra.mxu0 0.0
        %5125 = vmatprep.subr.mxu0 0.0
        %5126 = vmatpush2.msra.mxu0 0.0
        %5127 = vmatprep.subr.mxu0 0.0
        %5128 = vmatpush2.msra.mxu0 0.0
        %5129 = vmatprep.subr.mxu0 0.0
        %5130 = vmatpush2.msra.mxu0 0.0
        %5131 = vmatprep.subr.mxu0 0.0
        %5132 = vmatpush2.msra.mxu0 0.0
        %5133 = vmatprep.subr.mxu0 0.0
        %5134 = vmatpush2.msra.mxu0 0.0
        %5135 = vmatprep.subr.mxu0 0.0
        %5136 = vmatpush2.msra.mxu0 0.0
        %5137 = vmatprep.subr.mxu0 0.0
        %5138 = vmatpush2.msra.mxu0 0.0
        %5139 = vmatprep.subr.mxu0 0.0
        %5140 = vmatpush2.msra.mxu0 0.0
        %5141 = vmatprep.subr.mxu0 0.0
        %5142 = vmatpush2.msra.mxu0 0.0
        %5143 = vmatprep.mubr.f32.mxu0 0.0
        %5144 = vmatmul.mubr.f32.gmra.mxu0 %v5056
        %v5145 = vpop.f32.mrf.mxu0
        %v5146 = vadd.f32 0.0, %v5145
        %v5147 = vpop.f32.mrf.mxu0
        %5148 = vmatprep.mubr.f32.mxu0 0.0
        %5149 = vmatmul.mubr.f32.gmra.mxu0 %v5059
        %v5150 = vpop.f32.mrf.mxu0
        %v5151 = vadd.f32 0.0, %v5150
        %v5152 = vpop.f32.mrf.mxu0
        %5153 = vmatprep.mubr.f32.mxu0 0.0
        %5154 = vmatmul.mubr.f32.gmra.mxu0 %v5062
        %v5155 = vpop.f32.mrf.mxu0
        %v5156 = vadd.f32 0.0, %v5155
        %v5157 = vpop.f32.mrf.mxu0
        %5158 = vmatprep.mubr.f32.mxu0 0.0
        %5159 = vmatmul.mubr.f32.gmra.mxu0 %v5065
        %v5160 = vpop.f32.mrf.mxu0
        %v5161 = vadd.f32 0.0, %v5160
        %v5162 = vpop.f32.mrf.mxu0
        %5163 = vmatprep.mubr.f32.mxu0 0.0
        %5164 = vmatmul.mubr.f32.gmra.mxu0 %v5068
        %v5165 = vpop.f32.mrf.mxu0
        %v5166 = vadd.f32 0.0, %v5165
        %v5167 = vpop.f32.mrf.mxu0
        %5168 = vmatprep.mubr.f32.mxu0 0.0
        %5169 = vmatmul.mubr.f32.gmra.mxu0 %v5071
        %v5170 = vpop.f32.mrf.mxu0
        %v5171 = vadd.f32 0.0, %v5170
        %v5172 = vpop.f32.mrf.mxu0
        %5173 = vmatprep.mubr.f32.mxu0 0.0
        %5174 = vmatmul.mubr.f32.gmra.mxu0 %v5074
        %v5175 = vpop.f32.mrf.mxu0
        %v5176 = vadd.f32 0.0, %v5175
        %v5177 = vpop.f32.mrf.mxu0
        %5178 = vmatprep.mubr.f32.mxu0 0.0
        %5179 = vmatmul.mubr.f32.gmra.mxu0 %v5077
        %v5180 = vpop.f32.mrf.mxu0
        %v5181 = vadd.f32 0.0, %v5180
        %v5182 = vpop.f32.mrf.mxu0
        %5183 = vdwg.mxu0
        %v5184 = vadd.f32 %v5037, %v5146
        %v5185 = vadd.f32 %v5038, %v5151
        %v5186 = vadd.f32 %v5039, %v5156
        %v5187 = vadd.f32 %v5040, %v5161
        %v5188 = vadd.f32 %v5041, %v5166
        %v5189 = vadd.f32 %v5042, %v5171
        %v5190 = vadd.f32 %v5043, %v5176
        %v5191 = vadd.f32 %v5044, %v5181
        %s5192 = scalar_lea.vmem [#allocation3], 9
        %v5193 = vld [vmem:[%s5192] ss:$2 sm:$0xff]
        %s5194 = scalar_lea.vmem [#allocation3], 41
        %v5195 = vld [vmem:[%s5194] ss:$2 sm:$0xff]
        %s5196 = scalar_lea.vmem [#allocation3], 73
        %v5197 = vld [vmem:[%s5196] ss:$2 sm:$0xff]
        %s5198 = scalar_lea.vmem [#allocation3], 105
        %v5199 = vld [vmem:[%s5198] ss:$2 sm:$0xff]
        %s5200 = scalar_lea.vmem [#allocation3], 137
        %v5201 = vld [vmem:[%s5200] ss:$2 sm:$0xff]
        %s5202 = scalar_lea.vmem [#allocation3], 169
        %v5203 = vld [vmem:[%s5202] ss:$2 sm:$0xff]
        %s5204 = scalar_lea.vmem [#allocation3], 201
        %v5205 = vld [vmem:[%s5204] ss:$2 sm:$0xff]
        %s5206 = scalar_lea.vmem [#allocation3], 233
        %v5207 = vld [vmem:[%s5206] ss:$2 sm:$0xff]
        %s5208 = scalar_lea.vmem [#allocation3], 265
        %v5209 = vld [vmem:[%s5208] ss:$2 sm:$0xff]
        %s5210 = scalar_lea.vmem [#allocation3], 297
        %v5211 = vld [vmem:[%s5210] ss:$2 sm:$0xff]
        %s5212 = scalar_lea.vmem [#allocation3], 329
        %v5213 = vld [vmem:[%s5212] ss:$2 sm:$0xff]
        %s5214 = scalar_lea.vmem [#allocation3], 361
        %v5215 = vld [vmem:[%s5214] ss:$2 sm:$0xff]
        %s5216 = scalar_lea.vmem [#allocation3], 393
        %v5217 = vld [vmem:[%s5216] ss:$2 sm:$0xff]
        %s5218 = scalar_lea.vmem [#allocation3], 425
        %v5219 = vld [vmem:[%s5218] ss:$2 sm:$0xff]
        %s5220 = scalar_lea.vmem [#allocation3], 457
        %v5221 = vld [vmem:[%s5220] ss:$2 sm:$0xff]
        %s5222 = scalar_lea.vmem [#allocation3], 489
        %v5223 = vld [vmem:[%s5222] ss:$2 sm:$0xff]
        %s5224 = scalar_lea.vmem [#allocation3], 521
        %v5225 = vld [vmem:[%s5224] ss:$2 sm:$0xff]
        %s5226 = scalar_lea.vmem [#allocation3], 553
        %v5227 = vld [vmem:[%s5226] ss:$2 sm:$0xff]
        %5228 = vst.msk [vmem:[#allocation4] sm:$0xff] %vm4137, %v5193
        %5229 = vst.msk [vmem:[#allocation4 + $0x8] sm:$0xff] %vm4137, %v5195
        %5230 = vst.msk [vmem:[#allocation4 + $0x10] sm:$0xff] %vm4137, %v5197
        %5231 = vst.msk [vmem:[#allocation4 + $0x18] sm:$0xff] %vm4137, %v5199
        %5232 = vst.msk [vmem:[#allocation4 + $0x20] sm:$0xff] %vm4137, %v5201
        %5233 = vst.msk [vmem:[#allocation4 + $0x28] sm:$0xff] %vm4137, %v5203
        %5234 = vst.msk [vmem:[#allocation4 + $0x30] sm:$0xff] %vm4137, %v5205
        %5235 = vst.msk [vmem:[#allocation4 + $0x38] sm:$0xff] %vm4137, %v5207
        %5236 = vst.msk [vmem:[#allocation4 + $0x40] sm:$0xff] %vm4137, %v5209
        %5237 = vst.msk [vmem:[#allocation4 + $0x48] sm:$0xff] %vm4137, %v5211
        %5238 = vst.msk [vmem:[#allocation4 + $0x50] sm:$0xff] %vm4137, %v5213
        %5239 = vst.msk [vmem:[#allocation4 + $0x58] sm:$0xff] %vm4137, %v5215
        %5240 = vst.msk [vmem:[#allocation4 + $0x60] sm:$0xff] %vm4137, %v5217
        %5241 = vst.msk [vmem:[#allocation4 + $0x68] sm:$0xff] %vm4137, %v5219
        %5242 = vst.msk [vmem:[#allocation4 + $0x70] sm:$0xff] %vm4137, %v5221
        %5243 = vst.msk [vmem:[#allocation4 + $0x78] sm:$0xff] %vm4137, %v5223
        %5244 = vst.msk [vmem:[#allocation4 + $0x80] sm:$0xff] %vm4137, %v5225
        %5245 = vst.msk [vmem:[#allocation4 + $0x88] sm:$0xff] %vm4137, %v5227
        %v5246 = vld [vmem:[#allocation4] sm:$0xff]
        %v5247 = vld [vmem:[#allocation4 + $0x10] sm:$0xff]
        %v5248 = vld [vmem:[#allocation4 + $0x20] sm:$0xff]
        %v5249 = vld [vmem:[#allocation4 + $0x30] sm:$0xff]
        %v5250 = vld [vmem:[#allocation4 + $0x40] sm:$0xff]
        %v5251 = vld [vmem:[#allocation4 + $0x50] sm:$0xff]
        %v5252 = vld [vmem:[#allocation4 + $0x60] sm:$0xff]
        %v5253 = vld [vmem:[#allocation4 + $0x70] sm:$0xff]
        %s5254 = scalar_lea.vmem %s6, 16
        %v5255 = vld [vmem:[%s5254] sm:$0xff]
        %v5257 = vsel %vm4137, %v5246, 0
        %v5260 = vsel %vm4137, %v5247, 0
        %v5263 = vsel %vm4137, %v5248, 0
        %v5266 = vsel %vm4137, %v5249, 0
        %v5269 = vsel %vm4137, %v5250, 0
        %v5272 = vsel %vm4137, %v5251, 0
        %v5275 = vsel %vm4137, %v5252, 0
        %v5278 = vsel %vm4137, %v5253, 0
        %5280 = vmatprep.subr.mxu0 0.0
        %5281 = vmatpush1.msra.mxu0 0.0
        %5282 = vmatprep.subr.mxu0 0.0
        %5283 = vmatpush1.msra.mxu0 0.0
        %5284 = vmatprep.subr.mxu0 0.0
        %5285 = vmatpush1.msra.mxu0 0.0
        %5286 = vmatprep.subr.mxu0 0.0
        %5287 = vmatpush1.msra.mxu0 0.0
        %5288 = vmatprep.subr.mxu0 0.0
        %5289 = vmatpush1.msra.mxu0 0.0
        %5290 = vmatprep.subr.mxu0 0.0
        %5291 = vmatpush1.msra.mxu0 0.0
        %5292 = vmatprep.subr.mxu0 0.0
        %5293 = vmatpush1.msra.mxu0 0.0
        %5294 = vmatprep.subr.mxu0 0.0
        %5295 = vmatpush1.msra.mxu0 0.0
        %5296 = vmatprep.subr.mxu0 0.0
        %5297 = vmatpush1.msra.mxu0 0.0
        %5298 = vmatprep.subr.mxu0 0.0
        %5299 = vmatpush1.msra.mxu0 0.0
        %5300 = vmatprep.subr.mxu0 0.0
        %5301 = vmatpush1.msra.mxu0 0.0
        %5302 = vmatprep.subr.mxu0 0.0
        %5303 = vmatpush1.msra.mxu0 0.0
        %5304 = vmatprep.subr.mxu0 0.0
        %5305 = vmatpush1.msra.mxu0 0.0
        %5306 = vmatprep.subr.mxu0 0.0
        %5307 = vmatpush1.msra.mxu0 0.0
        %5308 = vmatprep.subr.mxu0 0.0
        %5309 = vmatpush1.msra.mxu0 0.0
        %5310 = vmatprep.subr.mxu0 0.0
        %5311 = vmatpush1.msra.mxu0 %v5255
        %5312 = vmatprep.subr.mxu0 0.0
        %5313 = vmatpush2.msra.mxu0 0.0
        %5314 = vmatprep.subr.mxu0 0.0
        %5315 = vmatpush2.msra.mxu0 0.0
        %5316 = vmatprep.subr.mxu0 0.0
        %5317 = vmatpush2.msra.mxu0 0.0
        %5318 = vmatprep.subr.mxu0 0.0
        %5319 = vmatpush2.msra.mxu0 0.0
        %5320 = vmatprep.subr.mxu0 0.0
        %5321 = vmatpush2.msra.mxu0 0.0
        %5322 = vmatprep.subr.mxu0 0.0
        %5323 = vmatpush2.msra.mxu0 0.0
        %5324 = vmatprep.subr.mxu0 0.0
        %5325 = vmatpush2.msra.mxu0 0.0
        %5326 = vmatprep.subr.mxu0 0.0
        %5327 = vmatpush2.msra.mxu0 0.0
        %5328 = vmatprep.subr.mxu0 0.0
        %5329 = vmatpush2.msra.mxu0 0.0
        %5330 = vmatprep.subr.mxu0 0.0
        %5331 = vmatpush2.msra.mxu0 0.0
        %5332 = vmatprep.subr.mxu0 0.0
        %5333 = vmatpush2.msra.mxu0 0.0
        %5334 = vmatprep.subr.mxu0 0.0
        %5335 = vmatpush2.msra.mxu0 0.0
        %5336 = vmatprep.subr.mxu0 0.0
        %5337 = vmatpush2.msra.mxu0 0.0
        %5338 = vmatprep.subr.mxu0 0.0
        %5339 = vmatpush2.msra.mxu0 0.0
        %5340 = vmatprep.subr.mxu0 0.0
        %5341 = vmatpush2.msra.mxu0 0.0
        %5342 = vmatprep.subr.mxu0 0.0
        %5343 = vmatpush2.msra.mxu0 0.0
        %5344 = vmatprep.mubr.f32.mxu0 0.0
        %5345 = vmatmul.mubr.f32.gmra.mxu0 %v5257
        %v5346 = vpop.f32.mrf.mxu0
        %v5347 = vadd.f32 0.0, %v5346
        %v5348 = vpop.f32.mrf.mxu0
        %5349 = vmatprep.mubr.f32.mxu0 0.0
        %5350 = vmatmul.mubr.f32.gmra.mxu0 %v5260
        %v5351 = vpop.f32.mrf.mxu0
        %v5352 = vadd.f32 0.0, %v5351
        %v5353 = vpop.f32.mrf.mxu0
        %5354 = vmatprep.mubr.f32.mxu0 0.0
        %5355 = vmatmul.mubr.f32.gmra.mxu0 %v5263
        %v5356 = vpop.f32.mrf.mxu0
        %v5357 = vadd.f32 0.0, %v5356
        %v5358 = vpop.f32.mrf.mxu0
        %5359 = vmatprep.mubr.f32.mxu0 0.0
        %5360 = vmatmul.mubr.f32.gmra.mxu0 %v5266
        %v5361 = vpop.f32.mrf.mxu0
        %v5362 = vadd.f32 0.0, %v5361
        %v5363 = vpop.f32.mrf.mxu0
        %5364 = vmatprep.mubr.f32.mxu0 0.0
        %5365 = vmatmul.mubr.f32.gmra.mxu0 %v5269
        %v5366 = vpop.f32.mrf.mxu0
        %v5367 = vadd.f32 0.0, %v5366
        %v5368 = vpop.f32.mrf.mxu0
        %5369 = vmatprep.mubr.f32.mxu0 0.0
        %5370 = vmatmul.mubr.f32.gmra.mxu0 %v5272
        %v5371 = vpop.f32.mrf.mxu0
        %v5372 = vadd.f32 0.0, %v5371
        %v5373 = vpop.f32.mrf.mxu0
        %5374 = vmatprep.mubr.f32.mxu0 0.0
        %5375 = vmatmul.mubr.f32.gmra.mxu0 %v5275
        %v5376 = vpop.f32.mrf.mxu0
        %v5377 = vadd.f32 0.0, %v5376
        %v5378 = vpop.f32.mrf.mxu0
        %5379 = vmatprep.mubr.f32.mxu0 0.0
        %5380 = vmatmul.mubr.f32.gmra.mxu0 %v5278
        %v5381 = vpop.f32.mrf.mxu0
        %v5382 = vadd.f32 0.0, %v5381
        %v5383 = vpop.f32.mrf.mxu0
        %5384 = vdwg.mxu0
        %v5385 = vadd.f32 %v5184, %v5347
        %v5386 = vadd.f32 %v5185, %v5352
        %v5387 = vadd.f32 %v5186, %v5357
        %v5388 = vadd.f32 %v5187, %v5362
        %v5389 = vadd.f32 %v5188, %v5367
        %v5390 = vadd.f32 %v5189, %v5372
        %v5391 = vadd.f32 %v5190, %v5377
        %v5392 = vadd.f32 %v5191, %v5382
        %v5393 = vld [vmem:[%s4280] sm:$0xff]
        %v5394 = vld [vmem:[%s4280 + $0x10] sm:$0xff]
        %v5395 = vld [vmem:[%s4280 + $0x20] sm:$0xff]
        %v5396 = vld [vmem:[%s4280 + $0x30] sm:$0xff]
        %v5397 = vld [vmem:[%s4280 + $0x40] sm:$0xff]
        %v5398 = vld [vmem:[%s4280 + $0x50] sm:$0xff]
        %v5399 = vld [vmem:[%s4280 + $0x60] sm:$0xff]
        %v5400 = vld [vmem:[%s4280 + $0x70] sm:$0xff]
        %s5401 = scalar_lea.vmem %s6, 40
        %v5402 = vld [vmem:[%s5401] sm:$0xff]
        %v5404 = vsel %vm4137, %v5393, 0
        %v5407 = vsel %vm4137, %v5394, 0
        %v5410 = vsel %vm4137, %v5395, 0
        %v5413 = vsel %vm4137, %v5396, 0
        %v5416 = vsel %vm4137, %v5397, 0
        %v5419 = vsel %vm4137, %v5398, 0
        %v5422 = vsel %vm4137, %v5399, 0
        %v5425 = vsel %vm4137, %v5400, 0
        %5427 = vmatprep.subr.mxu0 0.0
        %5428 = vmatpush1.msra.mxu0 0.0
        %5429 = vmatprep.subr.mxu0 0.0
        %5430 = vmatpush1.msra.mxu0 0.0
        %5431 = vmatprep.subr.mxu0 0.0
        %5432 = vmatpush1.msra.mxu0 0.0
        %5433 = vmatprep.subr.mxu0 0.0
        %5434 = vmatpush1.msra.mxu0 0.0
        %5435 = vmatprep.subr.mxu0 0.0
        %5436 = vmatpush1.msra.mxu0 0.0
        %5437 = vmatprep.subr.mxu0 0.0
        %5438 = vmatpush1.msra.mxu0 0.0
        %5439 = vmatprep.subr.mxu0 0.0
        %5440 = vmatpush1.msra.mxu0 0.0
        %5441 = vmatprep.subr.mxu0 0.0
        %5442 = vmatpush1.msra.mxu0 0.0
        %5443 = vmatprep.subr.mxu0 0.0
        %5444 = vmatpush1.msra.mxu0 0.0
        %5445 = vmatprep.subr.mxu0 0.0
        %5446 = vmatpush1.msra.mxu0 0.0
        %5447 = vmatprep.subr.mxu0 0.0
        %5448 = vmatpush1.msra.mxu0 0.0
        %5449 = vmatprep.subr.mxu0 0.0
        %5450 = vmatpush1.msra.mxu0 0.0
        %5451 = vmatprep.subr.mxu0 0.0
        %5452 = vmatpush1.msra.mxu0 0.0
        %5453 = vmatprep.subr.mxu0 0.0
        %5454 = vmatpush1.msra.mxu0 0.0
        %5455 = vmatprep.subr.mxu0 0.0
        %5456 = vmatpush1.msra.mxu0 0.0
        %5457 = vmatprep.subr.mxu0 0.0
        %5458 = vmatpush1.msra.mxu0 %v5402
        %5459 = vmatprep.subr.mxu0 0.0
        %5460 = vmatpush2.msra.mxu0 0.0
        %5461 = vmatprep.subr.mxu0 0.0
        %5462 = vmatpush2.msra.mxu0 0.0
        %5463 = vmatprep.subr.mxu0 0.0
        %5464 = vmatpush2.msra.mxu0 0.0
        %5465 = vmatprep.subr.mxu0 0.0
        %5466 = vmatpush2.msra.mxu0 0.0
        %5467 = vmatprep.subr.mxu0 0.0
        %5468 = vmatpush2.msra.mxu0 0.0
        %5469 = vmatprep.subr.mxu0 0.0
        %5470 = vmatpush2.msra.mxu0 0.0
        %5471 = vmatprep.subr.mxu0 0.0
        %5472 = vmatpush2.msra.mxu0 0.0
        %5473 = vmatprep.subr.mxu0 0.0
        %5474 = vmatpush2.msra.mxu0 0.0
        %5475 = vmatprep.subr.mxu0 0.0
        %5476 = vmatpush2.msra.mxu0 0.0
        %5477 = vmatprep.subr.mxu0 0.0
        %5478 = vmatpush2.msra.mxu0 0.0
        %5479 = vmatprep.subr.mxu0 0.0
        %5480 = vmatpush2.msra.mxu0 0.0
        %5481 = vmatprep.subr.mxu0 0.0
        %5482 = vmatpush2.msra.mxu0 0.0
        %5483 = vmatprep.subr.mxu0 0.0
        %5484 = vmatpush2.msra.mxu0 0.0
        %5485 = vmatprep.subr.mxu0 0.0
        %5486 = vmatpush2.msra.mxu0 0.0
        %5487 = vmatprep.subr.mxu0 0.0
        %5488 = vmatpush2.msra.mxu0 0.0
        %5489 = vmatprep.subr.mxu0 0.0
        %5490 = vmatpush2.msra.mxu0 0.0
        %5491 = vmatprep.mubr.f32.mxu0 0.0
        %5492 = vmatmul.mubr.f32.gmra.mxu0 %v5404
        %v5493 = vpop.f32.mrf.mxu0
        %v5494 = vadd.f32 0.0, %v5493
        %v5495 = vpop.f32.mrf.mxu0
        %5496 = vmatprep.mubr.f32.mxu0 0.0
        %5497 = vmatmul.mubr.f32.gmra.mxu0 %v5407
        %v5498 = vpop.f32.mrf.mxu0
        %v5499 = vadd.f32 0.0, %v5498
        %v5500 = vpop.f32.mrf.mxu0
        %5501 = vmatprep.mubr.f32.mxu0 0.0
        %5502 = vmatmul.mubr.f32.gmra.mxu0 %v5410
        %v5503 = vpop.f32.mrf.mxu0
        %v5504 = vadd.f32 0.0, %v5503
        %v5505 = vpop.f32.mrf.mxu0
        %5506 = vmatprep.mubr.f32.mxu0 0.0
        %5507 = vmatmul.mubr.f32.gmra.mxu0 %v5413
        %v5508 = vpop.f32.mrf.mxu0
        %v5509 = vadd.f32 0.0, %v5508
        %v5510 = vpop.f32.mrf.mxu0
        %5511 = vmatprep.mubr.f32.mxu0 0.0
        %5512 = vmatmul.mubr.f32.gmra.mxu0 %v5416
        %v5513 = vpop.f32.mrf.mxu0
        %v5514 = vadd.f32 0.0, %v5513
        %v5515 = vpop.f32.mrf.mxu0
        %5516 = vmatprep.mubr.f32.mxu0 0.0
        %5517 = vmatmul.mubr.f32.gmra.mxu0 %v5419
        %v5518 = vpop.f32.mrf.mxu0
        %v5519 = vadd.f32 0.0, %v5518
        %v5520 = vpop.f32.mrf.mxu0
        %5521 = vmatprep.mubr.f32.mxu0 0.0
        %5522 = vmatmul.mubr.f32.gmra.mxu0 %v5422
        %v5523 = vpop.f32.mrf.mxu0
        %v5524 = vadd.f32 0.0, %v5523
        %v5525 = vpop.f32.mrf.mxu0
        %5526 = vmatprep.mubr.f32.mxu0 0.0
        %5527 = vmatmul.mubr.f32.gmra.mxu0 %v5425
        %v5528 = vpop.f32.mrf.mxu0
        %v5529 = vadd.f32 0.0, %v5528
        %v5530 = vpop.f32.mrf.mxu0
        %5531 = vdwg.mxu0
        %v5532 = vadd.f32 %v5385, %v5494
        %v5533 = vadd.f32 %v5386, %v5499
        %v5534 = vadd.f32 %v5387, %v5504
        %v5535 = vadd.f32 %v5388, %v5509
        %v5536 = vadd.f32 %v5389, %v5514
        %v5537 = vadd.f32 %v5390, %v5519
        %v5538 = vadd.f32 %v5391, %v5524
        %v5539 = vadd.f32 %v5392, %v5529
        %v5540 = vld [vmem:[%s4549] sm:$0xff]
        %v5541 = vld [vmem:[%s4549 + $0x10] sm:$0xff]
        %v5542 = vld [vmem:[%s4549 + $0x20] sm:$0xff]
        %v5543 = vld [vmem:[%s4549 + $0x30] sm:$0xff]
        %v5544 = vld [vmem:[%s4549 + $0x40] sm:$0xff]
        %v5545 = vld [vmem:[%s4549 + $0x50] sm:$0xff]
        %v5546 = vld [vmem:[%s4549 + $0x60] sm:$0xff]
        %v5547 = vld [vmem:[%s4549 + $0x70] sm:$0xff]
        %s5548 = scalar_lea.vmem %s6, 64
        %v5549 = vld [vmem:[%s5548] sm:$0xff]
        %v5551 = vsel %vm4137, %v5540, 0
        %v5554 = vsel %vm4137, %v5541, 0
        %v5557 = vsel %vm4137, %v5542, 0
        %v5560 = vsel %vm4137, %v5543, 0
        %v5563 = vsel %vm4137, %v5544, 0
        %v5566 = vsel %vm4137, %v5545, 0
        %v5569 = vsel %vm4137, %v5546, 0
        %v5572 = vsel %vm4137, %v5547, 0
        %5574 = vmatprep.subr.mxu0 0.0
        %5575 = vmatpush1.msra.mxu0 0.0
        %5576 = vmatprep.subr.mxu0 0.0
        %5577 = vmatpush1.msra.mxu0 0.0
        %5578 = vmatprep.subr.mxu0 0.0
        %5579 = vmatpush1.msra.mxu0 0.0
        %5580 = vmatprep.subr.mxu0 0.0
        %5581 = vmatpush1.msra.mxu0 0.0
        %5582 = vmatprep.subr.mxu0 0.0
        %5583 = vmatpush1.msra.mxu0 0.0
        %5584 = vmatprep.subr.mxu0 0.0
        %5585 = vmatpush1.msra.mxu0 0.0
        %5586 = vmatprep.subr.mxu0 0.0
        %5587 = vmatpush1.msra.mxu0 0.0
        %5588 = vmatprep.subr.mxu0 0.0
        %5589 = vmatpush1.msra.mxu0 0.0
        %5590 = vmatprep.subr.mxu0 0.0
        %5591 = vmatpush1.msra.mxu0 0.0
        %5592 = vmatprep.subr.mxu0 0.0
        %5593 = vmatpush1.msra.mxu0 0.0
        %5594 = vmatprep.subr.mxu0 0.0
        %5595 = vmatpush1.msra.mxu0 0.0
        %5596 = vmatprep.subr.mxu0 0.0
        %5597 = vmatpush1.msra.mxu0 0.0
        %5598 = vmatprep.subr.mxu0 0.0
        %5599 = vmatpush1.msra.mxu0 0.0
        %5600 = vmatprep.subr.mxu0 0.0
        %5601 = vmatpush1.msra.mxu0 0.0
        %5602 = vmatprep.subr.mxu0 0.0
        %5603 = vmatpush1.msra.mxu0 0.0
        %5604 = vmatprep.subr.mxu0 0.0
        %5605 = vmatpush1.msra.mxu0 %v5549
        %5606 = vmatprep.subr.mxu0 0.0
        %5607 = vmatpush2.msra.mxu0 0.0
        %5608 = vmatprep.subr.mxu0 0.0
        %5609 = vmatpush2.msra.mxu0 0.0
        %5610 = vmatprep.subr.mxu0 0.0
        %5611 = vmatpush2.msra.mxu0 0.0
        %5612 = vmatprep.subr.mxu0 0.0
        %5613 = vmatpush2.msra.mxu0 0.0
        %5614 = vmatprep.subr.mxu0 0.0
        %5615 = vmatpush2.msra.mxu0 0.0
        %5616 = vmatprep.subr.mxu0 0.0
        %5617 = vmatpush2.msra.mxu0 0.0
        %5618 = vmatprep.subr.mxu0 0.0
        %5619 = vmatpush2.msra.mxu0 0.0
        %5620 = vmatprep.subr.mxu0 0.0
        %5621 = vmatpush2.msra.mxu0 0.0
        %5622 = vmatprep.subr.mxu0 0.0
        %5623 = vmatpush2.msra.mxu0 0.0
        %5624 = vmatprep.subr.mxu0 0.0
        %5625 = vmatpush2.msra.mxu0 0.0
        %5626 = vmatprep.subr.mxu0 0.0
        %5627 = vmatpush2.msra.mxu0 0.0
        %5628 = vmatprep.subr.mxu0 0.0
        %5629 = vmatpush2.msra.mxu0 0.0
        %5630 = vmatprep.subr.mxu0 0.0
        %5631 = vmatpush2.msra.mxu0 0.0
        %5632 = vmatprep.subr.mxu0 0.0
        %5633 = vmatpush2.msra.mxu0 0.0
        %5634 = vmatprep.subr.mxu0 0.0
        %5635 = vmatpush2.msra.mxu0 0.0
        %5636 = vmatprep.subr.mxu0 0.0
        %5637 = vmatpush2.msra.mxu0 0.0
        %5638 = vmatprep.mubr.f32.mxu0 0.0
        %5639 = vmatmul.mubr.f32.gmra.mxu0 %v5551
        %v5640 = vpop.f32.mrf.mxu0
        %v5641 = vadd.f32 0.0, %v5640
        %v5642 = vpop.f32.mrf.mxu0
        %5643 = vmatprep.mubr.f32.mxu0 0.0
        %5644 = vmatmul.mubr.f32.gmra.mxu0 %v5554
        %v5645 = vpop.f32.mrf.mxu0
        %v5646 = vadd.f32 0.0, %v5645
        %v5647 = vpop.f32.mrf.mxu0
        %5648 = vmatprep.mubr.f32.mxu0 0.0
        %5649 = vmatmul.mubr.f32.gmra.mxu0 %v5557
        %v5650 = vpop.f32.mrf.mxu0
        %v5651 = vadd.f32 0.0, %v5650
        %v5652 = vpop.f32.mrf.mxu0
        %5653 = vmatprep.mubr.f32.mxu0 0.0
        %5654 = vmatmul.mubr.f32.gmra.mxu0 %v5560
        %v5655 = vpop.f32.mrf.mxu0
        %v5656 = vadd.f32 0.0, %v5655
        %v5657 = vpop.f32.mrf.mxu0
        %5658 = vmatprep.mubr.f32.mxu0 0.0
        %5659 = vmatmul.mubr.f32.gmra.mxu0 %v5563
        %v5660 = vpop.f32.mrf.mxu0
        %v5661 = vadd.f32 0.0, %v5660
        %v5662 = vpop.f32.mrf.mxu0
        %5663 = vmatprep.mubr.f32.mxu0 0.0
        %5664 = vmatmul.mubr.f32.gmra.mxu0 %v5566
        %v5665 = vpop.f32.mrf.mxu0
        %v5666 = vadd.f32 0.0, %v5665
        %v5667 = vpop.f32.mrf.mxu0
        %5668 = vmatprep.mubr.f32.mxu0 0.0
        %5669 = vmatmul.mubr.f32.gmra.mxu0 %v5569
        %v5670 = vpop.f32.mrf.mxu0
        %v5671 = vadd.f32 0.0, %v5670
        %v5672 = vpop.f32.mrf.mxu0
        %5673 = vmatprep.mubr.f32.mxu0 0.0
        %5674 = vmatmul.mubr.f32.gmra.mxu0 %v5572
        %v5675 = vpop.f32.mrf.mxu0
        %v5676 = vadd.f32 0.0, %v5675
        %v5677 = vpop.f32.mrf.mxu0
        %5678 = vdwg.mxu0
        %v5679 = vadd.f32 %v5532, %v5641
        %v5680 = vadd.f32 %v5533, %v5646
        %v5681 = vadd.f32 %v5534, %v5651
        %v5682 = vadd.f32 %v5535, %v5656
        %v5683 = vadd.f32 %v5536, %v5661
        %v5684 = vadd.f32 %v5537, %v5666
        %v5685 = vadd.f32 %v5538, %v5671
        %v5686 = vadd.f32 %v5539, %v5676
        %v5687 = vld [vmem:[%s7] sm:$0x1]
        %v5689 = vlaneseq
        %v5690 = vshrl.u32 %v5689, 7
        %v5691 = vsub.s32 0, %v5690
        %v5692 = vrot.slane %v5687, %v5691
        %v5694 = vadd.f32 %v5679, %v5692
        %v5695 = vadd.f32 %v5680, %v5692
        %v5696 = vadd.f32 %v5681, %v5692
        %v5697 = vadd.f32 %v5682, %v5692
        %v5698 = vadd.f32 %v5683, %v5692
        %v5699 = vadd.f32 %v5684, %v5692
        %v5700 = vadd.f32 %v5685, %v5692
        %v5701 = vadd.f32 %v5686, %v5692
        %v5702 = vld [vmem:[%s357] ss:$2 sm:$0xff]
        %s5703 = scalar_lea.vmem %s357, 16
        %v5704 = vld [vmem:[%s5703] ss:$2 sm:$0xff]
        %s5705 = scalar_lea.vmem %s357, 32
        %v5706 = vld [vmem:[%s5705] ss:$2 sm:$0xff]
        %s5707 = scalar_lea.vmem %s357, 48
        %v5708 = vld [vmem:[%s5707] ss:$2 sm:$0xff]
        %s5709 = scalar_lea.vmem %s357, 64
        %v5710 = vld [vmem:[%s5709] ss:$2 sm:$0xff]
        %s5711 = scalar_lea.vmem %s357, 80
        %v5712 = vld [vmem:[%s5711] ss:$2 sm:$0xff]
        %s5713 = scalar_lea.vmem %s357, 96
        %v5714 = vld [vmem:[%s5713] ss:$2 sm:$0xff]
        %s5715 = scalar_lea.vmem %s357, 112
        %v5716 = vld [vmem:[%s5715] ss:$2 sm:$0xff]
        %s5717 = scalar_lea.vmem %s357, 128
        %v5718 = vld [vmem:[%s5717] ss:$2 sm:$0xff]
        %s5719 = scalar_lea.vmem %s357, 144
        %v5720 = vld [vmem:[%s5719] ss:$2 sm:$0xff]
        %s5721 = scalar_lea.vmem %s357, 160
        %v5722 = vld [vmem:[%s5721] ss:$2 sm:$0xff]
        %s5723 = scalar_lea.vmem %s357, 176
        %v5724 = vld [vmem:[%s5723] ss:$2 sm:$0xff]
        %s5725 = scalar_lea.vmem %s357, 192
        %v5726 = vld [vmem:[%s5725] ss:$2 sm:$0xff]
        %s5727 = scalar_lea.vmem %s357, 208
        %v5728 = vld [vmem:[%s5727] ss:$2 sm:$0xff]
        %s5729 = scalar_lea.vmem %s357, 224
        %v5730 = vld [vmem:[%s5729] ss:$2 sm:$0xff]
        %s5731 = scalar_lea.vmem %s357, 240
        %v5732 = vld [vmem:[%s5731] ss:$2 sm:$0xff]
        %5733 = vst.msk [vmem:[#allocation5] sm:$0xff] %vm500, %v5702
        %5734 = vst.msk [vmem:[#allocation5 + $0x8] sm:$0xff] %vm500, %v5704
        %5735 = vst.msk [vmem:[#allocation5 + $0x10] sm:$0xff] %vm500, %v5706
        %5736 = vst.msk [vmem:[#allocation5 + $0x18] sm:$0xff] %vm500, %v5708
        %5737 = vst.msk [vmem:[#allocation5 + $0x20] sm:$0xff] %vm500, %v5710
        %5738 = vst.msk [vmem:[#allocation5 + $0x28] sm:$0xff] %vm500, %v5712
        %5739 = vst.msk [vmem:[#allocation5 + $0x30] sm:$0xff] %vm500, %v5714
        %5740 = vst.msk [vmem:[#allocation5 + $0x38] sm:$0xff] %vm500, %v5716
        %5741 = vst.msk [vmem:[#allocation5 + $0x40] sm:$0xff] %vm500, %v5718
        %5742 = vst.msk [vmem:[#allocation5 + $0x48] sm:$0xff] %vm500, %v5720
        %5743 = vst.msk [vmem:[#allocation5 + $0x50] sm:$0xff] %vm500, %v5722
        %5744 = vst.msk [vmem:[#allocation5 + $0x58] sm:$0xff] %vm500, %v5724
        %5745 = vst.msk [vmem:[#allocation5 + $0x60] sm:$0xff] %vm500, %v5726
        %5746 = vst.msk [vmem:[#allocation5 + $0x68] sm:$0xff] %vm500, %v5728
        %5747 = vst.msk [vmem:[#allocation5 + $0x70] sm:$0xff] %vm500, %v5730
        %5748 = vst.msk [vmem:[#allocation5 + $0x78] sm:$0xff] %vm500, %v5732
        %v5749 = vld [vmem:[#allocation5] sm:$0xff]
        %v5750 = vld [vmem:[#allocation5 + $0x10] sm:$0xff]
        %v5751 = vld [vmem:[#allocation5 + $0x20] sm:$0xff]
        %v5752 = vld [vmem:[#allocation5 + $0x30] sm:$0xff]
        %v5753 = vld [vmem:[#allocation5 + $0x40] sm:$0xff]
        %v5754 = vld [vmem:[#allocation5 + $0x50] sm:$0xff]
        %v5755 = vld [vmem:[#allocation5 + $0x60] sm:$0xff]
        %v5756 = vld [vmem:[#allocation5 + $0x70] sm:$0xff]
        %v5757 = vld [vmem:[%s8] sm:$0xf]
        %v5759 = vsel %vm500, %v5749, 0
        %v5762 = vsel %vm500, %v5750, 0
        %v5765 = vsel %vm500, %v5751, 0
        %v5768 = vsel %vm500, %v5752, 0
        %v5771 = vsel %vm500, %v5753, 0
        %v5774 = vsel %vm500, %v5754, 0
        %v5777 = vsel %vm500, %v5755, 0
        %v5780 = vsel %vm500, %v5756, 0
        %v5783 = vsel %vm743, %v5757, 0
        %5785 = vmatprep.subr.mxu0 0.0
        %5786 = vmatpush1.msra.mxu0 0.0
        %5787 = vmatprep.subr.mxu0 0.0
        %5788 = vmatpush1.msra.mxu0 0.0
        %5789 = vmatprep.subr.mxu0 0.0
        %5790 = vmatpush1.msra.mxu0 0.0
        %5791 = vmatprep.subr.mxu0 0.0
        %5792 = vmatpush1.msra.mxu0 0.0
        %5793 = vmatprep.subr.mxu0 0.0
        %5794 = vmatpush1.msra.mxu0 0.0
        %5795 = vmatprep.subr.mxu0 0.0
        %5796 = vmatpush1.msra.mxu0 0.0
        %5797 = vmatprep.subr.mxu0 0.0
        %5798 = vmatpush1.msra.mxu0 0.0
        %5799 = vmatprep.subr.mxu0 0.0
        %5800 = vmatpush1.msra.mxu0 0.0
        %5801 = vmatprep.subr.mxu0 0.0
        %5802 = vmatpush1.msra.mxu0 0.0
        %5803 = vmatprep.subr.mxu0 0.0
        %5804 = vmatpush1.msra.mxu0 0.0
        %5805 = vmatprep.subr.mxu0 0.0
        %5806 = vmatpush1.msra.mxu0 0.0
        %5807 = vmatprep.subr.mxu0 0.0
        %5808 = vmatpush1.msra.mxu0 0.0
        %5809 = vmatprep.subr.mxu0 0.0
        %5810 = vmatpush1.msra.mxu0 0.0
        %5811 = vmatprep.subr.mxu0 0.0
        %5812 = vmatpush1.msra.mxu0 0.0
        %5813 = vmatprep.subr.mxu0 0.0
        %5814 = vmatpush1.msra.mxu0 0.0
        %5815 = vmatprep.subr.mxu0 0.0
        %5816 = vmatpush1.msra.mxu0 %v5783
        %5817 = vmatprep.subr.mxu0 0.0
        %5818 = vmatpush2.msra.mxu0 0.0
        %5819 = vmatprep.subr.mxu0 0.0
        %5820 = vmatpush2.msra.mxu0 0.0
        %5821 = vmatprep.subr.mxu0 0.0
        %5822 = vmatpush2.msra.mxu0 0.0
        %5823 = vmatprep.subr.mxu0 0.0
        %5824 = vmatpush2.msra.mxu0 0.0
        %5825 = vmatprep.subr.mxu0 0.0
        %5826 = vmatpush2.msra.mxu0 0.0
        %5827 = vmatprep.subr.mxu0 0.0
        %5828 = vmatpush2.msra.mxu0 0.0
        %5829 = vmatprep.subr.mxu0 0.0
        %5830 = vmatpush2.msra.mxu0 0.0
        %5831 = vmatprep.subr.mxu0 0.0
        %5832 = vmatpush2.msra.mxu0 0.0
        %5833 = vmatprep.subr.mxu0 0.0
        %5834 = vmatpush2.msra.mxu0 0.0
        %5835 = vmatprep.subr.mxu0 0.0
        %5836 = vmatpush2.msra.mxu0 0.0
        %5837 = vmatprep.subr.mxu0 0.0
        %5838 = vmatpush2.msra.mxu0 0.0
        %5839 = vmatprep.subr.mxu0 0.0
        %5840 = vmatpush2.msra.mxu0 0.0
        %5841 = vmatprep.subr.mxu0 0.0
        %5842 = vmatpush2.msra.mxu0 0.0
        %5843 = vmatprep.subr.mxu0 0.0
        %5844 = vmatpush2.msra.mxu0 0.0
        %5845 = vmatprep.subr.mxu0 0.0
        %5846 = vmatpush2.msra.mxu0 0.0
        %5847 = vmatprep.subr.mxu0 0.0
        %5848 = vmatpush2.msra.mxu0 0.0
        %5849 = vmatprep.mubr.f32.mxu0 0.0
        %5850 = vmatmul.mubr.f32.gmra.mxu0 %v5759
        %v5851 = vpop.f32.mrf.mxu0
        %v5852 = vadd.f32 0.0, %v5851
        %v5853 = vpop.f32.mrf.mxu0
        %5854 = vmatprep.mubr.f32.mxu0 0.0
        %5855 = vmatmul.mubr.f32.gmra.mxu0 %v5762
        %v5856 = vpop.f32.mrf.mxu0
        %v5857 = vadd.f32 0.0, %v5856
        %v5858 = vpop.f32.mrf.mxu0
        %5859 = vmatprep.mubr.f32.mxu0 0.0
        %5860 = vmatmul.mubr.f32.gmra.mxu0 %v5765
        %v5861 = vpop.f32.mrf.mxu0
        %v5862 = vadd.f32 0.0, %v5861
        %v5863 = vpop.f32.mrf.mxu0
        %5864 = vmatprep.mubr.f32.mxu0 0.0
        %5865 = vmatmul.mubr.f32.gmra.mxu0 %v5768
        %v5866 = vpop.f32.mrf.mxu0
        %v5867 = vadd.f32 0.0, %v5866
        %v5868 = vpop.f32.mrf.mxu0
        %5869 = vmatprep.mubr.f32.mxu0 0.0
        %5870 = vmatmul.mubr.f32.gmra.mxu0 %v5771
        %v5871 = vpop.f32.mrf.mxu0
        %v5872 = vadd.f32 0.0, %v5871
        %v5873 = vpop.f32.mrf.mxu0
        %5874 = vmatprep.mubr.f32.mxu0 0.0
        %5875 = vmatmul.mubr.f32.gmra.mxu0 %v5774
        %v5876 = vpop.f32.mrf.mxu0
        %v5877 = vadd.f32 0.0, %v5876
        %v5878 = vpop.f32.mrf.mxu0
        %5879 = vmatprep.mubr.f32.mxu0 0.0
        %5880 = vmatmul.mubr.f32.gmra.mxu0 %v5777
        %v5881 = vpop.f32.mrf.mxu0
        %v5882 = vadd.f32 0.0, %v5881
        %v5883 = vpop.f32.mrf.mxu0
        %5884 = vmatprep.mubr.f32.mxu0 0.0
        %5885 = vmatmul.mubr.f32.gmra.mxu0 %v5780
        %v5886 = vpop.f32.mrf.mxu0
        %v5887 = vadd.f32 0.0, %v5886
        %v5888 = vpop.f32.mrf.mxu0
        %5889 = vdwg.mxu0
        %v5890 = vadd.f32 %v5694, %v5852
        %v5891 = vadd.f32 %v5695, %v5857
        %v5892 = vadd.f32 %v5696, %v5862
        %v5893 = vadd.f32 %v5697, %v5867
        %v5894 = vadd.f32 %v5698, %v5872
        %v5895 = vadd.f32 %v5699, %v5877
        %v5896 = vadd.f32 %v5700, %v5882
        %v5897 = vadd.f32 %v5701, %v5887
        %v5898 = vld [vmem:[%s9] sm:$0x1]
        %v5900 = vlaneseq
        %v5901 = vshrl.u32 %v5900, 7
        %v5902 = vsub.s32 0, %v5901
        %v5903 = vrot.slane %v5898, %v5902
        %v5905 = vadd.f32 %v5890, %v5903
        %v5906 = vadd.f32 %v5891, %v5903
        %v5907 = vadd.f32 %v5892, %v5903
        %v5908 = vadd.f32 %v5893, %v5903
        %v5909 = vadd.f32 %v5894, %v5903
        %v5910 = vadd.f32 %v5895, %v5903
        %v5911 = vadd.f32 %v5896, %v5903
        %v5912 = vadd.f32 %v5897, %v5903
        %5913 = vst.msk [vmem:[%s352] sm:$0xff] %vm4137, %v5905
        %5914 = vst.msk [vmem:[%s352 + $0x8] sm:$0xff] %vm4137, %v5906
        %5915 = vst.msk [vmem:[%s352 + $0x10] sm:$0xff] %vm4137, %v5907
        %5916 = vst.msk [vmem:[%s352 + $0x18] sm:$0xff] %vm4137, %v5908
        %5917 = vst.msk [vmem:[%s352 + $0x20] sm:$0xff] %vm4137, %v5909
        %5918 = vst.msk [vmem:[%s352 + $0x28] sm:$0xff] %vm4137, %v5910
        %5919 = vst.msk [vmem:[%s352 + $0x30] sm:$0xff] %vm4137, %v5911
        %5920 = vst.msk [vmem:[%s352 + $0x38] sm:$0xff] %vm4137, %v5912
        %s5921 = sand.u32 %s247, 1
        %s5922 = scalar_lea.sflag [#allocation7], %s5921
        %s5923 = sand.u32 %s247, 1
        %s5924 = smul.addr %s5923, 64
        %s5925 = scalar_lea.vmem [#allocation6], %s5924
        // Predicated region
        $region61: #{tpu_custom_call.1} parent=59 // pred_check
          %p5926 = pneg %p257
        $region62: #{tpu_custom_call.1} parent=59 // pred_check_branch
          %5928 = sbr.rel (%p5926) target = $region64
        $region63: #{tpu_custom_call.1} parent=59 // pred_region
          %s5930 = ssub.s32 1024, 1024
          %5931 = vsyncadd %s5922, %s5930
          %s5932 = smul.addr %s24, 8
          %s5933 = smul.addr %s5932, 128
          %s5934 = scalar_lea.hbm %s10, %s5933
          %s5935 = sshll.u32 %s5925, 4
          %s5936 = int_to_ptr.vmem [resolvable:$true] %s5935
          %5941 = dma.vmem_to_hbm [thread:$0]  %s5936, 1024, %s5934, %s5922, 128, 128, 8
        $region64: #{tpu_custom_call.1} parent=59 // pred_fallthru
          _
      $region60: #{tpu_custom_call.1} parent=5 // pred_fallthru
        _
      %p5942 = scmp.le.s32.totalorder 2, %s19
      // Predicated region
      $region65: #{tpu_custom_call.1} parent=5 // pred_check
        %p5943 = pneg %p5942
      $region66: #{tpu_custom_call.1} parent=5 // pred_check_branch
        %5945 = sbr.rel (%p5943) target = $region68
      $region67: #{tpu_custom_call.1} parent=5 // pred_region
        %s5946 = ssub.s32 %s19, 2
        // Predicated region
        $region69: #{tpu_custom_call.1} parent=67 // pred_check
          %p5947 = pneg %p263
        $region70: #{tpu_custom_call.1} parent=67 // pred_check_branch
          %5949 = sbr.rel (%p5947) target = $region72
        $region71: #{tpu_custom_call.1} parent=67 // pred_region
          %s5950 = sand.u32 %s248, 1
          %s5951 = scalar_lea.sflag [#allocation7], %s5950
          %s5952 = sand.u32 %s248, 1
          %s5953 = smul.addr %s5952, 64
          %s5954 = scalar_lea.vmem [#allocation6], %s5953
          %5955 = dma.done %s5951, 1024
        $region72: #{tpu_custom_call.1} parent=67 // pred_fallthru
          _
      $region68: #{tpu_custom_call.1} parent=5 // pred_fallthru
        _
    $region6: #{tpu_custom_call.1} parent=1 // loop_footer
      %s23 = sadd.s32 1, %s19
    $region7: #{tpu_custom_call.1} parent=1 // loop_footer_branch
      %18 = sbr.rel target = $region3
    $region8: #{tpu_custom_call.1} parent=1 // loop_exit
      _
    %5956 = vsyncpa [#allocation7], 1
    %s5957 = scalar_lea.sflag [#allocation7], 1
    %5958 = vsyncpa %s5957, 1

</llo_original>
